<compile_context>
chip_gen: v6e
topology: v6e:2x2x1
jax: 0.10.0
libtpu: 0.0.40
codegen_flags: <defaults>
</compile_context>

<pallas_src>
import jax
import jax.numpy as jnp
from jax import lax
from jax.experimental import pallas as pl
from jax.experimental.pallas import tpu as pltpu

SUBLANE = 8
LANE = 128
VMEM_LIMIT = 48 * 1024 * 1024      # < physical VMEM on v5e/v6e (128 MiB) and v7x (64 MiB)
NEG_INF = -1e30


def _round_up(x, m):
    return ((x + m - 1) // m) * m


def _pick_block_t(T, max_block=8):
    """Largest divisor of T that is <= max_block (timesteps per grid step)."""
    for bt in range(min(T, max_block), 0, -1):
        if T % bt == 0:
            return bt
    return 1


def _lstm_pointwise(gates, c, H):
    # H == 128 -> every gate slice is a full 128-lane slab (VPU only, no XLU).
    i = jax.nn.sigmoid(gates[:, 0 * H:1 * H])
    f = jax.nn.sigmoid(gates[:, 1 * H:2 * H])
    g = jnp.tanh(gates[:, 2 * H:3 * H])
    o = jax.nn.sigmoid(gates[:, 3 * H:4 * H])
    c_new = f * c + i * g
    h_new = o * jnp.tanh(c_new)
    return h_new, c_new


# ---------------------------------------------------------------------------
# Kernel 1: full-sequence LSTM.  grid=(B/8, T/TT); hidden/cell state persist in
# VMEM scratch across the sequential ("arbitrary") time axis; batch tiles are
# "parallel" (megacore).  TT timesteps per grid step, unrolled inner loop.
# ---------------------------------------------------------------------------
def lstm_seq_kernel(x_ref, w_ih_ref, w_hh_ref, b_ref, hseq_ref, h_sc, c_sc):
    @pl.when(pl.program_id(1) == 0)
    def _():
        h_sc[...] = jnp.zeros_like(h_sc)
        c_sc[...] = jnp.zeros_like(c_sc)

    TT = hseq_ref.shape[0]
    H = h_sc.shape[-1]
    bias = b_ref[...]                       # hoisted: loaded once per grid step

    def step(tt, carry):
        h, c = carry
        x = x_ref[tt]                        # (BT, Din)
        gates = (jnp.dot(x, w_ih_ref[...], preferred_element_type=jnp.float32)
                 + jnp.dot(h, w_hh_ref[...], preferred_element_type=jnp.float32)
                 + bias)                     # (BT, 4H)
        h_new, c_new = _lstm_pointwise(gates, c, H)
        hseq_ref[tt] = h_new
        return (h_new, c_new)

    h, c = lax.fori_loop(0, TT, step, (h_sc[...], c_sc[...]), unroll=True)
    h_sc[...] = h
    c_sc[...] = c


def lstm_seq(x_tbd, w_ih, w_hh, b, hidden):
    T, B, Din = x_tbd.shape
    H = hidden
    TT = _pick_block_t(T)
    grid = (B // SUBLANE, T // TT)
    return pl.pallas_call(
        lstm_seq_kernel,
        out_shape=jax.ShapeDtypeStruct((T, B, H), jnp.float32),
        grid=grid,
        in_specs=[
            pl.BlockSpec((TT, SUBLANE, Din), lambda bi, ti: (ti, bi, 0)),
            pl.BlockSpec((Din, 4 * H), lambda bi, ti: (0, 0)),
            pl.BlockSpec((H, 4 * H), lambda bi, ti: (0, 0)),
            pl.BlockSpec((1, 4 * H), lambda bi, ti: (0, 0)),
        ],
        out_specs=pl.BlockSpec((TT, SUBLANE, H), lambda bi, ti: (ti, bi, 0)),
        scratch_shapes=[pltpu.VMEM((SUBLANE, H), jnp.float32),
                        pltpu.VMEM((SUBLANE, H), jnp.float32)],
        compiler_params=pltpu.CompilerParams(
            dimension_semantics=("parallel", "arbitrary"),
            vmem_limit_bytes=VMEM_LIMIT),
    )(x_tbd, w_ih, w_hh, b)


# ---------------------------------------------------------------------------
# Kernel 2: second (pyramidal) LSTM with the key/value projection fused into the
# per-step epilogue: emits kv_t = h_t @ [Wk | Wv] + [bk | bv] directly.
# ---------------------------------------------------------------------------
def lstm_kv_seq_kernel(x_ref, w_ih_ref, w_hh_ref, b_ref, wkv_ref, bkv_ref,
                       kv_ref, h_sc, c_sc):
    @pl.when(pl.program_id(1) == 0)
    def _():
        h_sc[...] = jnp.zeros_like(h_sc)
        c_sc[...] = jnp.zeros_like(c_sc)

    TT = kv_ref.shape[0]
    H = h_sc.shape[-1]
    bias = b_ref[...]
    bkv = bkv_ref[...]

    def step(tt, carry):
        h, c = carry
        x = x_ref[tt]                        # (BT, 2H)
        gates = (jnp.dot(x, w_ih_ref[...], preferred_element_type=jnp.float32)
                 + jnp.dot(h, w_hh_ref[...], preferred_element_type=jnp.float32)
                 + bias)
        h_new, c_new = _lstm_pointwise(gates, c, H)
        kv_ref[tt] = (jnp.dot(h_new, wkv_ref[...],
                              preferred_element_type=jnp.float32) + bkv)
        return (h_new, c_new)

    h, c = lax.fori_loop(0, TT, step, (h_sc[...], c_sc[...]), unroll=True)
    h_sc[...] = h
    c_sc[...] = c


def lstm_kv_seq(x_tbd, w_ih, w_hh, b, wkv, bkv, hidden, kv_dim):
    T, B, Din = x_tbd.shape
    H = hidden
    TT = _pick_block_t(T)
    grid = (B // SUBLANE, T // TT)
    return pl.pallas_call(
        lstm_kv_seq_kernel,
        out_shape=jax.ShapeDtypeStruct((T, B, kv_dim), jnp.float32),
        grid=grid,
        in_specs=[
            pl.BlockSpec((TT, SUBLANE, Din), lambda bi, ti: (ti, bi, 0)),
            pl.BlockSpec((Din, 4 * H), lambda bi, ti: (0, 0)),
            pl.BlockSpec((H, 4 * H), lambda bi, ti: (0, 0)),
            pl.BlockSpec((1, 4 * H), lambda bi, ti: (0, 0)),
            pl.BlockSpec((H, kv_dim), lambda bi, ti: (0, 0)),
            pl.BlockSpec((1, kv_dim), lambda bi, ti: (0, 0)),
        ],
        out_specs=pl.BlockSpec((TT, SUBLANE, kv_dim), lambda bi, ti: (ti, bi, 0)),
        scratch_shapes=[pltpu.VMEM((SUBLANE, H), jnp.float32),
                        pltpu.VMEM((SUBLANE, H), jnp.float32)],
        compiler_params=pltpu.CompilerParams(
            dimension_semantics=("parallel", "arbitrary"),
            vmem_limit_bytes=VMEM_LIMIT),
    )(x_tbd, w_ih, w_hh, b, wkv, bkv)


# ---------------------------------------------------------------------------
# Kernel 3: attention decoder, teacher forced.  grid=(B/8, T_dec/TT); LSTM state
# and attention context persist in VMEM scratch.  Attention score / context
# contractions run on the MXU; padded encoder positions are masked out.
# ---------------------------------------------------------------------------
def decoder_kernel(emb_ref, keys_ref, vals_ref, mask_ref,
                   w_ie_ref, w_ic_ref, w_hh_ref, b_ref,
                   wq_ref, bq_ref, wo1h_ref, wo1c_ref, bo1_ref,
                   wo2_ref, bo2_ref,
                   logits_ref, attn_ref,
                   h_sc, c_sc, ctx_sc):
    @pl.when(pl.program_id(1) == 0)
    def _():
        h_sc[...] = jnp.zeros_like(h_sc)
        c_sc[...] = jnp.zeros_like(c_sc)
        ctx_sc[...] = jnp.zeros_like(ctx_sc)

    TT = logits_ref.shape[0]
    H = h_sc.shape[-1]
    # Hoisted loads (JAX does not CSE these if placed inside the unrolled loop).
    bias = b_ref[...]
    bq = bq_ref[...]
    bo1 = bo1_ref[...]
    bo2 = bo2_ref[...]
    mask3 = mask_ref[...][:, None, :]        # (BT, 1, T_enc_pad) additive mask

    def step(tt, carry):
        h, c, ctx = carry
        emb = emb_ref[tt]                    # (BT, E)

        # LSTMCell on [emb ; ctx] (concat realized as split matmuls)
        gates = (jnp.dot(emb, w_ie_ref[...], preferred_element_type=jnp.float32)
                 + jnp.dot(ctx, w_ic_ref[...], preferred_element_type=jnp.float32)
                 + jnp.dot(h, w_hh_ref[...], preferred_element_type=jnp.float32)
                 + bias)
        h_new, c_new = _lstm_pointwise(gates, c, H)

        # dot-product attention over encoder keys / values (MXU einsums)
        q = (jnp.dot(h_new, wq_ref[...], preferred_element_type=jnp.float32)
             + bq)                                             # (BT, A)
        scores = jnp.einsum('bqa,bka->bqk', q[:, None, :], keys_ref[...],
                            preferred_element_type=jnp.float32)  # (BT, 1, Tp)
        scores = scores + mask3
        m = jnp.max(scores, axis=-1, keepdims=True)
        e = jnp.exp(scores - m)
        denom = jnp.sum(e, axis=-1, keepdims=True)
        attn = e * pl.reciprocal(denom, approx=True)           # (BT, 1, Tp)
        ctx3 = jnp.einsum('bqk,bka->bqa', attn, vals_ref[...],
                          preferred_element_type=jnp.float32)   # (BT, 1, A)
        ctx_new = jnp.sum(ctx3, axis=1)      # drop unit query dim -> (BT, A)
        attn2 = jnp.sum(attn, axis=1)        # drop unit query dim -> (BT, Tp)

        # output MLP on [h ; ctx]
        hid = jnp.maximum(
            jnp.dot(h_new, wo1h_ref[...], preferred_element_type=jnp.float32)
            + jnp.dot(ctx_new, wo1c_ref[...], preferred_element_type=jnp.float32)
            + bo1, 0.0)
        logits_ref[tt] = (jnp.dot(hid, wo2_ref[...],
                                  preferred_element_type=jnp.float32) + bo2)
        attn_ref[tt] = attn2
        return (h_new, c_new, ctx_new)

    h, c, ctx = lax.fori_loop(0, TT, step,
                              (h_sc[...], c_sc[...], ctx_sc[...]), unroll=True)
    h_sc[...] = h
    c_sc[...] = c
    ctx_sc[...] = ctx


def attention_decoder(emb_tbd, keys, values, mask, params):
    T_dec, B, E = emb_tbd.shape
    _, Tp, A = keys.shape
    H = params["w_hh_d"].shape[0]
    V = params["wo2"].shape[1]
    M = params["wo1h"].shape[1]
    TT = _pick_block_t(T_dec)
    grid = (B // SUBLANE, T_dec // TT)
    const2 = lambda bi, ti: (0, 0)
    return pl.pallas_call(
        decoder_kernel,
        out_shape=(jax.ShapeDtypeStruct((T_dec, B, V), jnp.float32),
                   jax.ShapeDtypeStruct((T_dec, B, Tp), jnp.float32)),
        grid=grid,
        in_specs=[
            pl.BlockSpec((TT, SUBLANE, E), lambda bi, ti: (ti, bi, 0)),
            pl.BlockSpec((SUBLANE, Tp, A), lambda bi, ti: (bi, 0, 0)),
            pl.BlockSpec((SUBLANE, Tp, A), lambda bi, ti: (bi, 0, 0)),
            pl.BlockSpec((SUBLANE, Tp), lambda bi, ti: (bi, 0)),
            pl.BlockSpec((E, 4 * H), const2),
            pl.BlockSpec((A, 4 * H), const2),
            pl.BlockSpec((H, 4 * H), const2),
            pl.BlockSpec((1, 4 * H), const2),
            pl.BlockSpec((H, A), const2),
            pl.BlockSpec((1, A), const2),
            pl.BlockSpec((H, M), const2),
            pl.BlockSpec((A, M), const2),
            pl.BlockSpec((1, M), const2),
            pl.BlockSpec((M, V), const2),
            pl.BlockSpec((1, V), const2),
        ],
        out_specs=(pl.BlockSpec((TT, SUBLANE, V), lambda bi, ti: (ti, bi, 0)),
                   pl.BlockSpec((TT, SUBLANE, Tp), lambda bi, ti: (ti, bi, 0))),
        scratch_shapes=[pltpu.VMEM((SUBLANE, H), jnp.float32),
                        pltpu.VMEM((SUBLANE, H), jnp.float32),
                        pltpu.VMEM((SUBLANE, A), jnp.float32)],
        compiler_params=pltpu.CompilerParams(
            dimension_semantics=("parallel", "arbitrary"),
            vmem_limit_bytes=VMEM_LIMIT),
    )(emb_tbd, keys, values, mask,
      params["w_ie_d"], params["w_ic_d"], params["w_hh_d"], params["b_d"],
      params["wq"], params["bq"],
      params["wo1h"], params["wo1c"], params["bo1"],
      params["wo2"], params["bo2"])


# ---------------------------------------------------------------------------
# Parameter construction (deterministic, synthetic)
# ---------------------------------------------------------------------------
def make_params(key, embed_size, hidden_size, attn_size,
                vocab_size, dec_embed_size, dec_hidden_size, dec_mlp_hidden):
    ks = jax.random.split(key, 20)
    s = 0.1
    n = lambda k, shape: (s * jax.random.normal(k, shape)).astype(jnp.float32)
    return {
        # encoder LSTM 1
        "w_ih_1": n(ks[0], (embed_size, 4 * hidden_size)),
        "w_hh_1": n(ks[1], (hidden_size, 4 * hidden_size)),
        "b_1":    n(ks[2], (1, 4 * hidden_size)),
        # encoder pyramidal LSTM (input = 2*hidden from time-pair concat)
        "w_ih_2": n(ks[3], (2 * hidden_size, 4 * hidden_size)),
        "w_hh_2": n(ks[4], (hidden_size, 4 * hidden_size)),
        "b_2":    n(ks[5], (1, 4 * hidden_size)),
        # fused key|value projection (H -> 2A)
        "wkv": n(ks[6], (hidden_size, 2 * attn_size)),
        "bkv": n(ks[7], (1, 2 * attn_size)),
        # decoder
        "embed": n(ks[10], (vocab_size, dec_embed_size)),
        "w_ie_d": n(ks[11], (dec_embed_size, 4 * dec_hidden_size)),
        "w_ic_d": n(ks[12], (attn_size, 4 * dec_hidden_size)),
        "w_hh_d": n(ks[13], (dec_hidden_size, 4 * dec_hidden_size)),
        "b_d":    n(ks[14], (1, 4 * dec_hidden_size)),
        "wq": n(ks[15], (dec_hidden_size, attn_size)), "bq": n(ks[16], (1, attn_size)),
        "wo1h": n(ks[17], (dec_hidden_size, dec_mlp_hidden)),
        "wo1c": n(ks[18], (attn_size, dec_mlp_hidden)),
        "bo1":  jnp.zeros((1, dec_mlp_hidden), jnp.float32),
        "wo2":  n(ks[19], (dec_mlp_hidden, vocab_size)),
        "bo2":  jnp.zeros((1, vocab_size), jnp.float32),
    }


# ---------------------------------------------------------------------------
# Sequence2Sequence.forward (training path, teacher forcing)
# ---------------------------------------------------------------------------
def sequence2sequence_forward(params, seq_batch, labels, hidden_size, attn_size,
                              sos_token=0, padding_value=0):
    B0, T_in, _ = seq_batch.shape
    H, A = hidden_size, attn_size

    # pad batch to a full sublane tile so every kernel block is (8, 128k)-dense
    B = _round_up(B0, SUBLANE)
    seq_batch = jnp.pad(seq_batch, ((0, B - B0), (0, 0), (0, 0)))
    labels_p = jnp.pad(labels, ((0, B - B0), (0, 0)))

    # ---- Encoder ----
    x = jnp.transpose(seq_batch, (1, 0, 2)).astype(jnp.float32)   # (T, B, E)
    h1 = lstm_seq(x, params["w_ih_1"], params["w_hh_1"], params["b_1"], H)
    # pyramidal reduction: concat adjacent timesteps -> (T/2, B, 2H)
    T2 = T_in // 2
    h1p = h1[:2 * T2].reshape(T2, 2, B, H)
    h1p = jnp.transpose(h1p, (0, 2, 1, 3)).reshape(T2, B, 2 * H)
    # second LSTM with fused key/value projection -> (T/2, B, 2A)
    kv = lstm_kv_seq(h1p, params["w_ih_2"], params["w_hh_2"], params["b_2"],
                     params["wkv"], params["bkv"], H, 2 * A)

    final_seq_lens = jnp.full((B,), T2, jnp.int32)
    # pad encoder time to a lane multiple (dense attention stores / MXU-shaped
    # score matmul) and build the additive length mask
    Tp = _round_up(T2, LANE)
    kv_btd = jnp.transpose(kv, (1, 0, 2))                          # (B, T2, 2A)
    kv_btd = jnp.pad(kv_btd, ((0, 0), (0, Tp - T2), (0, 0)))
    keys = kv_btd[:, :, :A]
    values = kv_btd[:, :, A:]
    pos = jnp.arange(Tp, dtype=jnp.int32)[None, :]
    mask = jnp.where(pos < final_seq_lens[:, None], 0.0, NEG_INF).astype(jnp.float32)

    # ---- Decoder (teacher forcing) ----
    T_dec = labels.shape[1]
    sos = jnp.full((B, 1), sos_token, labels_p.dtype)
    dec_in_tokens = jnp.concatenate([sos, labels_p[:, :-1]], axis=1)   # (B, T_dec)
    emb = jnp.take(params["embed"], dec_in_tokens, axis=0)             # (B, T_dec, E)
    emb = jnp.transpose(emb, (1, 0, 2))                                # (T_dec, B, E)

    logits_tbd, attn_tbd = attention_decoder(emb, keys, values, mask, params)

    y_hat = jnp.transpose(logits_tbd, (1, 0, 2))[:B0]            # (B0, T_dec, V)
    y_hat_labels = jnp.argmax(y_hat, axis=-1)                    # (B0, T_dec)
    labels_padded = labels                                        # already fixed length
    labels_lens = jnp.full((B0,), T_dec, jnp.int32)
    attentions = jnp.transpose(attn_tbd, (1, 0, 2))[:B0, :, :T2]  # (B0, T_dec, T_enc)
    del padding_value
    return y_hat, y_hat_labels, labels_padded, labels_lens, attentions


# ---------------------------------------------------------------------------
if __name__ == "__main__":
    # Lane-/sublane-aligned small sizes (128-wide hidden dims, batch padded to 8
    # inside the wrapper).
    EMBED_SIZE = 128         # encoder input feature dim
    HIDDEN_SIZE = 128        # encoder LSTM hidden (each gate slab = 128 lanes)
    ATTN_SIZE = 128          # mlp_output_size (key/value/query dim)
    DEC_VOCAB = 128
    DEC_EMBED = 128
    DEC_HIDDEN = 128
    DEC_MLP_HIDDEN = 128
    B, T_IN, T_DEC = 2, 8, 6

    root = jax.random.PRNGKey(0)
    k_par, k_x, k_lab = jax.random.split(root, 3)
    params = make_params(k_par, EMBED_SIZE, HIDDEN_SIZE, ATTN_SIZE,
                         DEC_VOCAB, DEC_EMBED, DEC_HIDDEN, DEC_MLP_HIDDEN)

    seq_batch = jax.random.normal(k_x, (B, T_IN, EMBED_SIZE), jnp.float32)
    labels = jax.random.randint(k_lab, (B, T_DEC), 1, DEC_VOCAB, jnp.int32)

    outs = sequence2sequence_forward(params, seq_batch, labels,
                                     HIDDEN_SIZE, ATTN_SIZE)
    outs = jax.block_until_ready(outs)
    y_hat, y_hat_labels, labels_padded, labels_lens, attentions = outs
    assert y_hat.shape == (B, T_DEC, DEC_VOCAB)
    assert y_hat_labels.shape == (B, T_DEC)
    assert attentions.shape == (B, T_DEC, T_IN // 2)
    assert bool(jnp.all(jnp.isfinite(y_hat)))
    assert bool(jnp.all(jnp.isfinite(attentions)))
    print("KERNEL_OK")
</pallas_src>

<mosaic_0001>
module attributes {stable_mosaic.version = 11 : i64} {
  func.func @lstm_seq_kernel(%arg0: i32, %arg1: i32, %arg2: memref<8x8x128xf32, #tpu.memory_space<vmem>>, %arg3: memref<128x512xf32, #tpu.memory_space<vmem>>, %arg4: memref<128x512xf32, #tpu.memory_space<vmem>>, %arg5: memref<1x512xf32, #tpu.memory_space<vmem>>, %arg6: memref<8x8x128xf32, #tpu.memory_space<vmem>>, %arg7: memref<8x128xf32, #tpu.memory_space<vmem>>, %arg8: memref<8x128xf32, #tpu.memory_space<vmem>>) attributes {dimension_semantics = [#tpu.dimension_semantics<parallel>, #tpu.dimension_semantics<arbitrary>], iteration_bounds = array<i64: 1, 1>, scalar_prefetch = 0 : i64, scratch_operands = 2 : i64, tpu.core_type = #tpu.core_type<tc>, window_params = [{transform_indices = @transform_0, window_bounds = array<i64: 8, 8, 128>}, {pipeline_mode = #tpu.pipeline_mode<synchronous>, transform_indices = @transform_1, window_bounds = array<i64: 128, 512>}, {pipeline_mode = #tpu.pipeline_mode<synchronous>, transform_indices = @transform_2, window_bounds = array<i64: 128, 512>}, {pipeline_mode = #tpu.pipeline_mode<synchronous>, transform_indices = @transform_3, window_bounds = array<i64: 1, 512>}, {transform_indices = @transform_4, window_bounds = array<i64: 8, 8, 128>}]} {
    %c0_i32 = arith.constant 0 : i32
    %0 = arith.cmpi eq, %arg1, %c0_i32 : i32
    %1 = arith.extui %0 : i1 to i32
    %c0_i32_0 = arith.constant 0 : i32
    %2 = arith.cmpi ne, %1, %c0_i32_0 : i32
    scf.if %2 {
      %cst_114 = arith.constant 0.000000e+00 : f32
      %320 = vector.broadcast %cst_114 : f32 to vector<8x128xf32>
      %c0_115 = arith.constant 0 : index
      %c0_116 = arith.constant 0 : index
      %321 = vector.load %arg7[%c0_115, %c0_116] : memref<8x128xf32, #tpu.memory_space<vmem>>, vector<8x128xf32>
      tpu.vector_store %arg7[%c0_115, %c0_116], %320 {strides = array<i32>} : memref<8x128xf32, #tpu.memory_space<vmem>>, vector<8x128xf32>,
      %cst_117 = arith.constant 0.000000e+00 : f32
      %322 = vector.broadcast %cst_117 : f32 to vector<8x128xf32>
      %c0_118 = arith.constant 0 : index
      %c0_119 = arith.constant 0 : index
      %323 = vector.load %arg8[%c0_118, %c0_119] : memref<8x128xf32, #tpu.memory_space<vmem>>, vector<8x128xf32>
      tpu.vector_store %arg8[%c0_118, %c0_119], %322 {strides = array<i32>} : memref<8x128xf32, #tpu.memory_space<vmem>>, vector<8x128xf32>,
    } else {
    }
    %c0 = arith.constant 0 : index
    %c0_1 = arith.constant 0 : index
    %3 = vector.load %arg5[%c0, %c0_1] : memref<1x512xf32, #tpu.memory_space<vmem>>, vector<1x512xf32>
    %c0_2 = arith.constant 0 : index
    %c0_3 = arith.constant 0 : index
    %4 = vector.load %arg7[%c0_2, %c0_3] : memref<8x128xf32, #tpu.memory_space<vmem>>, vector<8x128xf32>
    %c0_4 = arith.constant 0 : index
    %c0_5 = arith.constant 0 : index
    %5 = vector.load %arg8[%c0_4, %c0_5] : memref<8x128xf32, #tpu.memory_space<vmem>>, vector<8x128xf32>
    %c0_i32_6 = arith.constant 0 : i32
    %6 = arith.index_cast %c0_i32_6 : i32 to index
    %c0_7 = arith.constant 0 : index
    %c0_8 = arith.constant 0 : index
    %7 = vector.load %arg2[%6, %c0_7, %c0_8] : memref<8x8x128xf32, #tpu.memory_space<vmem>>, vector<1x8x128xf32>
    %8 = vector.shape_cast %7 : vector<1x8x128xf32> to vector<8x128xf32>
    %c0_9 = arith.constant 0 : index
    %c0_10 = arith.constant 0 : index
    %9 = vector.load %arg3[%c0_9, %c0_10] : memref<128x512xf32, #tpu.memory_space<vmem>>, vector<128x512xf32>
    %cst = arith.constant dense<0.000000e+00> : vector<8x512xf32>
    %10 = tpu.matmul %8, %9, %cst {dimension_numbers = #tpu.dot_dimension_numbers<[1], [0], [0], [1], [0, 0, 1, 1], [], []>} : vector<8x128xf32>, vector<128x512xf32>, vector<8x512xf32> -> vector<8x512xf32>
    %c0_11 = arith.constant 0 : index
    %c0_12 = arith.constant 0 : index
    %11 = vector.load %arg4[%c0_11, %c0_12] : memref<128x512xf32, #tpu.memory_space<vmem>>, vector<128x512xf32>
    %cst_13 = arith.constant dense<0.000000e+00> : vector<8x512xf32>
    %12 = tpu.matmul %4, %11, %cst_13 {dimension_numbers = #tpu.dot_dimension_numbers<[1], [0], [0], [1], [0, 0, 1, 1], [], []>} : vector<8x128xf32>, vector<128x512xf32>, vector<8x512xf32> -> vector<8x512xf32>
    %13 = arith.addf %10, %12 : vector<8x512xf32>
    %14 = vector.broadcast %3 : vector<1x512xf32> to vector<8x512xf32>
    %15 = arith.addf %13, %14 : vector<8x512xf32>
    %16 = vector.extract_strided_slice %15 {offsets = [0, 0], sizes = [8, 128], strides = [1, 1]} : vector<8x512xf32> to vector<8x128xf32>
    %17 = arith.negf %16 : vector<8x128xf32>
    %18 = math.exp %17 : vector<8x128xf32>
    %cst_14 = arith.constant 1.000000e+00 : f32
    %19 = vector.broadcast %cst_14 : f32 to vector<8x128xf32>
    %20 = arith.addf %19, %18 : vector<8x128xf32>
    %21 = arith.divf %19, %20 : vector<8x128xf32>
    %22 = vector.extract_strided_slice %15 {offsets = [0, 128], sizes = [8, 128], strides = [1, 1]} : vector<8x512xf32> to vector<8x128xf32>
    %23 = arith.negf %22 : vector<8x128xf32>
    %24 = math.exp %23 : vector<8x128xf32>
    %cst_15 = arith.constant 1.000000e+00 : f32
    %25 = vector.broadcast %cst_15 : f32 to vector<8x128xf32>
    %26 = arith.addf %25, %24 : vector<8x128xf32>
    %27 = arith.divf %25, %26 : vector<8x128xf32>
    %28 = vector.extract_strided_slice %15 {offsets = [0, 256], sizes = [8, 128], strides = [1, 1]} : vector<8x512xf32> to vector<8x128xf32>
    %29 = math.tanh %28 : vector<8x128xf32>
    %30 = vector.extract_strided_slice %15 {offsets = [0, 384], sizes = [8, 128], strides = [1, 1]} : vector<8x512xf32> to vector<8x128xf32>
    %31 = arith.negf %30 : vector<8x128xf32>
    %32 = math.exp %31 : vector<8x128xf32>
    %cst_16 = arith.constant 1.000000e+00 : f32
    %33 = vector.broadcast %cst_16 : f32 to vector<8x128xf32>
    %34 = arith.addf %33, %32 : vector<8x128xf32>
    %35 = arith.divf %33, %34 : vector<8x128xf32>
    %36 = arith.mulf %27, %5 : vector<8x128xf32>
    %37 = arith.mulf %21, %29 : vector<8x128xf32>
    %38 = arith.addf %36, %37 : vector<8x128xf32>
    %39 = math.tanh %38 : vector<8x128xf32>
    %40 = arith.mulf %35, %39 : vector<8x128xf32>
    %41 = arith.index_cast %c0_i32_6 : i32 to index
    %c0_17 = arith.constant 0 : index
    %c0_18 = arith.constant 0 : index
    %42 = vector.load %arg6[%41, %c0_17, %c0_18] : memref<8x8x128xf32, #tpu.memory_space<vmem>>, vector<1x8x128xf32>
    %43 = vector.shape_cast %42 : vector<1x8x128xf32> to vector<8x128xf32>
    %44 = vector.shape_cast %40 : vector<8x128xf32> to vector<1x8x128xf32>
    tpu.vector_store %arg6[%41, %c0_17, %c0_18], %44 {strides = array<i32>} : memref<8x8x128xf32, #tpu.memory_space<vmem>>, vector<1x8x128xf32>,
    %c1_i32 = arith.constant 1 : i32
    %45 = arith.index_cast %c1_i32 : i32 to index
    %c0_19 = arith.constant 0 : index
    %c0_20 = arith.constant 0 : index
    %46 = vector.load %arg2[%45, %c0_19, %c0_20] : memref<8x8x128xf32, #tpu.memory_space<vmem>>, vector<1x8x128xf32>
    %47 = vector.shape_cast %46 : vector<1x8x128xf32> to vector<8x128xf32>
    %c0_21 = arith.constant 0 : index
    %c0_22 = arith.constant 0 : index
    %48 = vector.load %arg3[%c0_21, %c0_22] : memref<128x512xf32, #tpu.memory_space<vmem>>, vector<128x512xf32>
    %cst_23 = arith.constant dense<0.000000e+00> : vector<8x512xf32>
    %49 = tpu.matmul %47, %48, %cst_23 {dimension_numbers = #tpu.dot_dimension_numbers<[1], [0], [0], [1], [0, 0, 1, 1], [], []>} : vector<8x128xf32>, vector<128x512xf32>, vector<8x512xf32> -> vector<8x512xf32>
    %c0_24 = arith.constant 0 : index
    %c0_25 = arith.constant 0 : index
    %50 = vector.load %arg4[%c0_24, %c0_25] : memref<128x512xf32, #tpu.memory_space<vmem>>, vector<128x512xf32>
    %cst_26 = arith.constant dense<0.000000e+00> : vector<8x512xf32>
    %51 = tpu.matmul %40, %50, %cst_26 {dimension_numbers = #tpu.dot_dimension_numbers<[1], [0], [0], [1], [0, 0, 1, 1], [], []>} : vector<8x128xf32>, vector<128x512xf32>, vector<8x512xf32> -> vector<8x512xf32>
    %52 = arith.addf %49, %51 : vector<8x512xf32>
    %53 = vector.broadcast %3 : vector<1x512xf32> to vector<8x512xf32>
    %54 = arith.addf %52, %53 : vector<8x512xf32>
    %55 = vector.extract_strided_slice %54 {offsets = [0, 0], sizes = [8, 128], strides = [1, 1]} : vector<8x512xf32> to vector<8x128xf32>
    %56 = arith.negf %55 : vector<8x128xf32>
    %57 = math.exp %56 : vector<8x128xf32>
    %cst_27 = arith.constant 1.000000e+00 : f32
    %58 = vector.broadcast %cst_27 : f32 to vector<8x128xf32>
    %59 = arith.addf %58, %57 : vector<8x128xf32>
    %60 = arith.divf %58, %59 : vector<8x128xf32>
    %61 = vector.extract_strided_slice %54 {offsets = [0, 128], sizes = [8, 128], strides = [1, 1]} : vector<8x512xf32> to vector<8x128xf32>
    %62 = arith.negf %61 : vector<8x128xf32>
    %63 = math.exp %62 : vector<8x128xf32>
    %cst_28 = arith.constant 1.000000e+00 : f32
    %64 = vector.broadcast %cst_28 : f32 to vector<8x128xf32>
    %65 = arith.addf %64, %63 : vector<8x128xf32>
    %66 = arith.divf %64, %65 : vector<8x128xf32>
    %67 = vector.extract_strided_slice %54 {offsets = [0, 256], sizes = [8, 128], strides = [1, 1]} : vector<8x512xf32> to vector<8x128xf32>
    %68 = math.tanh %67 : vector<8x128xf32>
    %69 = vector.extract_strided_slice %54 {offsets = [0, 384], sizes = [8, 128], strides = [1, 1]} : vector<8x512xf32> to vector<8x128xf32>
    %70 = arith.negf %69 : vector<8x128xf32>
    %71 = math.exp %70 : vector<8x128xf32>
    %cst_29 = arith.constant 1.000000e+00 : f32
    %72 = vector.broadcast %cst_29 : f32 to vector<8x128xf32>
    %73 = arith.addf %72, %71 : vector<8x128xf32>
    %74 = arith.divf %72, %73 : vector<8x128xf32>
    %75 = arith.mulf %66, %38 : vector<8x128xf32>
    %76 = arith.mulf %60, %68 : vector<8x128xf32>
    %77 = arith.addf %75, %76 : vector<8x128xf32>
    %78 = math.tanh %77 : vector<8x128xf32>
    %79 = arith.mulf %74, %78 : vector<8x128xf32>
    %80 = arith.index_cast %c1_i32 : i32 to index
    %c0_30 = arith.constant 0 : index
    %c0_31 = arith.constant 0 : index
    %81 = vector.load %arg6[%80, %c0_30, %c0_31] : memref<8x8x128xf32, #tpu.memory_space<vmem>>, vector<1x8x128xf32>
    %82 = vector.shape_cast %81 : vector<1x8x128xf32> to vector<8x128xf32>
    %83 = vector.shape_cast %79 : vector<8x128xf32> to vector<1x8x128xf32>
    tpu.vector_store %arg6[%80, %c0_30, %c0_31], %83 {strides = array<i32>} : memref<8x8x128xf32, #tpu.memory_space<vmem>>, vector<1x8x128xf32>,
    %c2_i32 = arith.constant 2 : i32
    %84 = arith.index_cast %c2_i32 : i32 to index
    %c0_32 = arith.constant 0 : index
    %c0_33 = arith.constant 0 : index
    %85 = vector.load %arg2[%84, %c0_32, %c0_33] : memref<8x8x128xf32, #tpu.memory_space<vmem>>, vector<1x8x128xf32>
    %86 = vector.shape_cast %85 : vector<1x8x128xf32> to vector<8x128xf32>
    %c0_34 = arith.constant 0 : index
    %c0_35 = arith.constant 0 : index
    %87 = vector.load %arg3[%c0_34, %c0_35] : memref<128x512xf32, #tpu.memory_space<vmem>>, vector<128x512xf32>
    %cst_36 = arith.constant dense<0.000000e+00> : vector<8x512xf32>
    %88 = tpu.matmul %86, %87, %cst_36 {dimension_numbers = #tpu.dot_dimension_numbers<[1], [0], [0], [1], [0, 0, 1, 1], [], []>} : vector<8x128xf32>, vector<128x512xf32>, vector<8x512xf32> -> vector<8x512xf32>
    %c0_37 = arith.constant 0 : index
    %c0_38 = arith.constant 0 : index
    %89 = vector.load %arg4[%c0_37, %c0_38] : memref<128x512xf32, #tpu.memory_space<vmem>>, vector<128x512xf32>
    %cst_39 = arith.constant dense<0.000000e+00> : vector<8x512xf32>
    %90 = tpu.matmul %79, %89, %cst_39 {dimension_numbers = #tpu.dot_dimension_numbers<[1], [0], [0], [1], [0, 0, 1, 1], [], []>} : vector<8x128xf32>, vector<128x512xf32>, vector<8x512xf32> -> vector<8x512xf32>
    %91 = arith.addf %88, %90 : vector<8x512xf32>
    %92 = vector.broadcast %3 : vector<1x512xf32> to vector<8x512xf32>
    %93 = arith.addf %91, %92 : vector<8x512xf32>
    %94 = vector.extract_strided_slice %93 {offsets = [0, 0], sizes = [8, 128], strides = [1, 1]} : vector<8x512xf32> to vector<8x128xf32>
    %95 = arith.negf %94 : vector<8x128xf32>
    %96 = math.exp %95 : vector<8x128xf32>
    %cst_40 = arith.constant 1.000000e+00 : f32
    %97 = vector.broadcast %cst_40 : f32 to vector<8x128xf32>
    %98 = arith.addf %97, %96 : vector<8x128xf32>
    %99 = arith.divf %97, %98 : vector<8x128xf32>
    %100 = vector.extract_strided_slice %93 {offsets = [0, 128], sizes = [8, 128], strides = [1, 1]} : vector<8x512xf32> to vector<8x128xf32>
    %101 = arith.negf %100 : vector<8x128xf32>
    %102 = math.exp %101 : vector<8x128xf32>
    %cst_41 = arith.constant 1.000000e+00 : f32
    %103 = vector.broadcast %cst_41 : f32 to vector<8x128xf32>
    %104 = arith.addf %103, %102 : vector<8x128xf32>
    %105 = arith.divf %103, %104 : vector<8x128xf32>
    %106 = vector.extract_strided_slice %93 {offsets = [0, 256], sizes = [8, 128], strides = [1, 1]} : vector<8x512xf32> to vector<8x128xf32>
    %107 = math.tanh %106 : vector<8x128xf32>
    %108 = vector.extract_strided_slice %93 {offsets = [0, 384], sizes = [8, 128], strides = [1, 1]} : vector<8x512xf32> to vector<8x128xf32>
    %109 = arith.negf %108 : vector<8x128xf32>
    %110 = math.exp %109 : vector<8x128xf32>
    %cst_42 = arith.constant 1.000000e+00 : f32
    %111 = vector.broadcast %cst_42 : f32 to vector<8x128xf32>
    %112 = arith.addf %111, %110 : vector<8x128xf32>
    %113 = arith.divf %111, %112 : vector<8x128xf32>
    %114 = arith.mulf %105, %77 : vector<8x128xf32>
    %115 = arith.mulf %99, %107 : vector<8x128xf32>
    %116 = arith.addf %114, %115 : vector<8x128xf32>
    %117 = math.tanh %116 : vector<8x128xf32>
    %118 = arith.mulf %113, %117 : vector<8x128xf32>
    %119 = arith.index_cast %c2_i32 : i32 to index
    %c0_43 = arith.constant 0 : index
    %c0_44 = arith.constant 0 : index
    %120 = vector.load %arg6[%119, %c0_43, %c0_44] : memref<8x8x128xf32, #tpu.memory_space<vmem>>, vector<1x8x128xf32>
    %121 = vector.shape_cast %120 : vector<1x8x128xf32> to vector<8x128xf32>
    %122 = vector.shape_cast %118 : vector<8x128xf32> to vector<1x8x128xf32>
    tpu.vector_store %arg6[%119, %c0_43, %c0_44], %122 {strides = array<i32>} : memref<8x8x128xf32, #tpu.memory_space<vmem>>, vector<1x8x128xf32>,
    %c3_i32 = arith.constant 3 : i32
    %123 = arith.index_cast %c3_i32 : i32 to index
    %c0_45 = arith.constant 0 : index
    %c0_46 = arith.constant 0 : index
    %124 = vector.load %arg2[%123, %c0_45, %c0_46] : memref<8x8x128xf32, #tpu.memory_space<vmem>>, vector<1x8x128xf32>
    %125 = vector.shape_cast %124 : vector<1x8x128xf32> to vector<8x128xf32>
    %c0_47 = arith.constant 0 : index
    %c0_48 = arith.constant 0 : index
    %126 = vector.load %arg3[%c0_47, %c0_48] : memref<128x512xf32, #tpu.memory_space<vmem>>, vector<128x512xf32>
    %cst_49 = arith.constant dense<0.000000e+00> : vector<8x512xf32>
    %127 = tpu.matmul %125, %126, %cst_49 {dimension_numbers = #tpu.dot_dimension_numbers<[1], [0], [0], [1], [0, 0, 1, 1], [], []>} : vector<8x128xf32>, vector<128x512xf32>, vector<8x512xf32> -> vector<8x512xf32>
    %c0_50 = arith.constant 0 : index
    %c0_51 = arith.constant 0 : index
    %128 = vector.load %arg4[%c0_50, %c0_51] : memref<128x512xf32, #tpu.memory_space<vmem>>, vector<128x512xf32>
    %cst_52 = arith.constant dense<0.000000e+00> : vector<8x512xf32>
    %129 = tpu.matmul %118, %128, %cst_52 {dimension_numbers = #tpu.dot_dimension_numbers<[1], [0], [0], [1], [0, 0, 1, 1], [], []>} : vector<8x128xf32>, vector<128x512xf32>, vector<8x512xf32> -> vector<8x512xf32>
    %130 = arith.addf %127, %129 : vector<8x512xf32>
    %131 = vector.broadcast %3 : vector<1x512xf32> to vector<8x512xf32>
    %132 = arith.addf %130, %131 : vector<8x512xf32>
    %133 = vector.extract_strided_slice %132 {offsets = [0, 0], sizes = [8, 128], strides = [1, 1]} : vector<8x512xf32> to vector<8x128xf32>
    %134 = arith.negf %133 : vector<8x128xf32>
    %135 = math.exp %134 : vector<8x128xf32>
    %cst_53 = arith.constant 1.000000e+00 : f32
    %136 = vector.broadcast %cst_53 : f32 to vector<8x128xf32>
    %137 = arith.addf %136, %135 : vector<8x128xf32>
    %138 = arith.divf %136, %137 : vector<8x128xf32>
    %139 = vector.extract_strided_slice %132 {offsets = [0, 128], sizes = [8, 128], strides = [1, 1]} : vector<8x512xf32> to vector<8x128xf32>
    %140 = arith.negf %139 : vector<8x128xf32>
    %141 = math.exp %140 : vector<8x128xf32>
    %cst_54 = arith.constant 1.000000e+00 : f32
    %142 = vector.broadcast %cst_54 : f32 to vector<8x128xf32>
    %143 = arith.addf %142, %141 : vector<8x128xf32>
    %144 = arith.divf %142, %143 : vector<8x128xf32>
    %145 = vector.extract_strided_slice %132 {offsets = [0, 256], sizes = [8, 128], strides = [1, 1]} : vector<8x512xf32> to vector<8x128xf32>
    %146 = math.tanh %145 : vector<8x128xf32>
    %147 = vector.extract_strided_slice %132 {offsets = [0, 384], sizes = [8, 128], strides = [1, 1]} : vector<8x512xf32> to vector<8x128xf32>
    %148 = arith.negf %147 : vector<8x128xf32>
    %149 = math.exp %148 : vector<8x128xf32>
    %cst_55 = arith.constant 1.000000e+00 : f32
    %150 = vector.broadcast %cst_55 : f32 to vector<8x128xf32>
    %151 = arith.addf %150, %149 : vector<8x128xf32>
    %152 = arith.divf %150, %151 : vector<8x128xf32>
    %153 = arith.mulf %144, %116 : vector<8x128xf32>
    %154 = arith.mulf %138, %146 : vector<8x128xf32>
    %155 = arith.addf %153, %154 : vector<8x128xf32>
    %156 = math.tanh %155 : vector<8x128xf32>
    %157 = arith.mulf %152, %156 : vector<8x128xf32>
    %158 = arith.index_cast %c3_i32 : i32 to index
    %c0_56 = arith.constant 0 : index
    %c0_57 = arith.constant 0 : index
    %159 = vector.load %arg6[%158, %c0_56, %c0_57] : memref<8x8x128xf32, #tpu.memory_space<vmem>>, vector<1x8x128xf32>
    %160 = vector.shape_cast %159 : vector<1x8x128xf32> to vector<8x128xf32>
    %161 = vector.shape_cast %157 : vector<8x128xf32> to vector<1x8x128xf32>
    tpu.vector_store %arg6[%158, %c0_56, %c0_57], %161 {strides = array<i32>} : memref<8x8x128xf32, #tpu.memory_space<vmem>>, vector<1x8x128xf32>,
    %c4_i32 = arith.constant 4 : i32
    %162 = arith.index_cast %c4_i32 : i32 to index
    %c0_58 = arith.constant 0 : index
    %c0_59 = arith.constant 0 : index
    %163 = vector.load %arg2[%162, %c0_58, %c0_59] : memref<8x8x128xf32, #tpu.memory_space<vmem>>, vector<1x8x128xf32>
    %164 = vector.shape_cast %163 : vector<1x8x128xf32> to vector<8x128xf32>
    %c0_60 = arith.constant 0 : index
    %c0_61 = arith.constant 0 : index
    %165 = vector.load %arg3[%c0_60, %c0_61] : memref<128x512xf32, #tpu.memory_space<vmem>>, vector<128x512xf32>
    %cst_62 = arith.constant dense<0.000000e+00> : vector<8x512xf32>
    %166 = tpu.matmul %164, %165, %cst_62 {dimension_numbers = #tpu.dot_dimension_numbers<[1], [0], [0], [1], [0, 0, 1, 1], [], []>} : vector<8x128xf32>, vector<128x512xf32>, vector<8x512xf32> -> vector<8x512xf32>
    %c0_63 = arith.constant 0 : index
    %c0_64 = arith.constant 0 : index
    %167 = vector.load %arg4[%c0_63, %c0_64] : memref<128x512xf32, #tpu.memory_space<vmem>>, vector<128x512xf32>
    %cst_65 = arith.constant dense<0.000000e+00> : vector<8x512xf32>
    %168 = tpu.matmul %157, %167, %cst_65 {dimension_numbers = #tpu.dot_dimension_numbers<[1], [0], [0], [1], [0, 0, 1, 1], [], []>} : vector<8x128xf32>, vector<128x512xf32>, vector<8x512xf32> -> vector<8x512xf32>
    %169 = arith.addf %166, %168 : vector<8x512xf32>
    %170 = vector.broadcast %3 : vector<1x512xf32> to vector<8x512xf32>
    %171 = arith.addf %169, %170 : vector<8x512xf32>
    %172 = vector.extract_strided_slice %171 {offsets = [0, 0], sizes = [8, 128], strides = [1, 1]} : vector<8x512xf32> to vector<8x128xf32>
    %173 = arith.negf %172 : vector<8x128xf32>
    %174 = math.exp %173 : vector<8x128xf32>
    %cst_66 = arith.constant 1.000000e+00 : f32
    %175 = vector.broadcast %cst_66 : f32 to vector<8x128xf32>
    %176 = arith.addf %175, %174 : vector<8x128xf32>
    %177 = arith.divf %175, %176 : vector<8x128xf32>
    %178 = vector.extract_strided_slice %171 {offsets = [0, 128], sizes = [8, 128], strides = [1, 1]} : vector<8x512xf32> to vector<8x128xf32>
    %179 = arith.negf %178 : vector<8x128xf32>
    %180 = math.exp %179 : vector<8x128xf32>
    %cst_67 = arith.constant 1.000000e+00 : f32
    %181 = vector.broadcast %cst_67 : f32 to vector<8x128xf32>
    %182 = arith.addf %181, %180 : vector<8x128xf32>
    %183 = arith.divf %181, %182 : vector<8x128xf32>
    %184 = vector.extract_strided_slice %171 {offsets = [0, 256], sizes = [8, 128], strides = [1, 1]} : vector<8x512xf32> to vector<8x128xf32>
    %185 = math.tanh %184 : vector<8x128xf32>
    %186 = vector.extract_strided_slice %171 {offsets = [0, 384], sizes = [8, 128], strides = [1, 1]} : vector<8x512xf32> to vector<8x128xf32>
    %187 = arith.negf %186 : vector<8x128xf32>
    %188 = math.exp %187 : vector<8x128xf32>
    %cst_68 = arith.constant 1.000000e+00 : f32
    %189 = vector.broadcast %cst_68 : f32 to vector<8x128xf32>
    %190 = arith.addf %189, %188 : vector<8x128xf32>
    %191 = arith.divf %189, %190 : vector<8x128xf32>
    %192 = arith.mulf %183, %155 : vector<8x128xf32>
    %193 = arith.mulf %177, %185 : vector<8x128xf32>
    %194 = arith.addf %192, %193 : vector<8x128xf32>
    %195 = math.tanh %194 : vector<8x128xf32>
    %196 = arith.mulf %191, %195 : vector<8x128xf32>
    %197 = arith.index_cast %c4_i32 : i32 to index
    %c0_69 = arith.constant 0 : index
    %c0_70 = arith.constant 0 : index
    %198 = vector.load %arg6[%197, %c0_69, %c0_70] : memref<8x8x128xf32, #tpu.memory_space<vmem>>, vector<1x8x128xf32>
    %199 = vector.shape_cast %198 : vector<1x8x128xf32> to vector<8x128xf32>
    %200 = vector.shape_cast %196 : vector<8x128xf32> to vector<1x8x128xf32>
    tpu.vector_store %arg6[%197, %c0_69, %c0_70], %200 {strides = array<i32>} : memref<8x8x128xf32, #tpu.memory_space<vmem>>, vector<1x8x128xf32>,
    %c5_i32 = arith.constant 5 : i32
    %201 = arith.index_cast %c5_i32 : i32 to index
    %c0_71 = arith.constant 0 : index
    %c0_72 = arith.constant 0 : index
    %202 = vector.load %arg2[%201, %c0_71, %c0_72] : memref<8x8x128xf32, #tpu.memory_space<vmem>>, vector<1x8x128xf32>
    %203 = vector.shape_cast %202 : vector<1x8x128xf32> to vector<8x128xf32>
    %c0_73 = arith.constant 0 : index
    %c0_74 = arith.constant 0 : index
    %204 = vector.load %arg3[%c0_73, %c0_74] : memref<128x512xf32, #tpu.memory_space<vmem>>, vector<128x512xf32>
    %cst_75 = arith.constant dense<0.000000e+00> : vector<8x512xf32>
    %205 = tpu.matmul %203, %204, %cst_75 {dimension_numbers = #tpu.dot_dimension_numbers<[1], [0], [0], [1], [0, 0, 1, 1], [], []>} : vector<8x128xf32>, vector<128x512xf32>, vector<8x512xf32> -> vector<8x512xf32>
    %c0_76 = arith.constant 0 : index
    %c0_77 = arith.constant 0 : index
    %206 = vector.load %arg4[%c0_76, %c0_77] : memref<128x512xf32, #tpu.memory_space<vmem>>, vector<128x512xf32>
    %cst_78 = arith.constant dense<0.000000e+00> : vector<8x512xf32>
    %207 = tpu.matmul %196, %206, %cst_78 {dimension_numbers = #tpu.dot_dimension_numbers<[1], [0], [0], [1], [0, 0, 1, 1], [], []>} : vector<8x128xf32>, vector<128x512xf32>, vector<8x512xf32> -> vector<8x512xf32>
    %208 = arith.addf %205, %207 : vector<8x512xf32>
    %209 = vector.broadcast %3 : vector<1x512xf32> to vector<8x512xf32>
    %210 = arith.addf %208, %209 : vector<8x512xf32>
    %211 = vector.extract_strided_slice %210 {offsets = [0, 0], sizes = [8, 128], strides = [1, 1]} : vector<8x512xf32> to vector<8x128xf32>
    %212 = arith.negf %211 : vector<8x128xf32>
    %213 = math.exp %212 : vector<8x128xf32>
    %cst_79 = arith.constant 1.000000e+00 : f32
    %214 = vector.broadcast %cst_79 : f32 to vector<8x128xf32>
    %215 = arith.addf %214, %213 : vector<8x128xf32>
    %216 = arith.divf %214, %215 : vector<8x128xf32>
    %217 = vector.extract_strided_slice %210 {offsets = [0, 128], sizes = [8, 128], strides = [1, 1]} : vector<8x512xf32> to vector<8x128xf32>
    %218 = arith.negf %217 : vector<8x128xf32>
    %219 = math.exp %218 : vector<8x128xf32>
    %cst_80 = arith.constant 1.000000e+00 : f32
    %220 = vector.broadcast %cst_80 : f32 to vector<8x128xf32>
    %221 = arith.addf %220, %219 : vector<8x128xf32>
    %222 = arith.divf %220, %221 : vector<8x128xf32>
    %223 = vector.extract_strided_slice %210 {offsets = [0, 256], sizes = [8, 128], strides = [1, 1]} : vector<8x512xf32> to vector<8x128xf32>
    %224 = math.tanh %223 : vector<8x128xf32>
    %225 = vector.extract_strided_slice %210 {offsets = [0, 384], sizes = [8, 128], strides = [1, 1]} : vector<8x512xf32> to vector<8x128xf32>
    %226 = arith.negf %225 : vector<8x128xf32>
    %227 = math.exp %226 : vector<8x128xf32>
    %cst_81 = arith.constant 1.000000e+00 : f32
    %228 = vector.broadcast %cst_81 : f32 to vector<8x128xf32>
    %229 = arith.addf %228, %227 : vector<8x128xf32>
    %230 = arith.divf %228, %229 : vector<8x128xf32>
    %231 = arith.mulf %222, %194 : vector<8x128xf32>
    %232 = arith.mulf %216, %224 : vector<8x128xf32>
    %233 = arith.addf %231, %232 : vector<8x128xf32>
    %234 = math.tanh %233 : vector<8x128xf32>
    %235 = arith.mulf %230, %234 : vector<8x128xf32>
    %236 = arith.index_cast %c5_i32 : i32 to index
    %c0_82 = arith.constant 0 : index
    %c0_83 = arith.constant 0 : index
    %237 = vector.load %arg6[%236, %c0_82, %c0_83] : memref<8x8x128xf32, #tpu.memory_space<vmem>>, vector<1x8x128xf32>
    %238 = vector.shape_cast %237 : vector<1x8x128xf32> to vector<8x128xf32>
    %239 = vector.shape_cast %235 : vector<8x128xf32> to vector<1x8x128xf32>
    tpu.vector_store %arg6[%236, %c0_82, %c0_83], %239 {strides = array<i32>} : memref<8x8x128xf32, #tpu.memory_space<vmem>>, vector<1x8x128xf32>,
    %c6_i32 = arith.constant 6 : i32
    %240 = arith.index_cast %c6_i32 : i32 to index
    %c0_84 = arith.constant 0 : index
    %c0_85 = arith.constant 0 : index
    %241 = vector.load %arg2[%240, %c0_84, %c0_85] : memref<8x8x128xf32, #tpu.memory_space<vmem>>, vector<1x8x128xf32>
    %242 = vector.shape_cast %241 : vector<1x8x128xf32> to vector<8x128xf32>
    %c0_86 = arith.constant 0 : index
    %c0_87 = arith.constant 0 : index
    %243 = vector.load %arg3[%c0_86, %c0_87] : memref<128x512xf32, #tpu.memory_space<vmem>>, vector<128x512xf32>
    %cst_88 = arith.constant dense<0.000000e+00> : vector<8x512xf32>
    %244 = tpu.matmul %242, %243, %cst_88 {dimension_numbers = #tpu.dot_dimension_numbers<[1], [0], [0], [1], [0, 0, 1, 1], [], []>} : vector<8x128xf32>, vector<128x512xf32>, vector<8x512xf32> -> vector<8x512xf32>
    %c0_89 = arith.constant 0 : index
    %c0_90 = arith.constant 0 : index
    %245 = vector.load %arg4[%c0_89, %c0_90] : memref<128x512xf32, #tpu.memory_space<vmem>>, vector<128x512xf32>
    %cst_91 = arith.constant dense<0.000000e+00> : vector<8x512xf32>
    %246 = tpu.matmul %235, %245, %cst_91 {dimension_numbers = #tpu.dot_dimension_numbers<[1], [0], [0], [1], [0, 0, 1, 1], [], []>} : vector<8x128xf32>, vector<128x512xf32>, vector<8x512xf32> -> vector<8x512xf32>
    %247 = arith.addf %244, %246 : vector<8x512xf32>
    %248 = vector.broadcast %3 : vector<1x512xf32> to vector<8x512xf32>
    %249 = arith.addf %247, %248 : vector<8x512xf32>
    %250 = vector.extract_strided_slice %249 {offsets = [0, 0], sizes = [8, 128], strides = [1, 1]} : vector<8x512xf32> to vector<8x128xf32>
    %251 = arith.negf %250 : vector<8x128xf32>
    %252 = math.exp %251 : vector<8x128xf32>
    %cst_92 = arith.constant 1.000000e+00 : f32
    %253 = vector.broadcast %cst_92 : f32 to vector<8x128xf32>
    %254 = arith.addf %253, %252 : vector<8x128xf32>
    %255 = arith.divf %253, %254 : vector<8x128xf32>
    %256 = vector.extract_strided_slice %249 {offsets = [0, 128], sizes = [8, 128], strides = [1, 1]} : vector<8x512xf32> to vector<8x128xf32>
    %257 = arith.negf %256 : vector<8x128xf32>
    %258 = math.exp %257 : vector<8x128xf32>
    %cst_93 = arith.constant 1.000000e+00 : f32
    %259 = vector.broadcast %cst_93 : f32 to vector<8x128xf32>
    %260 = arith.addf %259, %258 : vector<8x128xf32>
    %261 = arith.divf %259, %260 : vector<8x128xf32>
    %262 = vector.extract_strided_slice %249 {offsets = [0, 256], sizes = [8, 128], strides = [1, 1]} : vector<8x512xf32> to vector<8x128xf32>
    %263 = math.tanh %262 : vector<8x128xf32>
    %264 = vector.extract_strided_slice %249 {offsets = [0, 384], sizes = [8, 128], strides = [1, 1]} : vector<8x512xf32> to vector<8x128xf32>
    %265 = arith.negf %264 : vector<8x128xf32>
    %266 = math.exp %265 : vector<8x128xf32>
    %cst_94 = arith.constant 1.000000e+00 : f32
    %267 = vector.broadcast %cst_94 : f32 to vector<8x128xf32>
    %268 = arith.addf %267, %266 : vector<8x128xf32>
    %269 = arith.divf %267, %268 : vector<8x128xf32>
    %270 = arith.mulf %261, %233 : vector<8x128xf32>
    %271 = arith.mulf %255, %263 : vector<8x128xf32>
    %272 = arith.addf %270, %271 : vector<8x128xf32>
    %273 = math.tanh %272 : vector<8x128xf32>
    %274 = arith.mulf %269, %273 : vector<8x128xf32>
    %275 = arith.index_cast %c6_i32 : i32 to index
    %c0_95 = arith.constant 0 : index
    %c0_96 = arith.constant 0 : index
    %276 = vector.load %arg6[%275, %c0_95, %c0_96] : memref<8x8x128xf32, #tpu.memory_space<vmem>>, vector<1x8x128xf32>
    %277 = vector.shape_cast %276 : vector<1x8x128xf32> to vector<8x128xf32>
    %278 = vector.shape_cast %274 : vector<8x128xf32> to vector<1x8x128xf32>
    tpu.vector_store %arg6[%275, %c0_95, %c0_96], %278 {strides = array<i32>} : memref<8x8x128xf32, #tpu.memory_space<vmem>>, vector<1x8x128xf32>,
    %c7_i32 = arith.constant 7 : i32
    %279 = arith.index_cast %c7_i32 : i32 to index
    %c0_97 = arith.constant 0 : index
    %c0_98 = arith.constant 0 : index
    %280 = vector.load %arg2[%279, %c0_97, %c0_98] : memref<8x8x128xf32, #tpu.memory_space<vmem>>, vector<1x8x128xf32>
    %281 = vector.shape_cast %280 : vector<1x8x128xf32> to vector<8x128xf32>
    %c0_99 = arith.constant 0 : index
    %c0_100 = arith.constant 0 : index
    %282 = vector.load %arg3[%c0_99, %c0_100] : memref<128x512xf32, #tpu.memory_space<vmem>>, vector<128x512xf32>
    %cst_101 = arith.constant dense<0.000000e+00> : vector<8x512xf32>
    %283 = tpu.matmul %281, %282, %cst_101 {dimension_numbers = #tpu.dot_dimension_numbers<[1], [0], [0], [1], [0, 0, 1, 1], [], []>} : vector<8x128xf32>, vector<128x512xf32>, vector<8x512xf32> -> vector<8x512xf32>
    %c0_102 = arith.constant 0 : index
    %c0_103 = arith.constant 0 : index
    %284 = vector.load %arg4[%c0_102, %c0_103] : memref<128x512xf32, #tpu.memory_space<vmem>>, vector<128x512xf32>
    %cst_104 = arith.constant dense<0.000000e+00> : vector<8x512xf32>
    %285 = tpu.matmul %274, %284, %cst_104 {dimension_numbers = #tpu.dot_dimension_numbers<[1], [0], [0], [1], [0, 0, 1, 1], [], []>} : vector<8x128xf32>, vector<128x512xf32>, vector<8x512xf32> -> vector<8x512xf32>
    %286 = arith.addf %283, %285 : vector<8x512xf32>
    %287 = vector.broadcast %3 : vector<1x512xf32> to vector<8x512xf32>
    %288 = arith.addf %286, %287 : vector<8x512xf32>
    %289 = vector.extract_strided_slice %288 {offsets = [0, 0], sizes = [8, 128], strides = [1, 1]} : vector<8x512xf32> to vector<8x128xf32>
    %290 = arith.negf %289 : vector<8x128xf32>
    %291 = math.exp %290 : vector<8x128xf32>
    %cst_105 = arith.constant 1.000000e+00 : f32
    %292 = vector.broadcast %cst_105 : f32 to vector<8x128xf32>
    %293 = arith.addf %292, %291 : vector<8x128xf32>
    %294 = arith.divf %292, %293 : vector<8x128xf32>
    %295 = vector.extract_strided_slice %288 {offsets = [0, 128], sizes = [8, 128], strides = [1, 1]} : vector<8x512xf32> to vector<8x128xf32>
    %296 = arith.negf %295 : vector<8x128xf32>
    %297 = math.exp %296 : vector<8x128xf32>
    %cst_106 = arith.constant 1.000000e+00 : f32
    %298 = vector.broadcast %cst_106 : f32 to vector<8x128xf32>
    %299 = arith.addf %298, %297 : vector<8x128xf32>
    %300 = arith.divf %298, %299 : vector<8x128xf32>
    %301 = vector.extract_strided_slice %288 {offsets = [0, 256], sizes = [8, 128], strides = [1, 1]} : vector<8x512xf32> to vector<8x128xf32>
    %302 = math.tanh %301 : vector<8x128xf32>
    %303 = vector.extract_strided_slice %288 {offsets = [0, 384], sizes = [8, 128], strides = [1, 1]} : vector<8x512xf32> to vector<8x128xf32>
    %304 = arith.negf %303 : vector<8x128xf32>
    %305 = math.exp %304 : vector<8x128xf32>
    %cst_107 = arith.constant 1.000000e+00 : f32
    %306 = vector.broadcast %cst_107 : f32 to vector<8x128xf32>
    %307 = arith.addf %306, %305 : vector<8x128xf32>
    %308 = arith.divf %306, %307 : vector<8x128xf32>
    %309 = arith.mulf %300, %272 : vector<8x128xf32>
    %310 = arith.mulf %294, %302 : vector<8x128xf32>
    %311 = arith.addf %309, %310 : vector<8x128xf32>
    %312 = math.tanh %311 : vector<8x128xf32>
    %313 = arith.mulf %308, %312 : vector<8x128xf32>
    %314 = arith.index_cast %c7_i32 : i32 to index
    %c0_108 = arith.constant 0 : index
    %c0_109 = arith.constant 0 : index
    %315 = vector.load %arg6[%314, %c0_108, %c0_109] : memref<8x8x128xf32, #tpu.memory_space<vmem>>, vector<1x8x128xf32>
    %316 = vector.shape_cast %315 : vector<1x8x128xf32> to vector<8x128xf32>
    %317 = vector.shape_cast %313 : vector<8x128xf32> to vector<1x8x128xf32>
    tpu.vector_store %arg6[%314, %c0_108, %c0_109], %317 {strides = array<i32>} : memref<8x8x128xf32, #tpu.memory_space<vmem>>, vector<1x8x128xf32>,
    %c8_i32 = arith.constant 8 : i32
    %c0_110 = arith.constant 0 : index
    %c0_111 = arith.constant 0 : index
    %318 = vector.load %arg7[%c0_110, %c0_111] : memref<8x128xf32, #tpu.memory_space<vmem>>, vector<8x128xf32>
    tpu.vector_store %arg7[%c0_110, %c0_111], %313 {strides = array<i32>} : memref<8x128xf32, #tpu.memory_space<vmem>>, vector<8x128xf32>,
    %c0_112 = arith.constant 0 : index
    %c0_113 = arith.constant 0 : index
    %319 = vector.load %arg8[%c0_112, %c0_113] : memref<8x128xf32, #tpu.memory_space<vmem>>, vector<8x128xf32>
    tpu.vector_store %arg8[%c0_112, %c0_113], %311 {strides = array<i32>} : memref<8x128xf32, #tpu.memory_space<vmem>>, vector<8x128xf32>,
    return
  }
  func.func @transform_0(%arg0: i32, %arg1: i32) -> (i32, i32, i32) {
    %c0_i32 = arith.constant 0 : i32
    %c0_i32_0 = arith.constant 0 : i32
    return %arg1, %arg0, %c0_i32 : i32, i32, i32
  }
  func.func @transform_1(%arg0: i32, %arg1: i32) -> (i32, i32) {
    %c0_i32 = arith.constant 0 : i32
    %c0_i32_0 = arith.constant 0 : i32
    %c0_i32_1 = arith.constant 0 : i32
    return %c0_i32, %c0_i32_0 : i32, i32
  }
  func.func @transform_2(%arg0: i32, %arg1: i32) -> (i32, i32) {
    %c0_i32 = arith.constant 0 : i32
    %c0_i32_0 = arith.constant 0 : i32
    %c0_i32_1 = arith.constant 0 : i32
    return %c0_i32, %c0_i32_0 : i32, i32
  }
  func.func @transform_3(%arg0: i32, %arg1: i32) -> (i32, i32) {
    %c0_i32 = arith.constant 0 : i32
    %c0_i32_0 = arith.constant 0 : i32
    %c0_i32_1 = arith.constant 0 : i32
    return %c0_i32, %c0_i32_0 : i32, i32
  }
  func.func @transform_4(%arg0: i32, %arg1: i32) -> (i32, i32, i32) {
    %c0_i32 = arith.constant 0 : i32
    %c0_i32_0 = arith.constant 0 : i32
    return %arg1, %arg0, %c0_i32 : i32, i32, i32
  }
}

</mosaic_0001>

<llo_original>
// kernel: tpu_custom_call.1
$region0: #{tpu_custom_call.1}
  #allocation0 [shape = 'u32[]', space=smem, size = 0x4, offset = 0x4, fixed_abs, tag = 'smem constant byte address 0x4 - core index']
  #allocation1 [shape = 'u32[144,128]{1,0:T(1,128)}', space=vmem, size = 0x12000, scoped, tag = 'internal scratch']
  #allocation2 [shape = 'f32[8,128]{1,0:T(8,128)}', space=vmem, size = 0x1000, scoped, tag = 'scratch operand']
  #allocation3 [shape = 'f32[8,128]{1,0:T(8,128)}', space=vmem, size = 0x1000, scoped, tag = 'scratch operand']
  %s0 = inlined_call_operand.hbm [shape: f32[8,8,128], index: 0, kind: input, shape index: {}]
  %s1 = inlined_call_operand.hbm [shape: f32[128,512], index: 1, kind: input, shape index: {}]
  %s2 = inlined_call_operand.hbm [shape: f32[128,512], index: 2, kind: input, shape index: {}]
  %s3 = inlined_call_operand.vmem [shape: f32[1,512], index: 3, kind: input, shape index: {}]
  %s4 = inlined_call_operand.hbm [shape: f32[8,8,128], index: 4, kind: output, shape index: {}]
  %s5 = sld [smem:[#allocation0]]
  $region42: #{tpu_custom_call.1} parent=0
    _
  %s7 = ssub.s32 1, %s5
  %s8 = scalar_select 0, %s7, %s5
  $region1: #{tpu_custom_call.1} parent=0
    #allocation4 [shape = 'u8[32768]{0}', space=vmem, size = 0x8000, scoped, tag = 'input window, operand 0, single buffered']
    #allocation5 [shape = 's32[1]{0}', space=sflag, size = 0x4, scoped, tag = 'scoped memory for tpu_custom_call.1']
    #allocation6 [shape = 's32[1]{0}', space=sflag, size = 0x4, scoped, tag = 'scoped memory for tpu_custom_call.1']
    #allocation7 [shape = 'u8[262144]{0}', space=vmem, size = 0x40000, scoped, tag = 'input window, operand 1, single buffered']
    #allocation8 [shape = 's32[1]{0}', space=sflag, size = 0x4, scoped, tag = 'scoped memory for tpu_custom_call.1']
    #allocation9 [shape = 'u8[262144]{0}', space=vmem, size = 0x40000, scoped, tag = 'input window, operand 2, single buffered']
    #allocation10 [shape = 'u8[32768]{0}', space=vmem, size = 0x8000, scoped, tag = 'output window, operand 0, single buffered']
    %9 = vsyncpa [#allocation5], 0
    %10 = vsyncpa [#allocation8], 0
    %11 = vsyncpa [#allocation6], 0
    // Predicated region
    $region2: #{tpu_custom_call.1} parent=1 // pred_check
      _
    $region3: #{tpu_custom_call.1} parent=1 // pred_check_branch
      %13 = sbr.rel (0) target = $region5
    $region4: #{tpu_custom_call.1} parent=1 // pred_region
      %s15 = ssub.s32 1024, 1024
      %16 = vsyncadd [#allocation5], %s15
      %s17 = sshll.u32 [#allocation4], 4
      %s18 = int_to_ptr.vmem [resolvable:$true] %s17
      %23 = dma.hbm_to_vmem [thread:$0]  %s0, 1024, %s18, [#allocation5], 128, 128, 8
    $region5: #{tpu_custom_call.1} parent=1 // pred_fallthru
      _
    // Predicated region
    $region6: #{tpu_custom_call.1} parent=1 // pred_check
      _
    $region7: #{tpu_custom_call.1} parent=1 // pred_check_branch
      %25 = sbr.rel (0) target = $region9
    $region8: #{tpu_custom_call.1} parent=1 // pred_region
      %s27 = ssub.s32 8192, 8192
      %28 = vsyncadd [#allocation8], %s27
      %s29 = sshll.u32 [#allocation7], 4
      %s30 = int_to_ptr.vmem [resolvable:$true] %s29
      %35 = dma.hbm_to_vmem [thread:$0]  %s1, 8192, %s30, [#allocation8], 512, 512, 32
    $region9: #{tpu_custom_call.1} parent=1 // pred_fallthru
      _
    // Predicated region
    $region10: #{tpu_custom_call.1} parent=1 // pred_check
      _
    $region11: #{tpu_custom_call.1} parent=1 // pred_check_branch
      %37 = sbr.rel (0) target = $region13
    $region12: #{tpu_custom_call.1} parent=1 // pred_region
      %s39 = ssub.s32 8192, 8192
      %40 = vsyncadd [#allocation8], %s39
      %s41 = sshll.u32 [#allocation9], 4
      %s42 = int_to_ptr.vmem [resolvable:$true] %s41
      %47 = dma.hbm_to_vmem [thread:$0]  %s2, 8192, %s42, [#allocation8], 512, 512, 32
    $region13: #{tpu_custom_call.1} parent=1 // pred_fallthru
      _
    // Predicated region
    $region14: #{tpu_custom_call.1} parent=1 // pred_check
      _
    $region15: #{tpu_custom_call.1} parent=1 // pred_check_branch
      %49 = sbr.rel (0) target = $region17
    $region16: #{tpu_custom_call.1} parent=1 // pred_region
      _
    $region17: #{tpu_custom_call.1} parent=1 // pred_fallthru
      _
    // Predicated region
    $region18: #{tpu_custom_call.1} parent=1 // pred_check
      _
    $region19: #{tpu_custom_call.1} parent=1 // pred_check_branch
      %51 = sbr.rel (0) target = $region21
    $region20: #{tpu_custom_call.1} parent=1 // pred_region
      %52 = dma.done [#allocation5], 1024
    $region21: #{tpu_custom_call.1} parent=1 // pred_fallthru
      _
    // Predicated region
    $region22: #{tpu_custom_call.1} parent=1 // pred_check
      _
    $region23: #{tpu_custom_call.1} parent=1 // pred_check_branch
      %54 = sbr.rel (0) target = $region25
    $region24: #{tpu_custom_call.1} parent=1 // pred_region
      %55 = dma.done [#allocation8], 8192
    $region25: #{tpu_custom_call.1} parent=1 // pred_fallthru
      _
    // Predicated region
    $region26: #{tpu_custom_call.1} parent=1 // pred_check
      _
    $region27: #{tpu_custom_call.1} parent=1 // pred_check_branch
      %57 = sbr.rel (0) target = $region29
    $region28: #{tpu_custom_call.1} parent=1 // pred_region
      %58 = dma.done [#allocation8], 8192
    $region29: #{tpu_custom_call.1} parent=1 // pred_fallthru
      _
    %p59 = scmp.eq.s32.totalorder 0, 0
    // Predicated region
    $region30: #{tpu_custom_call.1} parent=1 // pred_check
      %p60 = pneg %p59
    $region31: #{tpu_custom_call.1} parent=1 // pred_check_branch
      %62 = sbr.rel (%p60) target = $region33
    $region32: #{tpu_custom_call.1} parent=1 // pred_region
      %63 = vst [vmem:[#allocation2] sm:$0xff] 0.0
      %64 = vst [vmem:[#allocation3] sm:$0xff] 0.0
    $region33: #{tpu_custom_call.1} parent=1 // pred_fallthru
      _
    %v65 = vld [vmem:[%s3] sm:$0xf]
    %v66 = vld [vmem:[#allocation2] sm:$0xff]
    %v67 = vld [vmem:[#allocation3] sm:$0xff]
    %v68 = vld [vmem:[#allocation4] sm:$0xff]
    %v69 = vld [vmem:[#allocation7] sm:$0xff]
    %v70 = vld [vmem:[#allocation7 + $0x8] sm:$0xff]
    %v71 = vld [vmem:[#allocation7 + $0x10] sm:$0xff]
    %v72 = vld [vmem:[#allocation7 + $0x18] sm:$0xff]
    %v73 = vld [vmem:[#allocation7 + $0x20] sm:$0xff]
    %v74 = vld [vmem:[#allocation7 + $0x28] sm:$0xff]
    %v75 = vld [vmem:[#allocation7 + $0x30] sm:$0xff]
    %v76 = vld [vmem:[#allocation7 + $0x38] sm:$0xff]
    %v77 = vld [vmem:[#allocation7 + $0x40] sm:$0xff]
    %v78 = vld [vmem:[#allocation7 + $0x48] sm:$0xff]
    %v79 = vld [vmem:[#allocation7 + $0x50] sm:$0xff]
    %v80 = vld [vmem:[#allocation7 + $0x58] sm:$0xff]
    %v81 = vld [vmem:[#allocation7 + $0x60] sm:$0xff]
    %v82 = vld [vmem:[#allocation7 + $0x68] sm:$0xff]
    %v83 = vld [vmem:[#allocation7 + $0x70] sm:$0xff]
    %v84 = vld [vmem:[#allocation7 + $0x78] sm:$0xff]
    %v85 = vld [vmem:[#allocation7 + $0x80] sm:$0xff]
    %v86 = vld [vmem:[#allocation7 + $0x88] sm:$0xff]
    %v87 = vld [vmem:[#allocation7 + $0x90] sm:$0xff]
    %v88 = vld [vmem:[#allocation7 + $0x98] sm:$0xff]
    %v89 = vld [vmem:[#allocation7 + $0xa0] sm:$0xff]
    %v90 = vld [vmem:[#allocation7 + $0xa8] sm:$0xff]
    %v91 = vld [vmem:[#allocation7 + $0xb0] sm:$0xff]
    %v92 = vld [vmem:[#allocation7 + $0xb8] sm:$0xff]
    %v93 = vld [vmem:[#allocation7 + $0xc0] sm:$0xff]
    %v94 = vld [vmem:[#allocation7 + $0xc8] sm:$0xff]
    %v95 = vld [vmem:[#allocation7 + $0xd0] sm:$0xff]
    %v96 = vld [vmem:[#allocation7 + $0xd8] sm:$0xff]
    %v97 = vld [vmem:[#allocation7 + $0xe0] sm:$0xff]
    %v98 = vld [vmem:[#allocation7 + $0xe8] sm:$0xff]
    %v99 = vld [vmem:[#allocation7 + $0xf0] sm:$0xff]
    %v100 = vld [vmem:[#allocation7 + $0xf8] sm:$0xff]
    %v101 = vld [vmem:[#allocation7 + $0x100] sm:$0xff]
    %v102 = vld [vmem:[#allocation7 + $0x108] sm:$0xff]
    %v103 = vld [vmem:[#allocation7 + $0x110] sm:$0xff]
    %v104 = vld [vmem:[#allocation7 + $0x118] sm:$0xff]
    %v105 = vld [vmem:[#allocation7 + $0x120] sm:$0xff]
    %v106 = vld [vmem:[#allocation7 + $0x128] sm:$0xff]
    %v107 = vld [vmem:[#allocation7 + $0x130] sm:$0xff]
    %v108 = vld [vmem:[#allocation7 + $0x138] sm:$0xff]
    %v109 = vld [vmem:[#allocation7 + $0x140] sm:$0xff]
    %v110 = vld [vmem:[#allocation7 + $0x148] sm:$0xff]
    %v111 = vld [vmem:[#allocation7 + $0x150] sm:$0xff]
    %v112 = vld [vmem:[#allocation7 + $0x158] sm:$0xff]
    %v113 = vld [vmem:[#allocation7 + $0x160] sm:$0xff]
    %v114 = vld [vmem:[#allocation7 + $0x168] sm:$0xff]
    %v115 = vld [vmem:[#allocation7 + $0x170] sm:$0xff]
    %v116 = vld [vmem:[#allocation7 + $0x178] sm:$0xff]
    %v117 = vld [vmem:[#allocation7 + $0x180] sm:$0xff]
    %v118 = vld [vmem:[#allocation7 + $0x188] sm:$0xff]
    %v119 = vld [vmem:[#allocation7 + $0x190] sm:$0xff]
    %v120 = vld [vmem:[#allocation7 + $0x198] sm:$0xff]
    %v121 = vld [vmem:[#allocation7 + $0x1a0] sm:$0xff]
    %v122 = vld [vmem:[#allocation7 + $0x1a8] sm:$0xff]
    %v123 = vld [vmem:[#allocation7 + $0x1b0] sm:$0xff]
    %v124 = vld [vmem:[#allocation7 + $0x1b8] sm:$0xff]
    %v125 = vld [vmem:[#allocation7 + $0x1c0] sm:$0xff]
    %v126 = vld [vmem:[#allocation7 + $0x1c8] sm:$0xff]
    %v127 = vld [vmem:[#allocation7 + $0x1d0] sm:$0xff]
    %v128 = vld [vmem:[#allocation7 + $0x1d8] sm:$0xff]
    %v129 = vld [vmem:[#allocation7 + $0x1e0] sm:$0xff]
    %v130 = vld [vmem:[#allocation7 + $0x1e8] sm:$0xff]
    %v131 = vld [vmem:[#allocation7 + $0x1f0] sm:$0xff]
    %v132 = vld [vmem:[#allocation7 + $0x1f8] sm:$0xff]
    %v133 = vld [vmem:[#allocation9] sm:$0xff]
    %v134 = vld [vmem:[#allocation9 + $0x8] sm:$0xff]
    %v135 = vld [vmem:[#allocation9 + $0x10] sm:$0xff]
    %v136 = vld [vmem:[#allocation9 + $0x18] sm:$0xff]
    %v137 = vld [vmem:[#allocation9 + $0x20] sm:$0xff]
    %v138 = vld [vmem:[#allocation9 + $0x28] sm:$0xff]
    %v139 = vld [vmem:[#allocation9 + $0x30] sm:$0xff]
    %v140 = vld [vmem:[#allocation9 + $0x38] sm:$0xff]
    %v141 = vld [vmem:[#allocation9 + $0x40] sm:$0xff]
    %v142 = vld [vmem:[#allocation9 + $0x48] sm:$0xff]
    %v143 = vld [vmem:[#allocation9 + $0x50] sm:$0xff]
    %v144 = vld [vmem:[#allocation9 + $0x58] sm:$0xff]
    %v145 = vld [vmem:[#allocation9 + $0x60] sm:$0xff]
    %v146 = vld [vmem:[#allocation9 + $0x68] sm:$0xff]
    %v147 = vld [vmem:[#allocation9 + $0x70] sm:$0xff]
    %v148 = vld [vmem:[#allocation9 + $0x78] sm:$0xff]
    %v149 = vld [vmem:[#allocation9 + $0x80] sm:$0xff]
    %v150 = vld [vmem:[#allocation9 + $0x88] sm:$0xff]
    %v151 = vld [vmem:[#allocation9 + $0x90] sm:$0xff]
    %v152 = vld [vmem:[#allocation9 + $0x98] sm:$0xff]
    %v153 = vld [vmem:[#allocation9 + $0xa0] sm:$0xff]
    %v154 = vld [vmem:[#allocation9 + $0xa8] sm:$0xff]
    %v155 = vld [vmem:[#allocation9 + $0xb0] sm:$0xff]
    %v156 = vld [vmem:[#allocation9 + $0xb8] sm:$0xff]
    %v157 = vld [vmem:[#allocation9 + $0xc0] sm:$0xff]
    %v158 = vld [vmem:[#allocation9 + $0xc8] sm:$0xff]
    %v159 = vld [vmem:[#allocation9 + $0xd0] sm:$0xff]
    %v160 = vld [vmem:[#allocation9 + $0xd8] sm:$0xff]
    %v161 = vld [vmem:[#allocation9 + $0xe0] sm:$0xff]
    %v162 = vld [vmem:[#allocation9 + $0xe8] sm:$0xff]
    %v163 = vld [vmem:[#allocation9 + $0xf0] sm:$0xff]
    %v164 = vld [vmem:[#allocation9 + $0xf8] sm:$0xff]
    %v165 = vld [vmem:[#allocation9 + $0x100] sm:$0xff]
    %v166 = vld [vmem:[#allocation9 + $0x108] sm:$0xff]
    %v167 = vld [vmem:[#allocation9 + $0x110] sm:$0xff]
    %v168 = vld [vmem:[#allocation9 + $0x118] sm:$0xff]
    %v169 = vld [vmem:[#allocation9 + $0x120] sm:$0xff]
    %v170 = vld [vmem:[#allocation9 + $0x128] sm:$0xff]
    %v171 = vld [vmem:[#allocation9 + $0x130] sm:$0xff]
    %v172 = vld [vmem:[#allocation9 + $0x138] sm:$0xff]
    %v173 = vld [vmem:[#allocation9 + $0x140] sm:$0xff]
    %v174 = vld [vmem:[#allocation9 + $0x148] sm:$0xff]
    %v175 = vld [vmem:[#allocation9 + $0x150] sm:$0xff]
    %v176 = vld [vmem:[#allocation9 + $0x158] sm:$0xff]
    %v177 = vld [vmem:[#allocation9 + $0x160] sm:$0xff]
    %v178 = vld [vmem:[#allocation9 + $0x168] sm:$0xff]
    %v179 = vld [vmem:[#allocation9 + $0x170] sm:$0xff]
    %v180 = vld [vmem:[#allocation9 + $0x178] sm:$0xff]
    %v181 = vld [vmem:[#allocation9 + $0x180] sm:$0xff]
    %v182 = vld [vmem:[#allocation9 + $0x188] sm:$0xff]
    %v183 = vld [vmem:[#allocation9 + $0x190] sm:$0xff]
    %v184 = vld [vmem:[#allocation9 + $0x198] sm:$0xff]
    %v185 = vld [vmem:[#allocation9 + $0x1a0] sm:$0xff]
    %v186 = vld [vmem:[#allocation9 + $0x1a8] sm:$0xff]
    %v187 = vld [vmem:[#allocation9 + $0x1b0] sm:$0xff]
    %v188 = vld [vmem:[#allocation9 + $0x1b8] sm:$0xff]
    %v189 = vld [vmem:[#allocation9 + $0x1c0] sm:$0xff]
    %v190 = vld [vmem:[#allocation9 + $0x1c8] sm:$0xff]
    %v191 = vld [vmem:[#allocation9 + $0x1d0] sm:$0xff]
    %v192 = vld [vmem:[#allocation9 + $0x1d8] sm:$0xff]
    %v193 = vld [vmem:[#allocation9 + $0x1e0] sm:$0xff]
    %v194 = vld [vmem:[#allocation9 + $0x1e8] sm:$0xff]
    %v195 = vld [vmem:[#allocation9 + $0x1f0] sm:$0xff]
    %v196 = vld [vmem:[#allocation9 + $0x1f8] sm:$0xff]
    %197 = vmatprep.subr.mxu0 %v194
    %198 = vmatpush1.msra.mxu0 %v193
    %199 = vmatprep.subr.mxu0 %v190
    %200 = vmatpush1.msra.mxu0 %v189
    %201 = vmatprep.subr.mxu0 %v186
    %202 = vmatpush1.msra.mxu0 %v185
    %203 = vmatprep.subr.mxu0 %v182
    %204 = vmatpush1.msra.mxu0 %v181
    %205 = vmatprep.subr.mxu0 %v178
    %206 = vmatpush1.msra.mxu0 %v177
    %207 = vmatprep.subr.mxu0 %v174
    %208 = vmatpush1.msra.mxu0 %v173
    %209 = vmatprep.subr.mxu0 %v170
    %210 = vmatpush1.msra.mxu0 %v169
    %211 = vmatprep.subr.mxu0 %v166
    %212 = vmatpush1.msra.mxu0 %v165
    %213 = vmatprep.subr.mxu0 %v162
    %214 = vmatpush1.msra.mxu0 %v161
    %215 = vmatprep.subr.mxu0 %v158
    %216 = vmatpush1.msra.mxu0 %v157
    %217 = vmatprep.subr.mxu0 %v154
    %218 = vmatpush1.msra.mxu0 %v153
    %219 = vmatprep.subr.mxu0 %v150
    %220 = vmatpush1.msra.mxu0 %v149
    %221 = vmatprep.subr.mxu0 %v146
    %222 = vmatpush1.msra.mxu0 %v145
    %223 = vmatprep.subr.mxu0 %v142
    %224 = vmatpush1.msra.mxu0 %v141
    %225 = vmatprep.subr.mxu0 %v138
    %226 = vmatpush1.msra.mxu0 %v137
    %227 = vmatprep.subr.mxu0 %v134
    %228 = vmatpush1.msra.mxu0 %v133
    %229 = vmatprep.subr.mxu0 0.0
    %230 = vmatpush2.msra.mxu0 0.0
    %231 = vmatprep.subr.mxu0 0.0
    %232 = vmatpush2.msra.mxu0 0.0
    %233 = vmatprep.subr.mxu0 0.0
    %234 = vmatpush2.msra.mxu0 0.0
    %235 = vmatprep.subr.mxu0 0.0
    %236 = vmatpush2.msra.mxu0 0.0
    %237 = vmatprep.subr.mxu0 0.0
    %238 = vmatpush2.msra.mxu0 0.0
    %239 = vmatprep.subr.mxu0 0.0
    %240 = vmatpush2.msra.mxu0 0.0
    %241 = vmatprep.subr.mxu0 0.0
    %242 = vmatpush2.msra.mxu0 0.0
    %243 = vmatprep.subr.mxu0 0.0
    %244 = vmatpush2.msra.mxu0 0.0
    %245 = vmatprep.subr.mxu0 0.0
    %246 = vmatpush2.msra.mxu0 0.0
    %247 = vmatprep.subr.mxu0 0.0
    %248 = vmatpush2.msra.mxu0 0.0
    %249 = vmatprep.subr.mxu0 0.0
    %250 = vmatpush2.msra.mxu0 0.0
    %251 = vmatprep.subr.mxu0 0.0
    %252 = vmatpush2.msra.mxu0 0.0
    %253 = vmatprep.subr.mxu0 0.0
    %254 = vmatpush2.msra.mxu0 0.0
    %255 = vmatprep.subr.mxu0 0.0
    %256 = vmatpush2.msra.mxu0 0.0
    %257 = vmatprep.subr.mxu0 0.0
    %258 = vmatpush2.msra.mxu0 0.0
    %259 = vmatprep.subr.mxu0 0.0
    %260 = vmatpush2.msra.mxu0 0.0
    %261 = vmatprep.mubr.f32.mxu0 0.0
    %262 = vmatmul.mubr.f32.gmra.mxu0 %v66
    %v263 = vpop.f32.mrf.mxu0
    %v264 = vadd.f32 0.0, %v263
    %v265 = vpop.f32.mrf.mxu0
    %v266 = vadd.f32 0.0, %v265
    %267 = vdwg.mxu0
    %268 = vmatprep.subr.mxu0 %v196
    %269 = vmatpush1.msra.mxu0 %v195
    %270 = vmatprep.subr.mxu0 %v192
    %271 = vmatpush1.msra.mxu0 %v191
    %272 = vmatprep.subr.mxu0 %v188
    %273 = vmatpush1.msra.mxu0 %v187
    %274 = vmatprep.subr.mxu0 %v184
    %275 = vmatpush1.msra.mxu0 %v183
    %276 = vmatprep.subr.mxu0 %v180
    %277 = vmatpush1.msra.mxu0 %v179
    %278 = vmatprep.subr.mxu0 %v176
    %279 = vmatpush1.msra.mxu0 %v175
    %280 = vmatprep.subr.mxu0 %v172
    %281 = vmatpush1.msra.mxu0 %v171
    %282 = vmatprep.subr.mxu0 %v168
    %283 = vmatpush1.msra.mxu0 %v167
    %284 = vmatprep.subr.mxu0 %v164
    %285 = vmatpush1.msra.mxu0 %v163
    %286 = vmatprep.subr.mxu0 %v160
    %287 = vmatpush1.msra.mxu0 %v159
    %288 = vmatprep.subr.mxu0 %v156
    %289 = vmatpush1.msra.mxu0 %v155
    %290 = vmatprep.subr.mxu0 %v152
    %291 = vmatpush1.msra.mxu0 %v151
    %292 = vmatprep.subr.mxu0 %v148
    %293 = vmatpush1.msra.mxu0 %v147
    %294 = vmatprep.subr.mxu0 %v144
    %295 = vmatpush1.msra.mxu0 %v143
    %296 = vmatprep.subr.mxu0 %v140
    %297 = vmatpush1.msra.mxu0 %v139
    %298 = vmatprep.subr.mxu0 %v136
    %299 = vmatpush1.msra.mxu0 %v135
    %300 = vmatprep.subr.mxu0 0.0
    %301 = vmatpush2.msra.mxu0 0.0
    %302 = vmatprep.subr.mxu0 0.0
    %303 = vmatpush2.msra.mxu0 0.0
    %304 = vmatprep.subr.mxu0 0.0
    %305 = vmatpush2.msra.mxu0 0.0
    %306 = vmatprep.subr.mxu0 0.0
    %307 = vmatpush2.msra.mxu0 0.0
    %308 = vmatprep.subr.mxu0 0.0
    %309 = vmatpush2.msra.mxu0 0.0
    %310 = vmatprep.subr.mxu0 0.0
    %311 = vmatpush2.msra.mxu0 0.0
    %312 = vmatprep.subr.mxu0 0.0
    %313 = vmatpush2.msra.mxu0 0.0
    %314 = vmatprep.subr.mxu0 0.0
    %315 = vmatpush2.msra.mxu0 0.0
    %316 = vmatprep.subr.mxu0 0.0
    %317 = vmatpush2.msra.mxu0 0.0
    %318 = vmatprep.subr.mxu0 0.0
    %319 = vmatpush2.msra.mxu0 0.0
    %320 = vmatprep.subr.mxu0 0.0
    %321 = vmatpush2.msra.mxu0 0.0
    %322 = vmatprep.subr.mxu0 0.0
    %323 = vmatpush2.msra.mxu0 0.0
    %324 = vmatprep.subr.mxu0 0.0
    %325 = vmatpush2.msra.mxu0 0.0
    %326 = vmatprep.subr.mxu0 0.0
    %327 = vmatpush2.msra.mxu0 0.0
    %328 = vmatprep.subr.mxu0 0.0
    %329 = vmatpush2.msra.mxu0 0.0
    %330 = vmatprep.subr.mxu0 0.0
    %331 = vmatpush2.msra.mxu0 0.0
    %332 = vmatprep.mubr.f32.mxu0 0.0
    %333 = vmatmul.mubr.f32.gmra.mxu0 %v66
    %v334 = vpop.f32.mrf.mxu0
    %v335 = vadd.f32 0.0, %v334
    %v336 = vpop.f32.mrf.mxu0
    %v337 = vadd.f32 0.0, %v336
    %338 = vdwg.mxu0
    %339 = vmatprep.subr.mxu0 %v130
    %340 = vmatpush1.msra.mxu0 %v129
    %341 = vmatprep.subr.mxu0 %v126
    %342 = vmatpush1.msra.mxu0 %v125
    %343 = vmatprep.subr.mxu0 %v122
    %344 = vmatpush1.msra.mxu0 %v121
    %345 = vmatprep.subr.mxu0 %v118
    %346 = vmatpush1.msra.mxu0 %v117
    %347 = vmatprep.subr.mxu0 %v114
    %348 = vmatpush1.msra.mxu0 %v113
    %349 = vmatprep.subr.mxu0 %v110
    %350 = vmatpush1.msra.mxu0 %v109
    %351 = vmatprep.subr.mxu0 %v106
    %352 = vmatpush1.msra.mxu0 %v105
    %353 = vmatprep.subr.mxu0 %v102
    %354 = vmatpush1.msra.mxu0 %v101
    %355 = vmatprep.subr.mxu0 %v98
    %356 = vmatpush1.msra.mxu0 %v97
    %357 = vmatprep.subr.mxu0 %v94
    %358 = vmatpush1.msra.mxu0 %v93
    %359 = vmatprep.subr.mxu0 %v90
    %360 = vmatpush1.msra.mxu0 %v89
    %361 = vmatprep.subr.mxu0 %v86
    %362 = vmatpush1.msra.mxu0 %v85
    %363 = vmatprep.subr.mxu0 %v82
    %364 = vmatpush1.msra.mxu0 %v81
    %365 = vmatprep.subr.mxu0 %v78
    %366 = vmatpush1.msra.mxu0 %v77
    %367 = vmatprep.subr.mxu0 %v74
    %368 = vmatpush1.msra.mxu0 %v73
    %369 = vmatprep.subr.mxu0 %v70
    %370 = vmatpush1.msra.mxu0 %v69
    %371 = vmatprep.subr.mxu0 0.0
    %372 = vmatpush2.msra.mxu0 0.0
    %373 = vmatprep.subr.mxu0 0.0
    %374 = vmatpush2.msra.mxu0 0.0
    %375 = vmatprep.subr.mxu0 0.0
    %376 = vmatpush2.msra.mxu0 0.0
    %377 = vmatprep.subr.mxu0 0.0
    %378 = vmatpush2.msra.mxu0 0.0
    %379 = vmatprep.subr.mxu0 0.0
    %380 = vmatpush2.msra.mxu0 0.0
    %381 = vmatprep.subr.mxu0 0.0
    %382 = vmatpush2.msra.mxu0 0.0
    %383 = vmatprep.subr.mxu0 0.0
    %384 = vmatpush2.msra.mxu0 0.0
    %385 = vmatprep.subr.mxu0 0.0
    %386 = vmatpush2.msra.mxu0 0.0
    %387 = vmatprep.subr.mxu0 0.0
    %388 = vmatpush2.msra.mxu0 0.0
    %389 = vmatprep.subr.mxu0 0.0
    %390 = vmatpush2.msra.mxu0 0.0
    %391 = vmatprep.subr.mxu0 0.0
    %392 = vmatpush2.msra.mxu0 0.0
    %393 = vmatprep.subr.mxu0 0.0
    %394 = vmatpush2.msra.mxu0 0.0
    %395 = vmatprep.subr.mxu0 0.0
    %396 = vmatpush2.msra.mxu0 0.0
    %397 = vmatprep.subr.mxu0 0.0
    %398 = vmatpush2.msra.mxu0 0.0
    %399 = vmatprep.subr.mxu0 0.0
    %400 = vmatpush2.msra.mxu0 0.0
    %401 = vmatprep.subr.mxu0 0.0
    %402 = vmatpush2.msra.mxu0 0.0
    %403 = vmatprep.mubr.f32.mxu0 0.0
    %404 = vmatmul.mubr.f32.gmra.mxu0 %v68
    %v405 = vpop.f32.mrf.mxu0
    %v406 = vadd.f32 %v264, %v405
    %v407 = vpop.f32.mrf.mxu0
    %v408 = vadd.f32 %v266, %v407
    %409 = vdwg.mxu0
    %410 = vmatprep.subr.mxu0 %v132
    %411 = vmatpush1.msra.mxu0 %v131
    %412 = vmatprep.subr.mxu0 %v128
    %413 = vmatpush1.msra.mxu0 %v127
    %414 = vmatprep.subr.mxu0 %v124
    %415 = vmatpush1.msra.mxu0 %v123
    %416 = vmatprep.subr.mxu0 %v120
    %417 = vmatpush1.msra.mxu0 %v119
    %418 = vmatprep.subr.mxu0 %v116
    %419 = vmatpush1.msra.mxu0 %v115
    %420 = vmatprep.subr.mxu0 %v112
    %421 = vmatpush1.msra.mxu0 %v111
    %422 = vmatprep.subr.mxu0 %v108
    %423 = vmatpush1.msra.mxu0 %v107
    %424 = vmatprep.subr.mxu0 %v104
    %425 = vmatpush1.msra.mxu0 %v103
    %426 = vmatprep.subr.mxu0 %v100
    %427 = vmatpush1.msra.mxu0 %v99
    %428 = vmatprep.subr.mxu0 %v96
    %429 = vmatpush1.msra.mxu0 %v95
    %430 = vmatprep.subr.mxu0 %v92
    %431 = vmatpush1.msra.mxu0 %v91
    %432 = vmatprep.subr.mxu0 %v88
    %433 = vmatpush1.msra.mxu0 %v87
    %434 = vmatprep.subr.mxu0 %v84
    %435 = vmatpush1.msra.mxu0 %v83
    %436 = vmatprep.subr.mxu0 %v80
    %437 = vmatpush1.msra.mxu0 %v79
    %438 = vmatprep.subr.mxu0 %v76
    %439 = vmatpush1.msra.mxu0 %v75
    %440 = vmatprep.subr.mxu0 %v72
    %441 = vmatpush1.msra.mxu0 %v71
    %442 = vmatprep.subr.mxu0 0.0
    %443 = vmatpush2.msra.mxu0 0.0
    %444 = vmatprep.subr.mxu0 0.0
    %445 = vmatpush2.msra.mxu0 0.0
    %446 = vmatprep.subr.mxu0 0.0
    %447 = vmatpush2.msra.mxu0 0.0
    %448 = vmatprep.subr.mxu0 0.0
    %449 = vmatpush2.msra.mxu0 0.0
    %450 = vmatprep.subr.mxu0 0.0
    %451 = vmatpush2.msra.mxu0 0.0
    %452 = vmatprep.subr.mxu0 0.0
    %453 = vmatpush2.msra.mxu0 0.0
    %454 = vmatprep.subr.mxu0 0.0
    %455 = vmatpush2.msra.mxu0 0.0
    %456 = vmatprep.subr.mxu0 0.0
    %457 = vmatpush2.msra.mxu0 0.0
    %458 = vmatprep.subr.mxu0 0.0
    %459 = vmatpush2.msra.mxu0 0.0
    %460 = vmatprep.subr.mxu0 0.0
    %461 = vmatpush2.msra.mxu0 0.0
    %462 = vmatprep.subr.mxu0 0.0
    %463 = vmatpush2.msra.mxu0 0.0
    %464 = vmatprep.subr.mxu0 0.0
    %465 = vmatpush2.msra.mxu0 0.0
    %466 = vmatprep.subr.mxu0 0.0
    %467 = vmatpush2.msra.mxu0 0.0
    %468 = vmatprep.subr.mxu0 0.0
    %469 = vmatpush2.msra.mxu0 0.0
    %470 = vmatprep.subr.mxu0 0.0
    %471 = vmatpush2.msra.mxu0 0.0
    %472 = vmatprep.subr.mxu0 0.0
    %473 = vmatpush2.msra.mxu0 0.0
    %474 = vmatprep.mubr.f32.mxu0 0.0
    %475 = vmatmul.mubr.f32.gmra.mxu0 %v68
    %v476 = vpop.f32.mrf.mxu0
    %v477 = vadd.f32 %v335, %v476
    %v478 = vpop.f32.mrf.mxu0
    %v479 = vadd.f32 %v337, %v478
    %480 = vdwg.mxu0
    %v482 = vlaneseq
    %v483 = vshrl.u32 %v482, 7
    %v484 = vsub.s32 0, %v483
    %v485 = vrot.slane %v65, %v484
    %v486 = vlaneseq
    %v487 = vshrl.u32 %v486, 7
    %v488 = vsub.s32 1, %v487
    %v489 = vrot.slane %v65, %v488
    %v490 = vlaneseq
    %v491 = vshrl.u32 %v490, 7
    %v492 = vsub.s32 2, %v491
    %v493 = vrot.slane %v65, %v492
    %v494 = vlaneseq
    %v495 = vshrl.u32 %v494, 7
    %v496 = vsub.s32 3, %v495
    %v497 = vrot.slane %v65, %v496
    %v502 = vadd.f32 %v406, %v485
    %v503 = vadd.f32 %v408, %v489
    %v504 = vadd.f32 %v477, %v493
    %v505 = vadd.f32 %v479, %v497
    %v506 = vxor.u32 %v502, 2147483648
    %v507 = vmul.f32 %v506, 1.442695
    %v508 = vpow.pop %v507
    %v509 = vadd.f32 %v508, 1.0
    %v510 = vrcp.pop %v509
    %v511 = vmul.f32 1.0, %v510
    %v512 = vxor.u32 %v503, 2147483648
    %v513 = vmul.f32 %v512, 1.442695
    %v514 = vpow.pop %v513
    %v515 = vadd.f32 %v514, 1.0
    %v516 = vrcp.pop %v515
    %v517 = vmul.f32 1.0, %v516
    %v518 = vtanh.pop %v504
    %v519 = vxor.u32 %v505, 2147483648
    %v520 = vmul.f32 %v519, 1.442695
    %v521 = vpow.pop %v520
    %v522 = vadd.f32 %v521, 1.0
    %v523 = vrcp.pop %v522
    %v524 = vmul.f32 1.0, %v523
    %v525 = vmul.f32 %v517, %v67
    %v526 = vmul.f32 %v511, %v518
    %v527 = vadd.f32 %v525, %v526
    %v528 = vtanh.pop %v527
    %v529 = vmul.f32 %v524, %v528
    %530 = vst [vmem:[#allocation10] sm:$0xff] %v529
    %s531 = scalar_lea.vmem [#allocation4], 8
    %v532 = vld [vmem:[%s531] sm:$0xff]
    %v533 = vld [vmem:[#allocation7] sm:$0xff]
    %v534 = vld [vmem:[#allocation7 + $0x8] sm:$0xff]
    %v535 = vld [vmem:[#allocation7 + $0x10] sm:$0xff]
    %v536 = vld [vmem:[#allocation7 + $0x18] sm:$0xff]
    %v537 = vld [vmem:[#allocation7 + $0x20] sm:$0xff]
    %v538 = vld [vmem:[#allocation7 + $0x28] sm:$0xff]
    %v539 = vld [vmem:[#allocation7 + $0x30] sm:$0xff]
    %v540 = vld [vmem:[#allocation7 + $0x38] sm:$0xff]
    %v541 = vld [vmem:[#allocation7 + $0x40] sm:$0xff]
    %v542 = vld [vmem:[#allocation7 + $0x48] sm:$0xff]
    %v543 = vld [vmem:[#allocation7 + $0x50] sm:$0xff]
    %v544 = vld [vmem:[#allocation7 + $0x58] sm:$0xff]
    %v545 = vld [vmem:[#allocation7 + $0x60] sm:$0xff]
    %v546 = vld [vmem:[#allocation7 + $0x68] sm:$0xff]
    %v547 = vld [vmem:[#allocation7 + $0x70] sm:$0xff]
    %v548 = vld [vmem:[#allocation7 + $0x78] sm:$0xff]
    %v549 = vld [vmem:[#allocation7 + $0x80] sm:$0xff]
    %v550 = vld [vmem:[#allocation7 + $0x88] sm:$0xff]
    %v551 = vld [vmem:[#allocation7 + $0x90] sm:$0xff]
    %v552 = vld [vmem:[#allocation7 + $0x98] sm:$0xff]
    %v553 = vld [vmem:[#allocation7 + $0xa0] sm:$0xff]
    %v554 = vld [vmem:[#allocation7 + $0xa8] sm:$0xff]
    %v555 = vld [vmem:[#allocation7 + $0xb0] sm:$0xff]
    %v556 = vld [vmem:[#allocation7 + $0xb8] sm:$0xff]
    %v557 = vld [vmem:[#allocation7 + $0xc0] sm:$0xff]
    %v558 = vld [vmem:[#allocation7 + $0xc8] sm:$0xff]
    %v559 = vld [vmem:[#allocation7 + $0xd0] sm:$0xff]
    %v560 = vld [vmem:[#allocation7 + $0xd8] sm:$0xff]
    %v561 = vld [vmem:[#allocation7 + $0xe0] sm:$0xff]
    %v562 = vld [vmem:[#allocation7 + $0xe8] sm:$0xff]
    %v563 = vld [vmem:[#allocation7 + $0xf0] sm:$0xff]
    %v564 = vld [vmem:[#allocation7 + $0xf8] sm:$0xff]
    %v565 = vld [vmem:[#allocation7 + $0x100] sm:$0xff]
    %v566 = vld [vmem:[#allocation7 + $0x108] sm:$0xff]
    %v567 = vld [vmem:[#allocation7 + $0x110] sm:$0xff]
    %v568 = vld [vmem:[#allocation7 + $0x118] sm:$0xff]
    %v569 = vld [vmem:[#allocation7 + $0x120] sm:$0xff]
    %v570 = vld [vmem:[#allocation7 + $0x128] sm:$0xff]
    %v571 = vld [vmem:[#allocation7 + $0x130] sm:$0xff]
    %v572 = vld [vmem:[#allocation7 + $0x138] sm:$0xff]
    %v573 = vld [vmem:[#allocation7 + $0x140] sm:$0xff]
    %v574 = vld [vmem:[#allocation7 + $0x148] sm:$0xff]
    %v575 = vld [vmem:[#allocation7 + $0x150] sm:$0xff]
    %v576 = vld [vmem:[#allocation7 + $0x158] sm:$0xff]
    %v577 = vld [vmem:[#allocation7 + $0x160] sm:$0xff]
    %v578 = vld [vmem:[#allocation7 + $0x168] sm:$0xff]
    %v579 = vld [vmem:[#allocation7 + $0x170] sm:$0xff]
    %v580 = vld [vmem:[#allocation7 + $0x178] sm:$0xff]
    %v581 = vld [vmem:[#allocation7 + $0x180] sm:$0xff]
    %v582 = vld [vmem:[#allocation7 + $0x188] sm:$0xff]
    %v583 = vld [vmem:[#allocation7 + $0x190] sm:$0xff]
    %v584 = vld [vmem:[#allocation7 + $0x198] sm:$0xff]
    %v585 = vld [vmem:[#allocation7 + $0x1a0] sm:$0xff]
    %v586 = vld [vmem:[#allocation7 + $0x1a8] sm:$0xff]
    %v587 = vld [vmem:[#allocation7 + $0x1b0] sm:$0xff]
    %v588 = vld [vmem:[#allocation7 + $0x1b8] sm:$0xff]
    %v589 = vld [vmem:[#allocation7 + $0x1c0] sm:$0xff]
    %v590 = vld [vmem:[#allocation7 + $0x1c8] sm:$0xff]
    %v591 = vld [vmem:[#allocation7 + $0x1d0] sm:$0xff]
    %v592 = vld [vmem:[#allocation7 + $0x1d8] sm:$0xff]
    %v593 = vld [vmem:[#allocation7 + $0x1e0] sm:$0xff]
    %v594 = vld [vmem:[#allocation7 + $0x1e8] sm:$0xff]
    %v595 = vld [vmem:[#allocation7 + $0x1f0] sm:$0xff]
    %v596 = vld [vmem:[#allocation7 + $0x1f8] sm:$0xff]
    %v597 = vld [vmem:[#allocation9] sm:$0xff]
    %v598 = vld [vmem:[#allocation9 + $0x8] sm:$0xff]
    %v599 = vld [vmem:[#allocation9 + $0x10] sm:$0xff]
    %v600 = vld [vmem:[#allocation9 + $0x18] sm:$0xff]
    %v601 = vld [vmem:[#allocation9 + $0x20] sm:$0xff]
    %v602 = vld [vmem:[#allocation9 + $0x28] sm:$0xff]
    %v603 = vld [vmem:[#allocation9 + $0x30] sm:$0xff]
    %v604 = vld [vmem:[#allocation9 + $0x38] sm:$0xff]
    %v605 = vld [vmem:[#allocation9 + $0x40] sm:$0xff]
    %v606 = vld [vmem:[#allocation9 + $0x48] sm:$0xff]
    %v607 = vld [vmem:[#allocation9 + $0x50] sm:$0xff]
    %v608 = vld [vmem:[#allocation9 + $0x58] sm:$0xff]
    %v609 = vld [vmem:[#allocation9 + $0x60] sm:$0xff]
    %v610 = vld [vmem:[#allocation9 + $0x68] sm:$0xff]
    %v611 = vld [vmem:[#allocation9 + $0x70] sm:$0xff]
    %v612 = vld [vmem:[#allocation9 + $0x78] sm:$0xff]
    %v613 = vld [vmem:[#allocation9 + $0x80] sm:$0xff]
    %v614 = vld [vmem:[#allocation9 + $0x88] sm:$0xff]
    %v615 = vld [vmem:[#allocation9 + $0x90] sm:$0xff]
    %v616 = vld [vmem:[#allocation9 + $0x98] sm:$0xff]
    %v617 = vld [vmem:[#allocation9 + $0xa0] sm:$0xff]
    %v618 = vld [vmem:[#allocation9 + $0xa8] sm:$0xff]
    %v619 = vld [vmem:[#allocation9 + $0xb0] sm:$0xff]
    %v620 = vld [vmem:[#allocation9 + $0xb8] sm:$0xff]
    %v621 = vld [vmem:[#allocation9 + $0xc0] sm:$0xff]
    %v622 = vld [vmem:[#allocation9 + $0xc8] sm:$0xff]
    %v623 = vld [vmem:[#allocation9 + $0xd0] sm:$0xff]
    %v624 = vld [vmem:[#allocation9 + $0xd8] sm:$0xff]
    %v625 = vld [vmem:[#allocation9 + $0xe0] sm:$0xff]
    %v626 = vld [vmem:[#allocation9 + $0xe8] sm:$0xff]
    %v627 = vld [vmem:[#allocation9 + $0xf0] sm:$0xff]
    %v628 = vld [vmem:[#allocation9 + $0xf8] sm:$0xff]
    %v629 = vld [vmem:[#allocation9 + $0x100] sm:$0xff]
    %v630 = vld [vmem:[#allocation9 + $0x108] sm:$0xff]
    %v631 = vld [vmem:[#allocation9 + $0x110] sm:$0xff]
    %v632 = vld [vmem:[#allocation9 + $0x118] sm:$0xff]
    %v633 = vld [vmem:[#allocation9 + $0x120] sm:$0xff]
    %v634 = vld [vmem:[#allocation9 + $0x128] sm:$0xff]
    %v635 = vld [vmem:[#allocation9 + $0x130] sm:$0xff]
    %v636 = vld [vmem:[#allocation9 + $0x138] sm:$0xff]
    %v637 = vld [vmem:[#allocation9 + $0x140] sm:$0xff]
    %v638 = vld [vmem:[#allocation9 + $0x148] sm:$0xff]
    %v639 = vld [vmem:[#allocation9 + $0x150] sm:$0xff]
    %v640 = vld [vmem:[#allocation9 + $0x158] sm:$0xff]
    %v641 = vld [vmem:[#allocation9 + $0x160] sm:$0xff]
    %v642 = vld [vmem:[#allocation9 + $0x168] sm:$0xff]
    %v643 = vld [vmem:[#allocation9 + $0x170] sm:$0xff]
    %v644 = vld [vmem:[#allocation9 + $0x178] sm:$0xff]
    %v645 = vld [vmem:[#allocation9 + $0x180] sm:$0xff]
    %v646 = vld [vmem:[#allocation9 + $0x188] sm:$0xff]
    %v647 = vld [vmem:[#allocation9 + $0x190] sm:$0xff]
    %v648 = vld [vmem:[#allocation9 + $0x198] sm:$0xff]
    %v649 = vld [vmem:[#allocation9 + $0x1a0] sm:$0xff]
    %v650 = vld [vmem:[#allocation9 + $0x1a8] sm:$0xff]
    %v651 = vld [vmem:[#allocation9 + $0x1b0] sm:$0xff]
    %v652 = vld [vmem:[#allocation9 + $0x1b8] sm:$0xff]
    %v653 = vld [vmem:[#allocation9 + $0x1c0] sm:$0xff]
    %v654 = vld [vmem:[#allocation9 + $0x1c8] sm:$0xff]
    %v655 = vld [vmem:[#allocation9 + $0x1d0] sm:$0xff]
    %v656 = vld [vmem:[#allocation9 + $0x1d8] sm:$0xff]
    %v657 = vld [vmem:[#allocation9 + $0x1e0] sm:$0xff]
    %v658 = vld [vmem:[#allocation9 + $0x1e8] sm:$0xff]
    %v659 = vld [vmem:[#allocation9 + $0x1f0] sm:$0xff]
    %v660 = vld [vmem:[#allocation9 + $0x1f8] sm:$0xff]
    %661 = vmatprep.subr.mxu0 %v658
    %662 = vmatpush1.msra.mxu0 %v657
    %663 = vmatprep.subr.mxu0 %v654
    %664 = vmatpush1.msra.mxu0 %v653
    %665 = vmatprep.subr.mxu0 %v650
    %666 = vmatpush1.msra.mxu0 %v649
    %667 = vmatprep.subr.mxu0 %v646
    %668 = vmatpush1.msra.mxu0 %v645
    %669 = vmatprep.subr.mxu0 %v642
    %670 = vmatpush1.msra.mxu0 %v641
    %671 = vmatprep.subr.mxu0 %v638
    %672 = vmatpush1.msra.mxu0 %v637
    %673 = vmatprep.subr.mxu0 %v634
    %674 = vmatpush1.msra.mxu0 %v633
    %675 = vmatprep.subr.mxu0 %v630
    %676 = vmatpush1.msra.mxu0 %v629
    %677 = vmatprep.subr.mxu0 %v626
    %678 = vmatpush1.msra.mxu0 %v625
    %679 = vmatprep.subr.mxu0 %v622
    %680 = vmatpush1.msra.mxu0 %v621
    %681 = vmatprep.subr.mxu0 %v618
    %682 = vmatpush1.msra.mxu0 %v617
    %683 = vmatprep.subr.mxu0 %v614
    %684 = vmatpush1.msra.mxu0 %v613
    %685 = vmatprep.subr.mxu0 %v610
    %686 = vmatpush1.msra.mxu0 %v609
    %687 = vmatprep.subr.mxu0 %v606
    %688 = vmatpush1.msra.mxu0 %v605
    %689 = vmatprep.subr.mxu0 %v602
    %690 = vmatpush1.msra.mxu0 %v601
    %691 = vmatprep.subr.mxu0 %v598
    %692 = vmatpush1.msra.mxu0 %v597
    %693 = vmatprep.subr.mxu0 0.0
    %694 = vmatpush2.msra.mxu0 0.0
    %695 = vmatprep.subr.mxu0 0.0
    %696 = vmatpush2.msra.mxu0 0.0
    %697 = vmatprep.subr.mxu0 0.0
    %698 = vmatpush2.msra.mxu0 0.0
    %699 = vmatprep.subr.mxu0 0.0
    %700 = vmatpush2.msra.mxu0 0.0
    %701 = vmatprep.subr.mxu0 0.0
    %702 = vmatpush2.msra.mxu0 0.0
    %703 = vmatprep.subr.mxu0 0.0
    %704 = vmatpush2.msra.mxu0 0.0
    %705 = vmatprep.subr.mxu0 0.0
    %706 = vmatpush2.msra.mxu0 0.0
    %707 = vmatprep.subr.mxu0 0.0
    %708 = vmatpush2.msra.mxu0 0.0
    %709 = vmatprep.subr.mxu0 0.0
    %710 = vmatpush2.msra.mxu0 0.0
    %711 = vmatprep.subr.mxu0 0.0
    %712 = vmatpush2.msra.mxu0 0.0
    %713 = vmatprep.subr.mxu0 0.0
    %714 = vmatpush2.msra.mxu0 0.0
    %715 = vmatprep.subr.mxu0 0.0
    %716 = vmatpush2.msra.mxu0 0.0
    %717 = vmatprep.subr.mxu0 0.0
    %718 = vmatpush2.msra.mxu0 0.0
    %719 = vmatprep.subr.mxu0 0.0
    %720 = vmatpush2.msra.mxu0 0.0
    %721 = vmatprep.subr.mxu0 0.0
    %722 = vmatpush2.msra.mxu0 0.0
    %723 = vmatprep.subr.mxu0 0.0
    %724 = vmatpush2.msra.mxu0 0.0
    %725 = vmatprep.mubr.f32.mxu0 0.0
    %726 = vmatmul.mubr.f32.gmra.mxu0 %v529
    %v727 = vpop.f32.mrf.mxu0
    %v728 = vadd.f32 0.0, %v727
    %v729 = vpop.f32.mrf.mxu0
    %v730 = vadd.f32 0.0, %v729
    %731 = vdwg.mxu0
    %732 = vmatprep.subr.mxu0 %v660
    %733 = vmatpush1.msra.mxu0 %v659
    %734 = vmatprep.subr.mxu0 %v656
    %735 = vmatpush1.msra.mxu0 %v655
    %736 = vmatprep.subr.mxu0 %v652
    %737 = vmatpush1.msra.mxu0 %v651
    %738 = vmatprep.subr.mxu0 %v648
    %739 = vmatpush1.msra.mxu0 %v647
    %740 = vmatprep.subr.mxu0 %v644
    %741 = vmatpush1.msra.mxu0 %v643
    %742 = vmatprep.subr.mxu0 %v640
    %743 = vmatpush1.msra.mxu0 %v639
    %744 = vmatprep.subr.mxu0 %v636
    %745 = vmatpush1.msra.mxu0 %v635
    %746 = vmatprep.subr.mxu0 %v632
    %747 = vmatpush1.msra.mxu0 %v631
    %748 = vmatprep.subr.mxu0 %v628
    %749 = vmatpush1.msra.mxu0 %v627
    %750 = vmatprep.subr.mxu0 %v624
    %751 = vmatpush1.msra.mxu0 %v623
    %752 = vmatprep.subr.mxu0 %v620
    %753 = vmatpush1.msra.mxu0 %v619
    %754 = vmatprep.subr.mxu0 %v616
    %755 = vmatpush1.msra.mxu0 %v615
    %756 = vmatprep.subr.mxu0 %v612
    %757 = vmatpush1.msra.mxu0 %v611
    %758 = vmatprep.subr.mxu0 %v608
    %759 = vmatpush1.msra.mxu0 %v607
    %760 = vmatprep.subr.mxu0 %v604
    %761 = vmatpush1.msra.mxu0 %v603
    %762 = vmatprep.subr.mxu0 %v600
    %763 = vmatpush1.msra.mxu0 %v599
    %764 = vmatprep.subr.mxu0 0.0
    %765 = vmatpush2.msra.mxu0 0.0
    %766 = vmatprep.subr.mxu0 0.0
    %767 = vmatpush2.msra.mxu0 0.0
    %768 = vmatprep.subr.mxu0 0.0
    %769 = vmatpush2.msra.mxu0 0.0
    %770 = vmatprep.subr.mxu0 0.0
    %771 = vmatpush2.msra.mxu0 0.0
    %772 = vmatprep.subr.mxu0 0.0
    %773 = vmatpush2.msra.mxu0 0.0
    %774 = vmatprep.subr.mxu0 0.0
    %775 = vmatpush2.msra.mxu0 0.0
    %776 = vmatprep.subr.mxu0 0.0
    %777 = vmatpush2.msra.mxu0 0.0
    %778 = vmatprep.subr.mxu0 0.0
    %779 = vmatpush2.msra.mxu0 0.0
    %780 = vmatprep.subr.mxu0 0.0
    %781 = vmatpush2.msra.mxu0 0.0
    %782 = vmatprep.subr.mxu0 0.0
    %783 = vmatpush2.msra.mxu0 0.0
    %784 = vmatprep.subr.mxu0 0.0
    %785 = vmatpush2.msra.mxu0 0.0
    %786 = vmatprep.subr.mxu0 0.0
    %787 = vmatpush2.msra.mxu0 0.0
    %788 = vmatprep.subr.mxu0 0.0
    %789 = vmatpush2.msra.mxu0 0.0
    %790 = vmatprep.subr.mxu0 0.0
    %791 = vmatpush2.msra.mxu0 0.0
    %792 = vmatprep.subr.mxu0 0.0
    %793 = vmatpush2.msra.mxu0 0.0
    %794 = vmatprep.subr.mxu0 0.0
    %795 = vmatpush2.msra.mxu0 0.0
    %796 = vmatprep.mubr.f32.mxu0 0.0
    %797 = vmatmul.mubr.f32.gmra.mxu0 %v529
    %v798 = vpop.f32.mrf.mxu0
    %v799 = vadd.f32 0.0, %v798
    %v800 = vpop.f32.mrf.mxu0
    %v801 = vadd.f32 0.0, %v800
    %802 = vdwg.mxu0
    %803 = vmatprep.subr.mxu0 %v594
    %804 = vmatpush1.msra.mxu0 %v593
    %805 = vmatprep.subr.mxu0 %v590
    %806 = vmatpush1.msra.mxu0 %v589
    %807 = vmatprep.subr.mxu0 %v586
    %808 = vmatpush1.msra.mxu0 %v585
    %809 = vmatprep.subr.mxu0 %v582
    %810 = vmatpush1.msra.mxu0 %v581
    %811 = vmatprep.subr.mxu0 %v578
    %812 = vmatpush1.msra.mxu0 %v577
    %813 = vmatprep.subr.mxu0 %v574
    %814 = vmatpush1.msra.mxu0 %v573
    %815 = vmatprep.subr.mxu0 %v570
    %816 = vmatpush1.msra.mxu0 %v569
    %817 = vmatprep.subr.mxu0 %v566
    %818 = vmatpush1.msra.mxu0 %v565
    %819 = vmatprep.subr.mxu0 %v562
    %820 = vmatpush1.msra.mxu0 %v561
    %821 = vmatprep.subr.mxu0 %v558
    %822 = vmatpush1.msra.mxu0 %v557
    %823 = vmatprep.subr.mxu0 %v554
    %824 = vmatpush1.msra.mxu0 %v553
    %825 = vmatprep.subr.mxu0 %v550
    %826 = vmatpush1.msra.mxu0 %v549
    %827 = vmatprep.subr.mxu0 %v546
    %828 = vmatpush1.msra.mxu0 %v545
    %829 = vmatprep.subr.mxu0 %v542
    %830 = vmatpush1.msra.mxu0 %v541
    %831 = vmatprep.subr.mxu0 %v538
    %832 = vmatpush1.msra.mxu0 %v537
    %833 = vmatprep.subr.mxu0 %v534
    %834 = vmatpush1.msra.mxu0 %v533
    %835 = vmatprep.subr.mxu0 0.0
    %836 = vmatpush2.msra.mxu0 0.0
    %837 = vmatprep.subr.mxu0 0.0
    %838 = vmatpush2.msra.mxu0 0.0
    %839 = vmatprep.subr.mxu0 0.0
    %840 = vmatpush2.msra.mxu0 0.0
    %841 = vmatprep.subr.mxu0 0.0
    %842 = vmatpush2.msra.mxu0 0.0
    %843 = vmatprep.subr.mxu0 0.0
    %844 = vmatpush2.msra.mxu0 0.0
    %845 = vmatprep.subr.mxu0 0.0
    %846 = vmatpush2.msra.mxu0 0.0
    %847 = vmatprep.subr.mxu0 0.0
    %848 = vmatpush2.msra.mxu0 0.0
    %849 = vmatprep.subr.mxu0 0.0
    %850 = vmatpush2.msra.mxu0 0.0
    %851 = vmatprep.subr.mxu0 0.0
    %852 = vmatpush2.msra.mxu0 0.0
    %853 = vmatprep.subr.mxu0 0.0
    %854 = vmatpush2.msra.mxu0 0.0
    %855 = vmatprep.subr.mxu0 0.0
    %856 = vmatpush2.msra.mxu0 0.0
    %857 = vmatprep.subr.mxu0 0.0
    %858 = vmatpush2.msra.mxu0 0.0
    %859 = vmatprep.subr.mxu0 0.0
    %860 = vmatpush2.msra.mxu0 0.0
    %861 = vmatprep.subr.mxu0 0.0
    %862 = vmatpush2.msra.mxu0 0.0
    %863 = vmatprep.subr.mxu0 0.0
    %864 = vmatpush2.msra.mxu0 0.0
    %865 = vmatprep.subr.mxu0 0.0
    %866 = vmatpush2.msra.mxu0 0.0
    %867 = vmatprep.mubr.f32.mxu0 0.0
    %868 = vmatmul.mubr.f32.gmra.mxu0 %v532
    %v869 = vpop.f32.mrf.mxu0
    %v870 = vadd.f32 %v728, %v869
    %v871 = vpop.f32.mrf.mxu0
    %v872 = vadd.f32 %v730, %v871
    %873 = vdwg.mxu0
    %874 = vmatprep.subr.mxu0 %v596
    %875 = vmatpush1.msra.mxu0 %v595
    %876 = vmatprep.subr.mxu0 %v592
    %877 = vmatpush1.msra.mxu0 %v591
    %878 = vmatprep.subr.mxu0 %v588
    %879 = vmatpush1.msra.mxu0 %v587
    %880 = vmatprep.subr.mxu0 %v584
    %881 = vmatpush1.msra.mxu0 %v583
    %882 = vmatprep.subr.mxu0 %v580
    %883 = vmatpush1.msra.mxu0 %v579
    %884 = vmatprep.subr.mxu0 %v576
    %885 = vmatpush1.msra.mxu0 %v575
    %886 = vmatprep.subr.mxu0 %v572
    %887 = vmatpush1.msra.mxu0 %v571
    %888 = vmatprep.subr.mxu0 %v568
    %889 = vmatpush1.msra.mxu0 %v567
    %890 = vmatprep.subr.mxu0 %v564
    %891 = vmatpush1.msra.mxu0 %v563
    %892 = vmatprep.subr.mxu0 %v560
    %893 = vmatpush1.msra.mxu0 %v559
    %894 = vmatprep.subr.mxu0 %v556
    %895 = vmatpush1.msra.mxu0 %v555
    %896 = vmatprep.subr.mxu0 %v552
    %897 = vmatpush1.msra.mxu0 %v551
    %898 = vmatprep.subr.mxu0 %v548
    %899 = vmatpush1.msra.mxu0 %v547
    %900 = vmatprep.subr.mxu0 %v544
    %901 = vmatpush1.msra.mxu0 %v543
    %902 = vmatprep.subr.mxu0 %v540
    %903 = vmatpush1.msra.mxu0 %v539
    %904 = vmatprep.subr.mxu0 %v536
    %905 = vmatpush1.msra.mxu0 %v535
    %906 = vmatprep.subr.mxu0 0.0
    %907 = vmatpush2.msra.mxu0 0.0
    %908 = vmatprep.subr.mxu0 0.0
    %909 = vmatpush2.msra.mxu0 0.0
    %910 = vmatprep.subr.mxu0 0.0
    %911 = vmatpush2.msra.mxu0 0.0
    %912 = vmatprep.subr.mxu0 0.0
    %913 = vmatpush2.msra.mxu0 0.0
    %914 = vmatprep.subr.mxu0 0.0
    %915 = vmatpush2.msra.mxu0 0.0
    %916 = vmatprep.subr.mxu0 0.0
    %917 = vmatpush2.msra.mxu0 0.0
    %918 = vmatprep.subr.mxu0 0.0
    %919 = vmatpush2.msra.mxu0 0.0
    %920 = vmatprep.subr.mxu0 0.0
    %921 = vmatpush2.msra.mxu0 0.0
    %922 = vmatprep.subr.mxu0 0.0
    %923 = vmatpush2.msra.mxu0 0.0
    %924 = vmatprep.subr.mxu0 0.0
    %925 = vmatpush2.msra.mxu0 0.0
    %926 = vmatprep.subr.mxu0 0.0
    %927 = vmatpush2.msra.mxu0 0.0
    %928 = vmatprep.subr.mxu0 0.0
    %929 = vmatpush2.msra.mxu0 0.0
    %930 = vmatprep.subr.mxu0 0.0
    %931 = vmatpush2.msra.mxu0 0.0
    %932 = vmatprep.subr.mxu0 0.0
    %933 = vmatpush2.msra.mxu0 0.0
    %934 = vmatprep.subr.mxu0 0.0
    %935 = vmatpush2.msra.mxu0 0.0
    %936 = vmatprep.subr.mxu0 0.0
    %937 = vmatpush2.msra.mxu0 0.0
    %938 = vmatprep.mubr.f32.mxu0 0.0
    %939 = vmatmul.mubr.f32.gmra.mxu0 %v532
    %v940 = vpop.f32.mrf.mxu0
    %v941 = vadd.f32 %v799, %v940
    %v942 = vpop.f32.mrf.mxu0
    %v943 = vadd.f32 %v801, %v942
    %944 = vdwg.mxu0
    %v945 = vadd.f32 %v870, %v485
    %v946 = vadd.f32 %v872, %v489
    %v947 = vadd.f32 %v941, %v493
    %v948 = vadd.f32 %v943, %v497
    %v949 = vxor.u32 %v945, 2147483648
    %v950 = vmul.f32 %v949, 1.442695
    %v951 = vpow.pop %v950
    %v952 = vadd.f32 %v951, 1.0
    %v953 = vrcp.pop %v952
    %v954 = vmul.f32 1.0, %v953
    %v955 = vxor.u32 %v946, 2147483648
    %v956 = vmul.f32 %v955, 1.442695
    %v957 = vpow.pop %v956
    %v958 = vadd.f32 %v957, 1.0
    %v959 = vrcp.pop %v958
    %v960 = vmul.f32 1.0, %v959
    %v961 = vtanh.pop %v947
    %v962 = vxor.u32 %v948, 2147483648
    %v963 = vmul.f32 %v962, 1.442695
    %v964 = vpow.pop %v963
    %v965 = vadd.f32 %v964, 1.0
    %v966 = vrcp.pop %v965
    %v967 = vmul.f32 1.0, %v966
    %v968 = vmul.f32 %v960, %v527
    %v969 = vmul.f32 %v954, %v961
    %v970 = vadd.f32 %v968, %v969
    %v971 = vtanh.pop %v970
    %v972 = vmul.f32 %v967, %v971
    %s973 = scalar_lea.vmem [#allocation10], 8
    %974 = vst [vmem:[%s973] sm:$0xff] %v972
    %s975 = scalar_lea.vmem [#allocation4], 16
    %v976 = vld [vmem:[%s975] sm:$0xff]
    %v977 = vld [vmem:[#allocation7] sm:$0xff]
    %v978 = vld [vmem:[#allocation7 + $0x8] sm:$0xff]
    %v979 = vld [vmem:[#allocation7 + $0x10] sm:$0xff]
    %v980 = vld [vmem:[#allocation7 + $0x18] sm:$0xff]
    %v981 = vld [vmem:[#allocation7 + $0x20] sm:$0xff]
    %v982 = vld [vmem:[#allocation7 + $0x28] sm:$0xff]
    %v983 = vld [vmem:[#allocation7 + $0x30] sm:$0xff]
    %v984 = vld [vmem:[#allocation7 + $0x38] sm:$0xff]
    %v985 = vld [vmem:[#allocation7 + $0x40] sm:$0xff]
    %v986 = vld [vmem:[#allocation7 + $0x48] sm:$0xff]
    %v987 = vld [vmem:[#allocation7 + $0x50] sm:$0xff]
    %v988 = vld [vmem:[#allocation7 + $0x58] sm:$0xff]
    %v989 = vld [vmem:[#allocation7 + $0x60] sm:$0xff]
    %v990 = vld [vmem:[#allocation7 + $0x68] sm:$0xff]
    %v991 = vld [vmem:[#allocation7 + $0x70] sm:$0xff]
    %v992 = vld [vmem:[#allocation7 + $0x78] sm:$0xff]
    %v993 = vld [vmem:[#allocation7 + $0x80] sm:$0xff]
    %v994 = vld [vmem:[#allocation7 + $0x88] sm:$0xff]
    %v995 = vld [vmem:[#allocation7 + $0x90] sm:$0xff]
    %v996 = vld [vmem:[#allocation7 + $0x98] sm:$0xff]
    %v997 = vld [vmem:[#allocation7 + $0xa0] sm:$0xff]
    %v998 = vld [vmem:[#allocation7 + $0xa8] sm:$0xff]
    %v999 = vld [vmem:[#allocation7 + $0xb0] sm:$0xff]
    %v1000 = vld [vmem:[#allocation7 + $0xb8] sm:$0xff]
    %v1001 = vld [vmem:[#allocation7 + $0xc0] sm:$0xff]
    %v1002 = vld [vmem:[#allocation7 + $0xc8] sm:$0xff]
    %v1003 = vld [vmem:[#allocation7 + $0xd0] sm:$0xff]
    %v1004 = vld [vmem:[#allocation7 + $0xd8] sm:$0xff]
    %v1005 = vld [vmem:[#allocation7 + $0xe0] sm:$0xff]
    %v1006 = vld [vmem:[#allocation7 + $0xe8] sm:$0xff]
    %v1007 = vld [vmem:[#allocation7 + $0xf0] sm:$0xff]
    %v1008 = vld [vmem:[#allocation7 + $0xf8] sm:$0xff]
    %v1009 = vld [vmem:[#allocation7 + $0x100] sm:$0xff]
    %v1010 = vld [vmem:[#allocation7 + $0x108] sm:$0xff]
    %v1011 = vld [vmem:[#allocation7 + $0x110] sm:$0xff]
    %v1012 = vld [vmem:[#allocation7 + $0x118] sm:$0xff]
    %v1013 = vld [vmem:[#allocation7 + $0x120] sm:$0xff]
    %v1014 = vld [vmem:[#allocation7 + $0x128] sm:$0xff]
    %v1015 = vld [vmem:[#allocation7 + $0x130] sm:$0xff]
    %v1016 = vld [vmem:[#allocation7 + $0x138] sm:$0xff]
    %v1017 = vld [vmem:[#allocation7 + $0x140] sm:$0xff]
    %v1018 = vld [vmem:[#allocation7 + $0x148] sm:$0xff]
    %v1019 = vld [vmem:[#allocation7 + $0x150] sm:$0xff]
    %v1020 = vld [vmem:[#allocation7 + $0x158] sm:$0xff]
    %v1021 = vld [vmem:[#allocation7 + $0x160] sm:$0xff]
    %v1022 = vld [vmem:[#allocation7 + $0x168] sm:$0xff]
    %v1023 = vld [vmem:[#allocation7 + $0x170] sm:$0xff]
    %v1024 = vld [vmem:[#allocation7 + $0x178] sm:$0xff]
    %v1025 = vld [vmem:[#allocation7 + $0x180] sm:$0xff]
    %v1026 = vld [vmem:[#allocation7 + $0x188] sm:$0xff]
    %v1027 = vld [vmem:[#allocation7 + $0x190] sm:$0xff]
    %v1028 = vld [vmem:[#allocation7 + $0x198] sm:$0xff]
    %v1029 = vld [vmem:[#allocation7 + $0x1a0] sm:$0xff]
    %v1030 = vld [vmem:[#allocation7 + $0x1a8] sm:$0xff]
    %v1031 = vld [vmem:[#allocation7 + $0x1b0] sm:$0xff]
    %v1032 = vld [vmem:[#allocation7 + $0x1b8] sm:$0xff]
    %v1033 = vld [vmem:[#allocation7 + $0x1c0] sm:$0xff]
    %v1034 = vld [vmem:[#allocation7 + $0x1c8] sm:$0xff]
    %v1035 = vld [vmem:[#allocation7 + $0x1d0] sm:$0xff]
    %v1036 = vld [vmem:[#allocation7 + $0x1d8] sm:$0xff]
    %v1037 = vld [vmem:[#allocation7 + $0x1e0] sm:$0xff]
    %v1038 = vld [vmem:[#allocation7 + $0x1e8] sm:$0xff]
    %v1039 = vld [vmem:[#allocation7 + $0x1f0] sm:$0xff]
    %v1040 = vld [vmem:[#allocation7 + $0x1f8] sm:$0xff]
    %v1041 = vld [vmem:[#allocation9] sm:$0xff]
    %v1042 = vld [vmem:[#allocation9 + $0x8] sm:$0xff]
    %v1043 = vld [vmem:[#allocation9 + $0x10] sm:$0xff]
    %v1044 = vld [vmem:[#allocation9 + $0x18] sm:$0xff]
    %v1045 = vld [vmem:[#allocation9 + $0x20] sm:$0xff]
    %v1046 = vld [vmem:[#allocation9 + $0x28] sm:$0xff]
    %v1047 = vld [vmem:[#allocation9 + $0x30] sm:$0xff]
    %v1048 = vld [vmem:[#allocation9 + $0x38] sm:$0xff]
    %v1049 = vld [vmem:[#allocation9 + $0x40] sm:$0xff]
    %v1050 = vld [vmem:[#allocation9 + $0x48] sm:$0xff]
    %v1051 = vld [vmem:[#allocation9 + $0x50] sm:$0xff]
    %v1052 = vld [vmem:[#allocation9 + $0x58] sm:$0xff]
    %v1053 = vld [vmem:[#allocation9 + $0x60] sm:$0xff]
    %v1054 = vld [vmem:[#allocation9 + $0x68] sm:$0xff]
    %v1055 = vld [vmem:[#allocation9 + $0x70] sm:$0xff]
    %v1056 = vld [vmem:[#allocation9 + $0x78] sm:$0xff]
    %v1057 = vld [vmem:[#allocation9 + $0x80] sm:$0xff]
    %v1058 = vld [vmem:[#allocation9 + $0x88] sm:$0xff]
    %v1059 = vld [vmem:[#allocation9 + $0x90] sm:$0xff]
    %v1060 = vld [vmem:[#allocation9 + $0x98] sm:$0xff]
    %v1061 = vld [vmem:[#allocation9 + $0xa0] sm:$0xff]
    %v1062 = vld [vmem:[#allocation9 + $0xa8] sm:$0xff]
    %v1063 = vld [vmem:[#allocation9 + $0xb0] sm:$0xff]
    %v1064 = vld [vmem:[#allocation9 + $0xb8] sm:$0xff]
    %v1065 = vld [vmem:[#allocation9 + $0xc0] sm:$0xff]
    %v1066 = vld [vmem:[#allocation9 + $0xc8] sm:$0xff]
    %v1067 = vld [vmem:[#allocation9 + $0xd0] sm:$0xff]
    %v1068 = vld [vmem:[#allocation9 + $0xd8] sm:$0xff]
    %v1069 = vld [vmem:[#allocation9 + $0xe0] sm:$0xff]
    %v1070 = vld [vmem:[#allocation9 + $0xe8] sm:$0xff]
    %v1071 = vld [vmem:[#allocation9 + $0xf0] sm:$0xff]
    %v1072 = vld [vmem:[#allocation9 + $0xf8] sm:$0xff]
    %v1073 = vld [vmem:[#allocation9 + $0x100] sm:$0xff]
    %v1074 = vld [vmem:[#allocation9 + $0x108] sm:$0xff]
    %v1075 = vld [vmem:[#allocation9 + $0x110] sm:$0xff]
    %v1076 = vld [vmem:[#allocation9 + $0x118] sm:$0xff]
    %v1077 = vld [vmem:[#allocation9 + $0x120] sm:$0xff]
    %v1078 = vld [vmem:[#allocation9 + $0x128] sm:$0xff]
    %v1079 = vld [vmem:[#allocation9 + $0x130] sm:$0xff]
    %v1080 = vld [vmem:[#allocation9 + $0x138] sm:$0xff]
    %v1081 = vld [vmem:[#allocation9 + $0x140] sm:$0xff]
    %v1082 = vld [vmem:[#allocation9 + $0x148] sm:$0xff]
    %v1083 = vld [vmem:[#allocation9 + $0x150] sm:$0xff]
    %v1084 = vld [vmem:[#allocation9 + $0x158] sm:$0xff]
    %v1085 = vld [vmem:[#allocation9 + $0x160] sm:$0xff]
    %v1086 = vld [vmem:[#allocation9 + $0x168] sm:$0xff]
    %v1087 = vld [vmem:[#allocation9 + $0x170] sm:$0xff]
    %v1088 = vld [vmem:[#allocation9 + $0x178] sm:$0xff]
    %v1089 = vld [vmem:[#allocation9 + $0x180] sm:$0xff]
    %v1090 = vld [vmem:[#allocation9 + $0x188] sm:$0xff]
    %v1091 = vld [vmem:[#allocation9 + $0x190] sm:$0xff]
    %v1092 = vld [vmem:[#allocation9 + $0x198] sm:$0xff]
    %v1093 = vld [vmem:[#allocation9 + $0x1a0] sm:$0xff]
    %v1094 = vld [vmem:[#allocation9 + $0x1a8] sm:$0xff]
    %v1095 = vld [vmem:[#allocation9 + $0x1b0] sm:$0xff]
    %v1096 = vld [vmem:[#allocation9 + $0x1b8] sm:$0xff]
    %v1097 = vld [vmem:[#allocation9 + $0x1c0] sm:$0xff]
    %v1098 = vld [vmem:[#allocation9 + $0x1c8] sm:$0xff]
    %v1099 = vld [vmem:[#allocation9 + $0x1d0] sm:$0xff]
    %v1100 = vld [vmem:[#allocation9 + $0x1d8] sm:$0xff]
    %v1101 = vld [vmem:[#allocation9 + $0x1e0] sm:$0xff]
    %v1102 = vld [vmem:[#allocation9 + $0x1e8] sm:$0xff]
    %v1103 = vld [vmem:[#allocation9 + $0x1f0] sm:$0xff]
    %v1104 = vld [vmem:[#allocation9 + $0x1f8] sm:$0xff]
    %1105 = vmatprep.subr.mxu0 %v1102
    %1106 = vmatpush1.msra.mxu0 %v1101
    %1107 = vmatprep.subr.mxu0 %v1098
    %1108 = vmatpush1.msra.mxu0 %v1097
    %1109 = vmatprep.subr.mxu0 %v1094
    %1110 = vmatpush1.msra.mxu0 %v1093
    %1111 = vmatprep.subr.mxu0 %v1090
    %1112 = vmatpush1.msra.mxu0 %v1089
    %1113 = vmatprep.subr.mxu0 %v1086
    %1114 = vmatpush1.msra.mxu0 %v1085
    %1115 = vmatprep.subr.mxu0 %v1082
    %1116 = vmatpush1.msra.mxu0 %v1081
    %1117 = vmatprep.subr.mxu0 %v1078
    %1118 = vmatpush1.msra.mxu0 %v1077
    %1119 = vmatprep.subr.mxu0 %v1074
    %1120 = vmatpush1.msra.mxu0 %v1073
    %1121 = vmatprep.subr.mxu0 %v1070
    %1122 = vmatpush1.msra.mxu0 %v1069
    %1123 = vmatprep.subr.mxu0 %v1066
    %1124 = vmatpush1.msra.mxu0 %v1065
    %1125 = vmatprep.subr.mxu0 %v1062
    %1126 = vmatpush1.msra.mxu0 %v1061
    %1127 = vmatprep.subr.mxu0 %v1058
    %1128 = vmatpush1.msra.mxu0 %v1057
    %1129 = vmatprep.subr.mxu0 %v1054
    %1130 = vmatpush1.msra.mxu0 %v1053
    %1131 = vmatprep.subr.mxu0 %v1050
    %1132 = vmatpush1.msra.mxu0 %v1049
    %1133 = vmatprep.subr.mxu0 %v1046
    %1134 = vmatpush1.msra.mxu0 %v1045
    %1135 = vmatprep.subr.mxu0 %v1042
    %1136 = vmatpush1.msra.mxu0 %v1041
    %1137 = vmatprep.subr.mxu0 0.0
    %1138 = vmatpush2.msra.mxu0 0.0
    %1139 = vmatprep.subr.mxu0 0.0
    %1140 = vmatpush2.msra.mxu0 0.0
    %1141 = vmatprep.subr.mxu0 0.0
    %1142 = vmatpush2.msra.mxu0 0.0
    %1143 = vmatprep.subr.mxu0 0.0
    %1144 = vmatpush2.msra.mxu0 0.0
    %1145 = vmatprep.subr.mxu0 0.0
    %1146 = vmatpush2.msra.mxu0 0.0
    %1147 = vmatprep.subr.mxu0 0.0
    %1148 = vmatpush2.msra.mxu0 0.0
    %1149 = vmatprep.subr.mxu0 0.0
    %1150 = vmatpush2.msra.mxu0 0.0
    %1151 = vmatprep.subr.mxu0 0.0
    %1152 = vmatpush2.msra.mxu0 0.0
    %1153 = vmatprep.subr.mxu0 0.0
    %1154 = vmatpush2.msra.mxu0 0.0
    %1155 = vmatprep.subr.mxu0 0.0
    %1156 = vmatpush2.msra.mxu0 0.0
    %1157 = vmatprep.subr.mxu0 0.0
    %1158 = vmatpush2.msra.mxu0 0.0
    %1159 = vmatprep.subr.mxu0 0.0
    %1160 = vmatpush2.msra.mxu0 0.0
    %1161 = vmatprep.subr.mxu0 0.0
    %1162 = vmatpush2.msra.mxu0 0.0
    %1163 = vmatprep.subr.mxu0 0.0
    %1164 = vmatpush2.msra.mxu0 0.0
    %1165 = vmatprep.subr.mxu0 0.0
    %1166 = vmatpush2.msra.mxu0 0.0
    %1167 = vmatprep.subr.mxu0 0.0
    %1168 = vmatpush2.msra.mxu0 0.0
    %1169 = vmatprep.mubr.f32.mxu0 0.0
    %1170 = vmatmul.mubr.f32.gmra.mxu0 %v972
    %v1171 = vpop.f32.mrf.mxu0
    %v1172 = vadd.f32 0.0, %v1171
    %v1173 = vpop.f32.mrf.mxu0
    %v1174 = vadd.f32 0.0, %v1173
    %1175 = vdwg.mxu0
    %1176 = vmatprep.subr.mxu0 %v1104
    %1177 = vmatpush1.msra.mxu0 %v1103
    %1178 = vmatprep.subr.mxu0 %v1100
    %1179 = vmatpush1.msra.mxu0 %v1099
    %1180 = vmatprep.subr.mxu0 %v1096
    %1181 = vmatpush1.msra.mxu0 %v1095
    %1182 = vmatprep.subr.mxu0 %v1092
    %1183 = vmatpush1.msra.mxu0 %v1091
    %1184 = vmatprep.subr.mxu0 %v1088
    %1185 = vmatpush1.msra.mxu0 %v1087
    %1186 = vmatprep.subr.mxu0 %v1084
    %1187 = vmatpush1.msra.mxu0 %v1083
    %1188 = vmatprep.subr.mxu0 %v1080
    %1189 = vmatpush1.msra.mxu0 %v1079
    %1190 = vmatprep.subr.mxu0 %v1076
    %1191 = vmatpush1.msra.mxu0 %v1075
    %1192 = vmatprep.subr.mxu0 %v1072
    %1193 = vmatpush1.msra.mxu0 %v1071
    %1194 = vmatprep.subr.mxu0 %v1068
    %1195 = vmatpush1.msra.mxu0 %v1067
    %1196 = vmatprep.subr.mxu0 %v1064
    %1197 = vmatpush1.msra.mxu0 %v1063
    %1198 = vmatprep.subr.mxu0 %v1060
    %1199 = vmatpush1.msra.mxu0 %v1059
    %1200 = vmatprep.subr.mxu0 %v1056
    %1201 = vmatpush1.msra.mxu0 %v1055
    %1202 = vmatprep.subr.mxu0 %v1052
    %1203 = vmatpush1.msra.mxu0 %v1051
    %1204 = vmatprep.subr.mxu0 %v1048
    %1205 = vmatpush1.msra.mxu0 %v1047
    %1206 = vmatprep.subr.mxu0 %v1044
    %1207 = vmatpush1.msra.mxu0 %v1043
    %1208 = vmatprep.subr.mxu0 0.0
    %1209 = vmatpush2.msra.mxu0 0.0
    %1210 = vmatprep.subr.mxu0 0.0
    %1211 = vmatpush2.msra.mxu0 0.0
    %1212 = vmatprep.subr.mxu0 0.0
    %1213 = vmatpush2.msra.mxu0 0.0
    %1214 = vmatprep.subr.mxu0 0.0
    %1215 = vmatpush2.msra.mxu0 0.0
    %1216 = vmatprep.subr.mxu0 0.0
    %1217 = vmatpush2.msra.mxu0 0.0
    %1218 = vmatprep.subr.mxu0 0.0
    %1219 = vmatpush2.msra.mxu0 0.0
    %1220 = vmatprep.subr.mxu0 0.0
    %1221 = vmatpush2.msra.mxu0 0.0
    %1222 = vmatprep.subr.mxu0 0.0
    %1223 = vmatpush2.msra.mxu0 0.0
    %1224 = vmatprep.subr.mxu0 0.0
    %1225 = vmatpush2.msra.mxu0 0.0
    %1226 = vmatprep.subr.mxu0 0.0
    %1227 = vmatpush2.msra.mxu0 0.0
    %1228 = vmatprep.subr.mxu0 0.0
    %1229 = vmatpush2.msra.mxu0 0.0
    %1230 = vmatprep.subr.mxu0 0.0
    %1231 = vmatpush2.msra.mxu0 0.0
    %1232 = vmatprep.subr.mxu0 0.0
    %1233 = vmatpush2.msra.mxu0 0.0
    %1234 = vmatprep.subr.mxu0 0.0
    %1235 = vmatpush2.msra.mxu0 0.0
    %1236 = vmatprep.subr.mxu0 0.0
    %1237 = vmatpush2.msra.mxu0 0.0
    %1238 = vmatprep.subr.mxu0 0.0
    %1239 = vmatpush2.msra.mxu0 0.0
    %1240 = vmatprep.mubr.f32.mxu0 0.0
    %1241 = vmatmul.mubr.f32.gmra.mxu0 %v972
    %v1242 = vpop.f32.mrf.mxu0
    %v1243 = vadd.f32 0.0, %v1242
    %v1244 = vpop.f32.mrf.mxu0
    %v1245 = vadd.f32 0.0, %v1244
    %1246 = vdwg.mxu0
    %1247 = vmatprep.subr.mxu0 %v1038
    %1248 = vmatpush1.msra.mxu0 %v1037
    %1249 = vmatprep.subr.mxu0 %v1034
    %1250 = vmatpush1.msra.mxu0 %v1033
    %1251 = vmatprep.subr.mxu0 %v1030
    %1252 = vmatpush1.msra.mxu0 %v1029
    %1253 = vmatprep.subr.mxu0 %v1026
    %1254 = vmatpush1.msra.mxu0 %v1025
    %1255 = vmatprep.subr.mxu0 %v1022
    %1256 = vmatpush1.msra.mxu0 %v1021
    %1257 = vmatprep.subr.mxu0 %v1018
    %1258 = vmatpush1.msra.mxu0 %v1017
    %1259 = vmatprep.subr.mxu0 %v1014
    %1260 = vmatpush1.msra.mxu0 %v1013
    %1261 = vmatprep.subr.mxu0 %v1010
    %1262 = vmatpush1.msra.mxu0 %v1009
    %1263 = vmatprep.subr.mxu0 %v1006
    %1264 = vmatpush1.msra.mxu0 %v1005
    %1265 = vmatprep.subr.mxu0 %v1002
    %1266 = vmatpush1.msra.mxu0 %v1001
    %1267 = vmatprep.subr.mxu0 %v998
    %1268 = vmatpush1.msra.mxu0 %v997
    %1269 = vmatprep.subr.mxu0 %v994
    %1270 = vmatpush1.msra.mxu0 %v993
    %1271 = vmatprep.subr.mxu0 %v990
    %1272 = vmatpush1.msra.mxu0 %v989
    %1273 = vmatprep.subr.mxu0 %v986
    %1274 = vmatpush1.msra.mxu0 %v985
    %1275 = vmatprep.subr.mxu0 %v982
    %1276 = vmatpush1.msra.mxu0 %v981
    %1277 = vmatprep.subr.mxu0 %v978
    %1278 = vmatpush1.msra.mxu0 %v977
    %1279 = vmatprep.subr.mxu0 0.0
    %1280 = vmatpush2.msra.mxu0 0.0
    %1281 = vmatprep.subr.mxu0 0.0
    %1282 = vmatpush2.msra.mxu0 0.0
    %1283 = vmatprep.subr.mxu0 0.0
    %1284 = vmatpush2.msra.mxu0 0.0
    %1285 = vmatprep.subr.mxu0 0.0
    %1286 = vmatpush2.msra.mxu0 0.0
    %1287 = vmatprep.subr.mxu0 0.0
    %1288 = vmatpush2.msra.mxu0 0.0
    %1289 = vmatprep.subr.mxu0 0.0
    %1290 = vmatpush2.msra.mxu0 0.0
    %1291 = vmatprep.subr.mxu0 0.0
    %1292 = vmatpush2.msra.mxu0 0.0
    %1293 = vmatprep.subr.mxu0 0.0
    %1294 = vmatpush2.msra.mxu0 0.0
    %1295 = vmatprep.subr.mxu0 0.0
    %1296 = vmatpush2.msra.mxu0 0.0
    %1297 = vmatprep.subr.mxu0 0.0
    %1298 = vmatpush2.msra.mxu0 0.0
    %1299 = vmatprep.subr.mxu0 0.0
    %1300 = vmatpush2.msra.mxu0 0.0
    %1301 = vmatprep.subr.mxu0 0.0
    %1302 = vmatpush2.msra.mxu0 0.0
    %1303 = vmatprep.subr.mxu0 0.0
    %1304 = vmatpush2.msra.mxu0 0.0
    %1305 = vmatprep.subr.mxu0 0.0
    %1306 = vmatpush2.msra.mxu0 0.0
    %1307 = vmatprep.subr.mxu0 0.0
    %1308 = vmatpush2.msra.mxu0 0.0
    %1309 = vmatprep.subr.mxu0 0.0
    %1310 = vmatpush2.msra.mxu0 0.0
    %1311 = vmatprep.mubr.f32.mxu0 0.0
    %1312 = vmatmul.mubr.f32.gmra.mxu0 %v976
    %v1313 = vpop.f32.mrf.mxu0
    %v1314 = vadd.f32 %v1172, %v1313
    %v1315 = vpop.f32.mrf.mxu0
    %v1316 = vadd.f32 %v1174, %v1315
    %1317 = vdwg.mxu0
    %1318 = vmatprep.subr.mxu0 %v1040
    %1319 = vmatpush1.msra.mxu0 %v1039
    %1320 = vmatprep.subr.mxu0 %v1036
    %1321 = vmatpush1.msra.mxu0 %v1035
    %1322 = vmatprep.subr.mxu0 %v1032
    %1323 = vmatpush1.msra.mxu0 %v1031
    %1324 = vmatprep.subr.mxu0 %v1028
    %1325 = vmatpush1.msra.mxu0 %v1027
    %1326 = vmatprep.subr.mxu0 %v1024
    %1327 = vmatpush1.msra.mxu0 %v1023
    %1328 = vmatprep.subr.mxu0 %v1020
    %1329 = vmatpush1.msra.mxu0 %v1019
    %1330 = vmatprep.subr.mxu0 %v1016
    %1331 = vmatpush1.msra.mxu0 %v1015
    %1332 = vmatprep.subr.mxu0 %v1012
    %1333 = vmatpush1.msra.mxu0 %v1011
    %1334 = vmatprep.subr.mxu0 %v1008
    %1335 = vmatpush1.msra.mxu0 %v1007
    %1336 = vmatprep.subr.mxu0 %v1004
    %1337 = vmatpush1.msra.mxu0 %v1003
    %1338 = vmatprep.subr.mxu0 %v1000
    %1339 = vmatpush1.msra.mxu0 %v999
    %1340 = vmatprep.subr.mxu0 %v996
    %1341 = vmatpush1.msra.mxu0 %v995
    %1342 = vmatprep.subr.mxu0 %v992
    %1343 = vmatpush1.msra.mxu0 %v991
    %1344 = vmatprep.subr.mxu0 %v988
    %1345 = vmatpush1.msra.mxu0 %v987
    %1346 = vmatprep.subr.mxu0 %v984
    %1347 = vmatpush1.msra.mxu0 %v983
    %1348 = vmatprep.subr.mxu0 %v980
    %1349 = vmatpush1.msra.mxu0 %v979
    %1350 = vmatprep.subr.mxu0 0.0
    %1351 = vmatpush2.msra.mxu0 0.0
    %1352 = vmatprep.subr.mxu0 0.0
    %1353 = vmatpush2.msra.mxu0 0.0
    %1354 = vmatprep.subr.mxu0 0.0
    %1355 = vmatpush2.msra.mxu0 0.0
    %1356 = vmatprep.subr.mxu0 0.0
    %1357 = vmatpush2.msra.mxu0 0.0
    %1358 = vmatprep.subr.mxu0 0.0
    %1359 = vmatpush2.msra.mxu0 0.0
    %1360 = vmatprep.subr.mxu0 0.0
    %1361 = vmatpush2.msra.mxu0 0.0
    %1362 = vmatprep.subr.mxu0 0.0
    %1363 = vmatpush2.msra.mxu0 0.0
    %1364 = vmatprep.subr.mxu0 0.0
    %1365 = vmatpush2.msra.mxu0 0.0
    %1366 = vmatprep.subr.mxu0 0.0
    %1367 = vmatpush2.msra.mxu0 0.0
    %1368 = vmatprep.subr.mxu0 0.0
    %1369 = vmatpush2.msra.mxu0 0.0
    %1370 = vmatprep.subr.mxu0 0.0
    %1371 = vmatpush2.msra.mxu0 0.0
    %1372 = vmatprep.subr.mxu0 0.0
    %1373 = vmatpush2.msra.mxu0 0.0
    %1374 = vmatprep.subr.mxu0 0.0
    %1375 = vmatpush2.msra.mxu0 0.0
    %1376 = vmatprep.subr.mxu0 0.0
    %1377 = vmatpush2.msra.mxu0 0.0
    %1378 = vmatprep.subr.mxu0 0.0
    %1379 = vmatpush2.msra.mxu0 0.0
    %1380 = vmatprep.subr.mxu0 0.0
    %1381 = vmatpush2.msra.mxu0 0.0
    %1382 = vmatprep.mubr.f32.mxu0 0.0
    %1383 = vmatmul.mubr.f32.gmra.mxu0 %v976
    %v1384 = vpop.f32.mrf.mxu0
    %v1385 = vadd.f32 %v1243, %v1384
    %v1386 = vpop.f32.mrf.mxu0
    %v1387 = vadd.f32 %v1245, %v1386
    %1388 = vdwg.mxu0
    %v1389 = vadd.f32 %v1314, %v485
    %v1390 = vadd.f32 %v1316, %v489
    %v1391 = vadd.f32 %v1385, %v493
    %v1392 = vadd.f32 %v1387, %v497
    %v1393 = vxor.u32 %v1389, 2147483648
    %v1394 = vmul.f32 %v1393, 1.442695
    %v1395 = vpow.pop %v1394
    %v1396 = vadd.f32 %v1395, 1.0
    %v1397 = vrcp.pop %v1396
    %v1398 = vmul.f32 1.0, %v1397
    %v1399 = vxor.u32 %v1390, 2147483648
    %v1400 = vmul.f32 %v1399, 1.442695
    %v1401 = vpow.pop %v1400
    %v1402 = vadd.f32 %v1401, 1.0
    %v1403 = vrcp.pop %v1402
    %v1404 = vmul.f32 1.0, %v1403
    %v1405 = vtanh.pop %v1391
    %v1406 = vxor.u32 %v1392, 2147483648
    %v1407 = vmul.f32 %v1406, 1.442695
    %v1408 = vpow.pop %v1407
    %v1409 = vadd.f32 %v1408, 1.0
    %v1410 = vrcp.pop %v1409
    %v1411 = vmul.f32 1.0, %v1410
    %v1412 = vmul.f32 %v1404, %v970
    %v1413 = vmul.f32 %v1398, %v1405
    %v1414 = vadd.f32 %v1412, %v1413
    %v1415 = vtanh.pop %v1414
    %v1416 = vmul.f32 %v1411, %v1415
    %s1417 = scalar_lea.vmem [#allocation10], 16
    %1418 = vst [vmem:[%s1417] sm:$0xff] %v1416
    %s1419 = scalar_lea.vmem [#allocation4], 24
    %v1420 = vld [vmem:[%s1419] sm:$0xff]
    %v1421 = vld [vmem:[#allocation7] sm:$0xff]
    %v1422 = vld [vmem:[#allocation7 + $0x8] sm:$0xff]
    %v1423 = vld [vmem:[#allocation7 + $0x10] sm:$0xff]
    %v1424 = vld [vmem:[#allocation7 + $0x18] sm:$0xff]
    %v1425 = vld [vmem:[#allocation7 + $0x20] sm:$0xff]
    %v1426 = vld [vmem:[#allocation7 + $0x28] sm:$0xff]
    %v1427 = vld [vmem:[#allocation7 + $0x30] sm:$0xff]
    %v1428 = vld [vmem:[#allocation7 + $0x38] sm:$0xff]
    %v1429 = vld [vmem:[#allocation7 + $0x40] sm:$0xff]
    %v1430 = vld [vmem:[#allocation7 + $0x48] sm:$0xff]
    %v1431 = vld [vmem:[#allocation7 + $0x50] sm:$0xff]
    %v1432 = vld [vmem:[#allocation7 + $0x58] sm:$0xff]
    %v1433 = vld [vmem:[#allocation7 + $0x60] sm:$0xff]
    %v1434 = vld [vmem:[#allocation7 + $0x68] sm:$0xff]
    %v1435 = vld [vmem:[#allocation7 + $0x70] sm:$0xff]
    %v1436 = vld [vmem:[#allocation7 + $0x78] sm:$0xff]
    %v1437 = vld [vmem:[#allocation7 + $0x80] sm:$0xff]
    %v1438 = vld [vmem:[#allocation7 + $0x88] sm:$0xff]
    %v1439 = vld [vmem:[#allocation7 + $0x90] sm:$0xff]
    %v1440 = vld [vmem:[#allocation7 + $0x98] sm:$0xff]
    %v1441 = vld [vmem:[#allocation7 + $0xa0] sm:$0xff]
    %v1442 = vld [vmem:[#allocation7 + $0xa8] sm:$0xff]
    %v1443 = vld [vmem:[#allocation7 + $0xb0] sm:$0xff]
    %v1444 = vld [vmem:[#allocation7 + $0xb8] sm:$0xff]
    %v1445 = vld [vmem:[#allocation7 + $0xc0] sm:$0xff]
    %v1446 = vld [vmem:[#allocation7 + $0xc8] sm:$0xff]
    %v1447 = vld [vmem:[#allocation7 + $0xd0] sm:$0xff]
    %v1448 = vld [vmem:[#allocation7 + $0xd8] sm:$0xff]
    %v1449 = vld [vmem:[#allocation7 + $0xe0] sm:$0xff]
    %v1450 = vld [vmem:[#allocation7 + $0xe8] sm:$0xff]
    %v1451 = vld [vmem:[#allocation7 + $0xf0] sm:$0xff]
    %v1452 = vld [vmem:[#allocation7 + $0xf8] sm:$0xff]
    %v1453 = vld [vmem:[#allocation7 + $0x100] sm:$0xff]
    %v1454 = vld [vmem:[#allocation7 + $0x108] sm:$0xff]
    %v1455 = vld [vmem:[#allocation7 + $0x110] sm:$0xff]
    %v1456 = vld [vmem:[#allocation7 + $0x118] sm:$0xff]
    %v1457 = vld [vmem:[#allocation7 + $0x120] sm:$0xff]
    %v1458 = vld [vmem:[#allocation7 + $0x128] sm:$0xff]
    %v1459 = vld [vmem:[#allocation7 + $0x130] sm:$0xff]
    %v1460 = vld [vmem:[#allocation7 + $0x138] sm:$0xff]
    %v1461 = vld [vmem:[#allocation7 + $0x140] sm:$0xff]
    %v1462 = vld [vmem:[#allocation7 + $0x148] sm:$0xff]
    %v1463 = vld [vmem:[#allocation7 + $0x150] sm:$0xff]
    %v1464 = vld [vmem:[#allocation7 + $0x158] sm:$0xff]
    %v1465 = vld [vmem:[#allocation7 + $0x160] sm:$0xff]
    %v1466 = vld [vmem:[#allocation7 + $0x168] sm:$0xff]
    %v1467 = vld [vmem:[#allocation7 + $0x170] sm:$0xff]
    %v1468 = vld [vmem:[#allocation7 + $0x178] sm:$0xff]
    %v1469 = vld [vmem:[#allocation7 + $0x180] sm:$0xff]
    %v1470 = vld [vmem:[#allocation7 + $0x188] sm:$0xff]
    %v1471 = vld [vmem:[#allocation7 + $0x190] sm:$0xff]
    %v1472 = vld [vmem:[#allocation7 + $0x198] sm:$0xff]
    %v1473 = vld [vmem:[#allocation7 + $0x1a0] sm:$0xff]
    %v1474 = vld [vmem:[#allocation7 + $0x1a8] sm:$0xff]
    %v1475 = vld [vmem:[#allocation7 + $0x1b0] sm:$0xff]
    %v1476 = vld [vmem:[#allocation7 + $0x1b8] sm:$0xff]
    %v1477 = vld [vmem:[#allocation7 + $0x1c0] sm:$0xff]
    %v1478 = vld [vmem:[#allocation7 + $0x1c8] sm:$0xff]
    %v1479 = vld [vmem:[#allocation7 + $0x1d0] sm:$0xff]
    %v1480 = vld [vmem:[#allocation7 + $0x1d8] sm:$0xff]
    %v1481 = vld [vmem:[#allocation7 + $0x1e0] sm:$0xff]
    %v1482 = vld [vmem:[#allocation7 + $0x1e8] sm:$0xff]
    %v1483 = vld [vmem:[#allocation7 + $0x1f0] sm:$0xff]
    %v1484 = vld [vmem:[#allocation7 + $0x1f8] sm:$0xff]
    %v1485 = vld [vmem:[#allocation9] sm:$0xff]
    %v1486 = vld [vmem:[#allocation9 + $0x8] sm:$0xff]
    %v1487 = vld [vmem:[#allocation9 + $0x10] sm:$0xff]
    %v1488 = vld [vmem:[#allocation9 + $0x18] sm:$0xff]
    %v1489 = vld [vmem:[#allocation9 + $0x20] sm:$0xff]
    %v1490 = vld [vmem:[#allocation9 + $0x28] sm:$0xff]
    %v1491 = vld [vmem:[#allocation9 + $0x30] sm:$0xff]
    %v1492 = vld [vmem:[#allocation9 + $0x38] sm:$0xff]
    %v1493 = vld [vmem:[#allocation9 + $0x40] sm:$0xff]
    %v1494 = vld [vmem:[#allocation9 + $0x48] sm:$0xff]
    %v1495 = vld [vmem:[#allocation9 + $0x50] sm:$0xff]
    %v1496 = vld [vmem:[#allocation9 + $0x58] sm:$0xff]
    %v1497 = vld [vmem:[#allocation9 + $0x60] sm:$0xff]
    %v1498 = vld [vmem:[#allocation9 + $0x68] sm:$0xff]
    %v1499 = vld [vmem:[#allocation9 + $0x70] sm:$0xff]
    %v1500 = vld [vmem:[#allocation9 + $0x78] sm:$0xff]
    %v1501 = vld [vmem:[#allocation9 + $0x80] sm:$0xff]
    %v1502 = vld [vmem:[#allocation9 + $0x88] sm:$0xff]
    %v1503 = vld [vmem:[#allocation9 + $0x90] sm:$0xff]
    %v1504 = vld [vmem:[#allocation9 + $0x98] sm:$0xff]
    %v1505 = vld [vmem:[#allocation9 + $0xa0] sm:$0xff]
    %v1506 = vld [vmem:[#allocation9 + $0xa8] sm:$0xff]
    %v1507 = vld [vmem:[#allocation9 + $0xb0] sm:$0xff]
    %v1508 = vld [vmem:[#allocation9 + $0xb8] sm:$0xff]
    %v1509 = vld [vmem:[#allocation9 + $0xc0] sm:$0xff]
    %v1510 = vld [vmem:[#allocation9 + $0xc8] sm:$0xff]
    %v1511 = vld [vmem:[#allocation9 + $0xd0] sm:$0xff]
    %v1512 = vld [vmem:[#allocation9 + $0xd8] sm:$0xff]
    %v1513 = vld [vmem:[#allocation9 + $0xe0] sm:$0xff]
    %v1514 = vld [vmem:[#allocation9 + $0xe8] sm:$0xff]
    %v1515 = vld [vmem:[#allocation9 + $0xf0] sm:$0xff]
    %v1516 = vld [vmem:[#allocation9 + $0xf8] sm:$0xff]
    %v1517 = vld [vmem:[#allocation9 + $0x100] sm:$0xff]
    %v1518 = vld [vmem:[#allocation9 + $0x108] sm:$0xff]
    %v1519 = vld [vmem:[#allocation9 + $0x110] sm:$0xff]
    %v1520 = vld [vmem:[#allocation9 + $0x118] sm:$0xff]
    %v1521 = vld [vmem:[#allocation9 + $0x120] sm:$0xff]
    %v1522 = vld [vmem:[#allocation9 + $0x128] sm:$0xff]
    %v1523 = vld [vmem:[#allocation9 + $0x130] sm:$0xff]
    %v1524 = vld [vmem:[#allocation9 + $0x138] sm:$0xff]
    %v1525 = vld [vmem:[#allocation9 + $0x140] sm:$0xff]
    %v1526 = vld [vmem:[#allocation9 + $0x148] sm:$0xff]
    %v1527 = vld [vmem:[#allocation9 + $0x150] sm:$0xff]
    %v1528 = vld [vmem:[#allocation9 + $0x158] sm:$0xff]
    %v1529 = vld [vmem:[#allocation9 + $0x160] sm:$0xff]
    %v1530 = vld [vmem:[#allocation9 + $0x168] sm:$0xff]
    %v1531 = vld [vmem:[#allocation9 + $0x170] sm:$0xff]
    %v1532 = vld [vmem:[#allocation9 + $0x178] sm:$0xff]
    %v1533 = vld [vmem:[#allocation9 + $0x180] sm:$0xff]
    %v1534 = vld [vmem:[#allocation9 + $0x188] sm:$0xff]
    %v1535 = vld [vmem:[#allocation9 + $0x190] sm:$0xff]
    %v1536 = vld [vmem:[#allocation9 + $0x198] sm:$0xff]
    %v1537 = vld [vmem:[#allocation9 + $0x1a0] sm:$0xff]
    %v1538 = vld [vmem:[#allocation9 + $0x1a8] sm:$0xff]
    %v1539 = vld [vmem:[#allocation9 + $0x1b0] sm:$0xff]
    %v1540 = vld [vmem:[#allocation9 + $0x1b8] sm:$0xff]
    %v1541 = vld [vmem:[#allocation9 + $0x1c0] sm:$0xff]
    %v1542 = vld [vmem:[#allocation9 + $0x1c8] sm:$0xff]
    %v1543 = vld [vmem:[#allocation9 + $0x1d0] sm:$0xff]
    %v1544 = vld [vmem:[#allocation9 + $0x1d8] sm:$0xff]
    %v1545 = vld [vmem:[#allocation9 + $0x1e0] sm:$0xff]
    %v1546 = vld [vmem:[#allocation9 + $0x1e8] sm:$0xff]
    %v1547 = vld [vmem:[#allocation9 + $0x1f0] sm:$0xff]
    %v1548 = vld [vmem:[#allocation9 + $0x1f8] sm:$0xff]
    %1549 = vmatprep.subr.mxu0 %v1546
    %1550 = vmatpush1.msra.mxu0 %v1545
    %1551 = vmatprep.subr.mxu0 %v1542
    %1552 = vmatpush1.msra.mxu0 %v1541
    %1553 = vmatprep.subr.mxu0 %v1538
    %1554 = vmatpush1.msra.mxu0 %v1537
    %1555 = vmatprep.subr.mxu0 %v1534
    %1556 = vmatpush1.msra.mxu0 %v1533
    %1557 = vmatprep.subr.mxu0 %v1530
    %1558 = vmatpush1.msra.mxu0 %v1529
    %1559 = vmatprep.subr.mxu0 %v1526
    %1560 = vmatpush1.msra.mxu0 %v1525
    %1561 = vmatprep.subr.mxu0 %v1522
    %1562 = vmatpush1.msra.mxu0 %v1521
    %1563 = vmatprep.subr.mxu0 %v1518
    %1564 = vmatpush1.msra.mxu0 %v1517
    %1565 = vmatprep.subr.mxu0 %v1514
    %1566 = vmatpush1.msra.mxu0 %v1513
    %1567 = vmatprep.subr.mxu0 %v1510
    %1568 = vmatpush1.msra.mxu0 %v1509
    %1569 = vmatprep.subr.mxu0 %v1506
    %1570 = vmatpush1.msra.mxu0 %v1505
    %1571 = vmatprep.subr.mxu0 %v1502
    %1572 = vmatpush1.msra.mxu0 %v1501
    %1573 = vmatprep.subr.mxu0 %v1498
    %1574 = vmatpush1.msra.mxu0 %v1497
    %1575 = vmatprep.subr.mxu0 %v1494
    %1576 = vmatpush1.msra.mxu0 %v1493
    %1577 = vmatprep.subr.mxu0 %v1490
    %1578 = vmatpush1.msra.mxu0 %v1489
    %1579 = vmatprep.subr.mxu0 %v1486
    %1580 = vmatpush1.msra.mxu0 %v1485
    %1581 = vmatprep.subr.mxu0 0.0
    %1582 = vmatpush2.msra.mxu0 0.0
    %1583 = vmatprep.subr.mxu0 0.0
    %1584 = vmatpush2.msra.mxu0 0.0
    %1585 = vmatprep.subr.mxu0 0.0
    %1586 = vmatpush2.msra.mxu0 0.0
    %1587 = vmatprep.subr.mxu0 0.0
    %1588 = vmatpush2.msra.mxu0 0.0
    %1589 = vmatprep.subr.mxu0 0.0
    %1590 = vmatpush2.msra.mxu0 0.0
    %1591 = vmatprep.subr.mxu0 0.0
    %1592 = vmatpush2.msra.mxu0 0.0
    %1593 = vmatprep.subr.mxu0 0.0
    %1594 = vmatpush2.msra.mxu0 0.0
    %1595 = vmatprep.subr.mxu0 0.0
    %1596 = vmatpush2.msra.mxu0 0.0
    %1597 = vmatprep.subr.mxu0 0.0
    %1598 = vmatpush2.msra.mxu0 0.0
    %1599 = vmatprep.subr.mxu0 0.0
    %1600 = vmatpush2.msra.mxu0 0.0
    %1601 = vmatprep.subr.mxu0 0.0
    %1602 = vmatpush2.msra.mxu0 0.0
    %1603 = vmatprep.subr.mxu0 0.0
    %1604 = vmatpush2.msra.mxu0 0.0
    %1605 = vmatprep.subr.mxu0 0.0
    %1606 = vmatpush2.msra.mxu0 0.0
    %1607 = vmatprep.subr.mxu0 0.0
    %1608 = vmatpush2.msra.mxu0 0.0
    %1609 = vmatprep.subr.mxu0 0.0
    %1610 = vmatpush2.msra.mxu0 0.0
    %1611 = vmatprep.subr.mxu0 0.0
    %1612 = vmatpush2.msra.mxu0 0.0
    %1613 = vmatprep.mubr.f32.mxu0 0.0
    %1614 = vmatmul.mubr.f32.gmra.mxu0 %v1416
    %v1615 = vpop.f32.mrf.mxu0
    %v1616 = vadd.f32 0.0, %v1615
    %v1617 = vpop.f32.mrf.mxu0
    %v1618 = vadd.f32 0.0, %v1617
    %1619 = vdwg.mxu0
    %1620 = vmatprep.subr.mxu0 %v1548
    %1621 = vmatpush1.msra.mxu0 %v1547
    %1622 = vmatprep.subr.mxu0 %v1544
    %1623 = vmatpush1.msra.mxu0 %v1543
    %1624 = vmatprep.subr.mxu0 %v1540
    %1625 = vmatpush1.msra.mxu0 %v1539
    %1626 = vmatprep.subr.mxu0 %v1536
    %1627 = vmatpush1.msra.mxu0 %v1535
    %1628 = vmatprep.subr.mxu0 %v1532
    %1629 = vmatpush1.msra.mxu0 %v1531
    %1630 = vmatprep.subr.mxu0 %v1528
    %1631 = vmatpush1.msra.mxu0 %v1527
    %1632 = vmatprep.subr.mxu0 %v1524
    %1633 = vmatpush1.msra.mxu0 %v1523
    %1634 = vmatprep.subr.mxu0 %v1520
    %1635 = vmatpush1.msra.mxu0 %v1519
    %1636 = vmatprep.subr.mxu0 %v1516
    %1637 = vmatpush1.msra.mxu0 %v1515
    %1638 = vmatprep.subr.mxu0 %v1512
    %1639 = vmatpush1.msra.mxu0 %v1511
    %1640 = vmatprep.subr.mxu0 %v1508
    %1641 = vmatpush1.msra.mxu0 %v1507
    %1642 = vmatprep.subr.mxu0 %v1504
    %1643 = vmatpush1.msra.mxu0 %v1503
    %1644 = vmatprep.subr.mxu0 %v1500
    %1645 = vmatpush1.msra.mxu0 %v1499
    %1646 = vmatprep.subr.mxu0 %v1496
    %1647 = vmatpush1.msra.mxu0 %v1495
    %1648 = vmatprep.subr.mxu0 %v1492
    %1649 = vmatpush1.msra.mxu0 %v1491
    %1650 = vmatprep.subr.mxu0 %v1488
    %1651 = vmatpush1.msra.mxu0 %v1487
    %1652 = vmatprep.subr.mxu0 0.0
    %1653 = vmatpush2.msra.mxu0 0.0
    %1654 = vmatprep.subr.mxu0 0.0
    %1655 = vmatpush2.msra.mxu0 0.0
    %1656 = vmatprep.subr.mxu0 0.0
    %1657 = vmatpush2.msra.mxu0 0.0
    %1658 = vmatprep.subr.mxu0 0.0
    %1659 = vmatpush2.msra.mxu0 0.0
    %1660 = vmatprep.subr.mxu0 0.0
    %1661 = vmatpush2.msra.mxu0 0.0
    %1662 = vmatprep.subr.mxu0 0.0
    %1663 = vmatpush2.msra.mxu0 0.0
    %1664 = vmatprep.subr.mxu0 0.0
    %1665 = vmatpush2.msra.mxu0 0.0
    %1666 = vmatprep.subr.mxu0 0.0
    %1667 = vmatpush2.msra.mxu0 0.0
    %1668 = vmatprep.subr.mxu0 0.0
    %1669 = vmatpush2.msra.mxu0 0.0
    %1670 = vmatprep.subr.mxu0 0.0
    %1671 = vmatpush2.msra.mxu0 0.0
    %1672 = vmatprep.subr.mxu0 0.0
    %1673 = vmatpush2.msra.mxu0 0.0
    %1674 = vmatprep.subr.mxu0 0.0
    %1675 = vmatpush2.msra.mxu0 0.0
    %1676 = vmatprep.subr.mxu0 0.0
    %1677 = vmatpush2.msra.mxu0 0.0
    %1678 = vmatprep.subr.mxu0 0.0
    %1679 = vmatpush2.msra.mxu0 0.0
    %1680 = vmatprep.subr.mxu0 0.0
    %1681 = vmatpush2.msra.mxu0 0.0
    %1682 = vmatprep.subr.mxu0 0.0
    %1683 = vmatpush2.msra.mxu0 0.0
    %1684 = vmatprep.mubr.f32.mxu0 0.0
    %1685 = vmatmul.mubr.f32.gmra.mxu0 %v1416
    %v1686 = vpop.f32.mrf.mxu0
    %v1687 = vadd.f32 0.0, %v1686
    %v1688 = vpop.f32.mrf.mxu0
    %v1689 = vadd.f32 0.0, %v1688
    %1690 = vdwg.mxu0
    %1691 = vmatprep.subr.mxu0 %v1482
    %1692 = vmatpush1.msra.mxu0 %v1481
    %1693 = vmatprep.subr.mxu0 %v1478
    %1694 = vmatpush1.msra.mxu0 %v1477
    %1695 = vmatprep.subr.mxu0 %v1474
    %1696 = vmatpush1.msra.mxu0 %v1473
    %1697 = vmatprep.subr.mxu0 %v1470
    %1698 = vmatpush1.msra.mxu0 %v1469
    %1699 = vmatprep.subr.mxu0 %v1466
    %1700 = vmatpush1.msra.mxu0 %v1465
    %1701 = vmatprep.subr.mxu0 %v1462
    %1702 = vmatpush1.msra.mxu0 %v1461
    %1703 = vmatprep.subr.mxu0 %v1458
    %1704 = vmatpush1.msra.mxu0 %v1457
    %1705 = vmatprep.subr.mxu0 %v1454
    %1706 = vmatpush1.msra.mxu0 %v1453
    %1707 = vmatprep.subr.mxu0 %v1450
    %1708 = vmatpush1.msra.mxu0 %v1449
    %1709 = vmatprep.subr.mxu0 %v1446
    %1710 = vmatpush1.msra.mxu0 %v1445
    %1711 = vmatprep.subr.mxu0 %v1442
    %1712 = vmatpush1.msra.mxu0 %v1441
    %1713 = vmatprep.subr.mxu0 %v1438
    %1714 = vmatpush1.msra.mxu0 %v1437
    %1715 = vmatprep.subr.mxu0 %v1434
    %1716 = vmatpush1.msra.mxu0 %v1433
    %1717 = vmatprep.subr.mxu0 %v1430
    %1718 = vmatpush1.msra.mxu0 %v1429
    %1719 = vmatprep.subr.mxu0 %v1426
    %1720 = vmatpush1.msra.mxu0 %v1425
    %1721 = vmatprep.subr.mxu0 %v1422
    %1722 = vmatpush1.msra.mxu0 %v1421
    %1723 = vmatprep.subr.mxu0 0.0
    %1724 = vmatpush2.msra.mxu0 0.0
    %1725 = vmatprep.subr.mxu0 0.0
    %1726 = vmatpush2.msra.mxu0 0.0
    %1727 = vmatprep.subr.mxu0 0.0
    %1728 = vmatpush2.msra.mxu0 0.0
    %1729 = vmatprep.subr.mxu0 0.0
    %1730 = vmatpush2.msra.mxu0 0.0
    %1731 = vmatprep.subr.mxu0 0.0
    %1732 = vmatpush2.msra.mxu0 0.0
    %1733 = vmatprep.subr.mxu0 0.0
    %1734 = vmatpush2.msra.mxu0 0.0
    %1735 = vmatprep.subr.mxu0 0.0
    %1736 = vmatpush2.msra.mxu0 0.0
    %1737 = vmatprep.subr.mxu0 0.0
    %1738 = vmatpush2.msra.mxu0 0.0
    %1739 = vmatprep.subr.mxu0 0.0
    %1740 = vmatpush2.msra.mxu0 0.0
    %1741 = vmatprep.subr.mxu0 0.0
    %1742 = vmatpush2.msra.mxu0 0.0
    %1743 = vmatprep.subr.mxu0 0.0
    %1744 = vmatpush2.msra.mxu0 0.0
    %1745 = vmatprep.subr.mxu0 0.0
    %1746 = vmatpush2.msra.mxu0 0.0
    %1747 = vmatprep.subr.mxu0 0.0
    %1748 = vmatpush2.msra.mxu0 0.0
    %1749 = vmatprep.subr.mxu0 0.0
    %1750 = vmatpush2.msra.mxu0 0.0
    %1751 = vmatprep.subr.mxu0 0.0
    %1752 = vmatpush2.msra.mxu0 0.0
    %1753 = vmatprep.subr.mxu0 0.0
    %1754 = vmatpush2.msra.mxu0 0.0
    %1755 = vmatprep.mubr.f32.mxu0 0.0
    %1756 = vmatmul.mubr.f32.gmra.mxu0 %v1420
    %v1757 = vpop.f32.mrf.mxu0
    %v1758 = vadd.f32 %v1616, %v1757
    %v1759 = vpop.f32.mrf.mxu0
    %v1760 = vadd.f32 %v1618, %v1759
    %1761 = vdwg.mxu0
    %1762 = vmatprep.subr.mxu0 %v1484
    %1763 = vmatpush1.msra.mxu0 %v1483
    %1764 = vmatprep.subr.mxu0 %v1480
    %1765 = vmatpush1.msra.mxu0 %v1479
    %1766 = vmatprep.subr.mxu0 %v1476
    %1767 = vmatpush1.msra.mxu0 %v1475
    %1768 = vmatprep.subr.mxu0 %v1472
    %1769 = vmatpush1.msra.mxu0 %v1471
    %1770 = vmatprep.subr.mxu0 %v1468
    %1771 = vmatpush1.msra.mxu0 %v1467
    %1772 = vmatprep.subr.mxu0 %v1464
    %1773 = vmatpush1.msra.mxu0 %v1463
    %1774 = vmatprep.subr.mxu0 %v1460
    %1775 = vmatpush1.msra.mxu0 %v1459
    %1776 = vmatprep.subr.mxu0 %v1456
    %1777 = vmatpush1.msra.mxu0 %v1455
    %1778 = vmatprep.subr.mxu0 %v1452
    %1779 = vmatpush1.msra.mxu0 %v1451
    %1780 = vmatprep.subr.mxu0 %v1448
    %1781 = vmatpush1.msra.mxu0 %v1447
    %1782 = vmatprep.subr.mxu0 %v1444
    %1783 = vmatpush1.msra.mxu0 %v1443
    %1784 = vmatprep.subr.mxu0 %v1440
    %1785 = vmatpush1.msra.mxu0 %v1439
    %1786 = vmatprep.subr.mxu0 %v1436
    %1787 = vmatpush1.msra.mxu0 %v1435
    %1788 = vmatprep.subr.mxu0 %v1432
    %1789 = vmatpush1.msra.mxu0 %v1431
    %1790 = vmatprep.subr.mxu0 %v1428
    %1791 = vmatpush1.msra.mxu0 %v1427
    %1792 = vmatprep.subr.mxu0 %v1424
    %1793 = vmatpush1.msra.mxu0 %v1423
    %1794 = vmatprep.subr.mxu0 0.0
    %1795 = vmatpush2.msra.mxu0 0.0
    %1796 = vmatprep.subr.mxu0 0.0
    %1797 = vmatpush2.msra.mxu0 0.0
    %1798 = vmatprep.subr.mxu0 0.0
    %1799 = vmatpush2.msra.mxu0 0.0
    %1800 = vmatprep.subr.mxu0 0.0
    %1801 = vmatpush2.msra.mxu0 0.0
    %1802 = vmatprep.subr.mxu0 0.0
    %1803 = vmatpush2.msra.mxu0 0.0
    %1804 = vmatprep.subr.mxu0 0.0
    %1805 = vmatpush2.msra.mxu0 0.0
    %1806 = vmatprep.subr.mxu0 0.0
    %1807 = vmatpush2.msra.mxu0 0.0
    %1808 = vmatprep.subr.mxu0 0.0
    %1809 = vmatpush2.msra.mxu0 0.0
    %1810 = vmatprep.subr.mxu0 0.0
    %1811 = vmatpush2.msra.mxu0 0.0
    %1812 = vmatprep.subr.mxu0 0.0
    %1813 = vmatpush2.msra.mxu0 0.0
    %1814 = vmatprep.subr.mxu0 0.0
    %1815 = vmatpush2.msra.mxu0 0.0
    %1816 = vmatprep.subr.mxu0 0.0
    %1817 = vmatpush2.msra.mxu0 0.0
    %1818 = vmatprep.subr.mxu0 0.0
    %1819 = vmatpush2.msra.mxu0 0.0
    %1820 = vmatprep.subr.mxu0 0.0
    %1821 = vmatpush2.msra.mxu0 0.0
    %1822 = vmatprep.subr.mxu0 0.0
    %1823 = vmatpush2.msra.mxu0 0.0
    %1824 = vmatprep.subr.mxu0 0.0
    %1825 = vmatpush2.msra.mxu0 0.0
    %1826 = vmatprep.mubr.f32.mxu0 0.0
    %1827 = vmatmul.mubr.f32.gmra.mxu0 %v1420
    %v1828 = vpop.f32.mrf.mxu0
    %v1829 = vadd.f32 %v1687, %v1828
    %v1830 = vpop.f32.mrf.mxu0
    %v1831 = vadd.f32 %v1689, %v1830
    %1832 = vdwg.mxu0
    %v1833 = vadd.f32 %v1758, %v485
    %v1834 = vadd.f32 %v1760, %v489
    %v1835 = vadd.f32 %v1829, %v493
    %v1836 = vadd.f32 %v1831, %v497
    %v1837 = vxor.u32 %v1833, 2147483648
    %v1838 = vmul.f32 %v1837, 1.442695
    %v1839 = vpow.pop %v1838
    %v1840 = vadd.f32 %v1839, 1.0
    %v1841 = vrcp.pop %v1840
    %v1842 = vmul.f32 1.0, %v1841
    %v1843 = vxor.u32 %v1834, 2147483648
    %v1844 = vmul.f32 %v1843, 1.442695
    %v1845 = vpow.pop %v1844
    %v1846 = vadd.f32 %v1845, 1.0
    %v1847 = vrcp.pop %v1846
    %v1848 = vmul.f32 1.0, %v1847
    %v1849 = vtanh.pop %v1835
    %v1850 = vxor.u32 %v1836, 2147483648
    %v1851 = vmul.f32 %v1850, 1.442695
    %v1852 = vpow.pop %v1851
    %v1853 = vadd.f32 %v1852, 1.0
    %v1854 = vrcp.pop %v1853
    %v1855 = vmul.f32 1.0, %v1854
    %v1856 = vmul.f32 %v1848, %v1414
    %v1857 = vmul.f32 %v1842, %v1849
    %v1858 = vadd.f32 %v1856, %v1857
    %v1859 = vtanh.pop %v1858
    %v1860 = vmul.f32 %v1855, %v1859
    %s1861 = scalar_lea.vmem [#allocation10], 24
    %1862 = vst [vmem:[%s1861] sm:$0xff] %v1860
    %s1863 = scalar_lea.vmem [#allocation4], 32
    %v1864 = vld [vmem:[%s1863] sm:$0xff]
    %v1865 = vld [vmem:[#allocation7] sm:$0xff]
    %v1866 = vld [vmem:[#allocation7 + $0x8] sm:$0xff]
    %v1867 = vld [vmem:[#allocation7 + $0x10] sm:$0xff]
    %v1868 = vld [vmem:[#allocation7 + $0x18] sm:$0xff]
    %v1869 = vld [vmem:[#allocation7 + $0x20] sm:$0xff]
    %v1870 = vld [vmem:[#allocation7 + $0x28] sm:$0xff]
    %v1871 = vld [vmem:[#allocation7 + $0x30] sm:$0xff]
    %v1872 = vld [vmem:[#allocation7 + $0x38] sm:$0xff]
    %v1873 = vld [vmem:[#allocation7 + $0x40] sm:$0xff]
    %v1874 = vld [vmem:[#allocation7 + $0x48] sm:$0xff]
    %v1875 = vld [vmem:[#allocation7 + $0x50] sm:$0xff]
    %v1876 = vld [vmem:[#allocation7 + $0x58] sm:$0xff]
    %v1877 = vld [vmem:[#allocation7 + $0x60] sm:$0xff]
    %v1878 = vld [vmem:[#allocation7 + $0x68] sm:$0xff]
    %v1879 = vld [vmem:[#allocation7 + $0x70] sm:$0xff]
    %v1880 = vld [vmem:[#allocation7 + $0x78] sm:$0xff]
    %v1881 = vld [vmem:[#allocation7 + $0x80] sm:$0xff]
    %v1882 = vld [vmem:[#allocation7 + $0x88] sm:$0xff]
    %v1883 = vld [vmem:[#allocation7 + $0x90] sm:$0xff]
    %v1884 = vld [vmem:[#allocation7 + $0x98] sm:$0xff]
    %v1885 = vld [vmem:[#allocation7 + $0xa0] sm:$0xff]
    %v1886 = vld [vmem:[#allocation7 + $0xa8] sm:$0xff]
    %v1887 = vld [vmem:[#allocation7 + $0xb0] sm:$0xff]
    %v1888 = vld [vmem:[#allocation7 + $0xb8] sm:$0xff]
    %v1889 = vld [vmem:[#allocation7 + $0xc0] sm:$0xff]
    %v1890 = vld [vmem:[#allocation7 + $0xc8] sm:$0xff]
    %v1891 = vld [vmem:[#allocation7 + $0xd0] sm:$0xff]
    %v1892 = vld [vmem:[#allocation7 + $0xd8] sm:$0xff]
    %v1893 = vld [vmem:[#allocation7 + $0xe0] sm:$0xff]
    %v1894 = vld [vmem:[#allocation7 + $0xe8] sm:$0xff]
    %v1895 = vld [vmem:[#allocation7 + $0xf0] sm:$0xff]
    %v1896 = vld [vmem:[#allocation7 + $0xf8] sm:$0xff]
    %v1897 = vld [vmem:[#allocation7 + $0x100] sm:$0xff]
    %v1898 = vld [vmem:[#allocation7 + $0x108] sm:$0xff]
    %v1899 = vld [vmem:[#allocation7 + $0x110] sm:$0xff]
    %v1900 = vld [vmem:[#allocation7 + $0x118] sm:$0xff]
    %v1901 = vld [vmem:[#allocation7 + $0x120] sm:$0xff]
    %v1902 = vld [vmem:[#allocation7 + $0x128] sm:$0xff]
    %v1903 = vld [vmem:[#allocation7 + $0x130] sm:$0xff]
    %v1904 = vld [vmem:[#allocation7 + $0x138] sm:$0xff]
    %v1905 = vld [vmem:[#allocation7 + $0x140] sm:$0xff]
    %v1906 = vld [vmem:[#allocation7 + $0x148] sm:$0xff]
    %v1907 = vld [vmem:[#allocation7 + $0x150] sm:$0xff]
    %v1908 = vld [vmem:[#allocation7 + $0x158] sm:$0xff]
    %v1909 = vld [vmem:[#allocation7 + $0x160] sm:$0xff]
    %v1910 = vld [vmem:[#allocation7 + $0x168] sm:$0xff]
    %v1911 = vld [vmem:[#allocation7 + $0x170] sm:$0xff]
    %v1912 = vld [vmem:[#allocation7 + $0x178] sm:$0xff]
    %v1913 = vld [vmem:[#allocation7 + $0x180] sm:$0xff]
    %v1914 = vld [vmem:[#allocation7 + $0x188] sm:$0xff]
    %v1915 = vld [vmem:[#allocation7 + $0x190] sm:$0xff]
    %v1916 = vld [vmem:[#allocation7 + $0x198] sm:$0xff]
    %v1917 = vld [vmem:[#allocation7 + $0x1a0] sm:$0xff]
    %v1918 = vld [vmem:[#allocation7 + $0x1a8] sm:$0xff]
    %v1919 = vld [vmem:[#allocation7 + $0x1b0] sm:$0xff]
    %v1920 = vld [vmem:[#allocation7 + $0x1b8] sm:$0xff]
    %v1921 = vld [vmem:[#allocation7 + $0x1c0] sm:$0xff]
    %v1922 = vld [vmem:[#allocation7 + $0x1c8] sm:$0xff]
    %v1923 = vld [vmem:[#allocation7 + $0x1d0] sm:$0xff]
    %v1924 = vld [vmem:[#allocation7 + $0x1d8] sm:$0xff]
    %v1925 = vld [vmem:[#allocation7 + $0x1e0] sm:$0xff]
    %v1926 = vld [vmem:[#allocation7 + $0x1e8] sm:$0xff]
    %v1927 = vld [vmem:[#allocation7 + $0x1f0] sm:$0xff]
    %v1928 = vld [vmem:[#allocation7 + $0x1f8] sm:$0xff]
    %v1929 = vld [vmem:[#allocation9] sm:$0xff]
    %v1930 = vld [vmem:[#allocation9 + $0x8] sm:$0xff]
    %v1931 = vld [vmem:[#allocation9 + $0x10] sm:$0xff]
    %v1932 = vld [vmem:[#allocation9 + $0x18] sm:$0xff]
    %v1933 = vld [vmem:[#allocation9 + $0x20] sm:$0xff]
    %v1934 = vld [vmem:[#allocation9 + $0x28] sm:$0xff]
    %v1935 = vld [vmem:[#allocation9 + $0x30] sm:$0xff]
    %v1936 = vld [vmem:[#allocation9 + $0x38] sm:$0xff]
    %v1937 = vld [vmem:[#allocation9 + $0x40] sm:$0xff]
    %v1938 = vld [vmem:[#allocation9 + $0x48] sm:$0xff]
    %v1939 = vld [vmem:[#allocation9 + $0x50] sm:$0xff]
    %v1940 = vld [vmem:[#allocation9 + $0x58] sm:$0xff]
    %v1941 = vld [vmem:[#allocation9 + $0x60] sm:$0xff]
    %v1942 = vld [vmem:[#allocation9 + $0x68] sm:$0xff]
    %v1943 = vld [vmem:[#allocation9 + $0x70] sm:$0xff]
    %v1944 = vld [vmem:[#allocation9 + $0x78] sm:$0xff]
    %v1945 = vld [vmem:[#allocation9 + $0x80] sm:$0xff]
    %v1946 = vld [vmem:[#allocation9 + $0x88] sm:$0xff]
    %v1947 = vld [vmem:[#allocation9 + $0x90] sm:$0xff]
    %v1948 = vld [vmem:[#allocation9 + $0x98] sm:$0xff]
    %v1949 = vld [vmem:[#allocation9 + $0xa0] sm:$0xff]
    %v1950 = vld [vmem:[#allocation9 + $0xa8] sm:$0xff]
    %v1951 = vld [vmem:[#allocation9 + $0xb0] sm:$0xff]
    %v1952 = vld [vmem:[#allocation9 + $0xb8] sm:$0xff]
    %v1953 = vld [vmem:[#allocation9 + $0xc0] sm:$0xff]
    %v1954 = vld [vmem:[#allocation9 + $0xc8] sm:$0xff]
    %v1955 = vld [vmem:[#allocation9 + $0xd0] sm:$0xff]
    %v1956 = vld [vmem:[#allocation9 + $0xd8] sm:$0xff]
    %v1957 = vld [vmem:[#allocation9 + $0xe0] sm:$0xff]
    %v1958 = vld [vmem:[#allocation9 + $0xe8] sm:$0xff]
    %v1959 = vld [vmem:[#allocation9 + $0xf0] sm:$0xff]
    %v1960 = vld [vmem:[#allocation9 + $0xf8] sm:$0xff]
    %v1961 = vld [vmem:[#allocation9 + $0x100] sm:$0xff]
    %v1962 = vld [vmem:[#allocation9 + $0x108] sm:$0xff]
    %v1963 = vld [vmem:[#allocation9 + $0x110] sm:$0xff]
    %v1964 = vld [vmem:[#allocation9 + $0x118] sm:$0xff]
    %v1965 = vld [vmem:[#allocation9 + $0x120] sm:$0xff]
    %v1966 = vld [vmem:[#allocation9 + $0x128] sm:$0xff]
    %v1967 = vld [vmem:[#allocation9 + $0x130] sm:$0xff]
    %v1968 = vld [vmem:[#allocation9 + $0x138] sm:$0xff]
    %v1969 = vld [vmem:[#allocation9 + $0x140] sm:$0xff]
    %v1970 = vld [vmem:[#allocation9 + $0x148] sm:$0xff]
    %v1971 = vld [vmem:[#allocation9 + $0x150] sm:$0xff]
    %v1972 = vld [vmem:[#allocation9 + $0x158] sm:$0xff]
    %v1973 = vld [vmem:[#allocation9 + $0x160] sm:$0xff]
    %v1974 = vld [vmem:[#allocation9 + $0x168] sm:$0xff]
    %v1975 = vld [vmem:[#allocation9 + $0x170] sm:$0xff]
    %v1976 = vld [vmem:[#allocation9 + $0x178] sm:$0xff]
    %v1977 = vld [vmem:[#allocation9 + $0x180] sm:$0xff]
    %v1978 = vld [vmem:[#allocation9 + $0x188] sm:$0xff]
    %v1979 = vld [vmem:[#allocation9 + $0x190] sm:$0xff]
    %v1980 = vld [vmem:[#allocation9 + $0x198] sm:$0xff]
    %v1981 = vld [vmem:[#allocation9 + $0x1a0] sm:$0xff]
    %v1982 = vld [vmem:[#allocation9 + $0x1a8] sm:$0xff]
    %v1983 = vld [vmem:[#allocation9 + $0x1b0] sm:$0xff]
    %v1984 = vld [vmem:[#allocation9 + $0x1b8] sm:$0xff]
    %v1985 = vld [vmem:[#allocation9 + $0x1c0] sm:$0xff]
    %v1986 = vld [vmem:[#allocation9 + $0x1c8] sm:$0xff]
    %v1987 = vld [vmem:[#allocation9 + $0x1d0] sm:$0xff]
    %v1988 = vld [vmem:[#allocation9 + $0x1d8] sm:$0xff]
    %v1989 = vld [vmem:[#allocation9 + $0x1e0] sm:$0xff]
    %v1990 = vld [vmem:[#allocation9 + $0x1e8] sm:$0xff]
    %v1991 = vld [vmem:[#allocation9 + $0x1f0] sm:$0xff]
    %v1992 = vld [vmem:[#allocation9 + $0x1f8] sm:$0xff]
    %1993 = vmatprep.subr.mxu0 %v1990
    %1994 = vmatpush1.msra.mxu0 %v1989
    %1995 = vmatprep.subr.mxu0 %v1986
    %1996 = vmatpush1.msra.mxu0 %v1985
    %1997 = vmatprep.subr.mxu0 %v1982
    %1998 = vmatpush1.msra.mxu0 %v1981
    %1999 = vmatprep.subr.mxu0 %v1978
    %2000 = vmatpush1.msra.mxu0 %v1977
    %2001 = vmatprep.subr.mxu0 %v1974
    %2002 = vmatpush1.msra.mxu0 %v1973
    %2003 = vmatprep.subr.mxu0 %v1970
    %2004 = vmatpush1.msra.mxu0 %v1969
    %2005 = vmatprep.subr.mxu0 %v1966
    %2006 = vmatpush1.msra.mxu0 %v1965
    %2007 = vmatprep.subr.mxu0 %v1962
    %2008 = vmatpush1.msra.mxu0 %v1961
    %2009 = vmatprep.subr.mxu0 %v1958
    %2010 = vmatpush1.msra.mxu0 %v1957
    %2011 = vmatprep.subr.mxu0 %v1954
    %2012 = vmatpush1.msra.mxu0 %v1953
    %2013 = vmatprep.subr.mxu0 %v1950
    %2014 = vmatpush1.msra.mxu0 %v1949
    %2015 = vmatprep.subr.mxu0 %v1946
    %2016 = vmatpush1.msra.mxu0 %v1945
    %2017 = vmatprep.subr.mxu0 %v1942
    %2018 = vmatpush1.msra.mxu0 %v1941
    %2019 = vmatprep.subr.mxu0 %v1938
    %2020 = vmatpush1.msra.mxu0 %v1937
    %2021 = vmatprep.subr.mxu0 %v1934
    %2022 = vmatpush1.msra.mxu0 %v1933
    %2023 = vmatprep.subr.mxu0 %v1930
    %2024 = vmatpush1.msra.mxu0 %v1929
    %2025 = vmatprep.subr.mxu0 0.0
    %2026 = vmatpush2.msra.mxu0 0.0
    %2027 = vmatprep.subr.mxu0 0.0
    %2028 = vmatpush2.msra.mxu0 0.0
    %2029 = vmatprep.subr.mxu0 0.0
    %2030 = vmatpush2.msra.mxu0 0.0
    %2031 = vmatprep.subr.mxu0 0.0
    %2032 = vmatpush2.msra.mxu0 0.0
    %2033 = vmatprep.subr.mxu0 0.0
    %2034 = vmatpush2.msra.mxu0 0.0
    %2035 = vmatprep.subr.mxu0 0.0
    %2036 = vmatpush2.msra.mxu0 0.0
    %2037 = vmatprep.subr.mxu0 0.0
    %2038 = vmatpush2.msra.mxu0 0.0
    %2039 = vmatprep.subr.mxu0 0.0
    %2040 = vmatpush2.msra.mxu0 0.0
    %2041 = vmatprep.subr.mxu0 0.0
    %2042 = vmatpush2.msra.mxu0 0.0
    %2043 = vmatprep.subr.mxu0 0.0
    %2044 = vmatpush2.msra.mxu0 0.0
    %2045 = vmatprep.subr.mxu0 0.0
    %2046 = vmatpush2.msra.mxu0 0.0
    %2047 = vmatprep.subr.mxu0 0.0
    %2048 = vmatpush2.msra.mxu0 0.0
    %2049 = vmatprep.subr.mxu0 0.0
    %2050 = vmatpush2.msra.mxu0 0.0
    %2051 = vmatprep.subr.mxu0 0.0
    %2052 = vmatpush2.msra.mxu0 0.0
    %2053 = vmatprep.subr.mxu0 0.0
    %2054 = vmatpush2.msra.mxu0 0.0
    %2055 = vmatprep.subr.mxu0 0.0
    %2056 = vmatpush2.msra.mxu0 0.0
    %2057 = vmatprep.mubr.f32.mxu0 0.0
    %2058 = vmatmul.mubr.f32.gmra.mxu0 %v1860
    %v2059 = vpop.f32.mrf.mxu0
    %v2060 = vadd.f32 0.0, %v2059
    %v2061 = vpop.f32.mrf.mxu0
    %v2062 = vadd.f32 0.0, %v2061
    %2063 = vdwg.mxu0
    %2064 = vmatprep.subr.mxu0 %v1992
    %2065 = vmatpush1.msra.mxu0 %v1991
    %2066 = vmatprep.subr.mxu0 %v1988
    %2067 = vmatpush1.msra.mxu0 %v1987
    %2068 = vmatprep.subr.mxu0 %v1984
    %2069 = vmatpush1.msra.mxu0 %v1983
    %2070 = vmatprep.subr.mxu0 %v1980
    %2071 = vmatpush1.msra.mxu0 %v1979
    %2072 = vmatprep.subr.mxu0 %v1976
    %2073 = vmatpush1.msra.mxu0 %v1975
    %2074 = vmatprep.subr.mxu0 %v1972
    %2075 = vmatpush1.msra.mxu0 %v1971
    %2076 = vmatprep.subr.mxu0 %v1968
    %2077 = vmatpush1.msra.mxu0 %v1967
    %2078 = vmatprep.subr.mxu0 %v1964
    %2079 = vmatpush1.msra.mxu0 %v1963
    %2080 = vmatprep.subr.mxu0 %v1960
    %2081 = vmatpush1.msra.mxu0 %v1959
    %2082 = vmatprep.subr.mxu0 %v1956
    %2083 = vmatpush1.msra.mxu0 %v1955
    %2084 = vmatprep.subr.mxu0 %v1952
    %2085 = vmatpush1.msra.mxu0 %v1951
    %2086 = vmatprep.subr.mxu0 %v1948
    %2087 = vmatpush1.msra.mxu0 %v1947
    %2088 = vmatprep.subr.mxu0 %v1944
    %2089 = vmatpush1.msra.mxu0 %v1943
    %2090 = vmatprep.subr.mxu0 %v1940
    %2091 = vmatpush1.msra.mxu0 %v1939
    %2092 = vmatprep.subr.mxu0 %v1936
    %2093 = vmatpush1.msra.mxu0 %v1935
    %2094 = vmatprep.subr.mxu0 %v1932
    %2095 = vmatpush1.msra.mxu0 %v1931
    %2096 = vmatprep.subr.mxu0 0.0
    %2097 = vmatpush2.msra.mxu0 0.0
    %2098 = vmatprep.subr.mxu0 0.0
    %2099 = vmatpush2.msra.mxu0 0.0
    %2100 = vmatprep.subr.mxu0 0.0
    %2101 = vmatpush2.msra.mxu0 0.0
    %2102 = vmatprep.subr.mxu0 0.0
    %2103 = vmatpush2.msra.mxu0 0.0
    %2104 = vmatprep.subr.mxu0 0.0
    %2105 = vmatpush2.msra.mxu0 0.0
    %2106 = vmatprep.subr.mxu0 0.0
    %2107 = vmatpush2.msra.mxu0 0.0
    %2108 = vmatprep.subr.mxu0 0.0
    %2109 = vmatpush2.msra.mxu0 0.0
    %2110 = vmatprep.subr.mxu0 0.0
    %2111 = vmatpush2.msra.mxu0 0.0
    %2112 = vmatprep.subr.mxu0 0.0
    %2113 = vmatpush2.msra.mxu0 0.0
    %2114 = vmatprep.subr.mxu0 0.0
    %2115 = vmatpush2.msra.mxu0 0.0
    %2116 = vmatprep.subr.mxu0 0.0
    %2117 = vmatpush2.msra.mxu0 0.0
    %2118 = vmatprep.subr.mxu0 0.0
    %2119 = vmatpush2.msra.mxu0 0.0
    %2120 = vmatprep.subr.mxu0 0.0
    %2121 = vmatpush2.msra.mxu0 0.0
    %2122 = vmatprep.subr.mxu0 0.0
    %2123 = vmatpush2.msra.mxu0 0.0
    %2124 = vmatprep.subr.mxu0 0.0
    %2125 = vmatpush2.msra.mxu0 0.0
    %2126 = vmatprep.subr.mxu0 0.0
    %2127 = vmatpush2.msra.mxu0 0.0
    %2128 = vmatprep.mubr.f32.mxu0 0.0
    %2129 = vmatmul.mubr.f32.gmra.mxu0 %v1860
    %v2130 = vpop.f32.mrf.mxu0
    %v2131 = vadd.f32 0.0, %v2130
    %v2132 = vpop.f32.mrf.mxu0
    %v2133 = vadd.f32 0.0, %v2132
    %2134 = vdwg.mxu0
    %2135 = vmatprep.subr.mxu0 %v1926
    %2136 = vmatpush1.msra.mxu0 %v1925
    %2137 = vmatprep.subr.mxu0 %v1922
    %2138 = vmatpush1.msra.mxu0 %v1921
    %2139 = vmatprep.subr.mxu0 %v1918
    %2140 = vmatpush1.msra.mxu0 %v1917
    %2141 = vmatprep.subr.mxu0 %v1914
    %2142 = vmatpush1.msra.mxu0 %v1913
    %2143 = vmatprep.subr.mxu0 %v1910
    %2144 = vmatpush1.msra.mxu0 %v1909
    %2145 = vmatprep.subr.mxu0 %v1906
    %2146 = vmatpush1.msra.mxu0 %v1905
    %2147 = vmatprep.subr.mxu0 %v1902
    %2148 = vmatpush1.msra.mxu0 %v1901
    %2149 = vmatprep.subr.mxu0 %v1898
    %2150 = vmatpush1.msra.mxu0 %v1897
    %2151 = vmatprep.subr.mxu0 %v1894
    %2152 = vmatpush1.msra.mxu0 %v1893
    %2153 = vmatprep.subr.mxu0 %v1890
    %2154 = vmatpush1.msra.mxu0 %v1889
    %2155 = vmatprep.subr.mxu0 %v1886
    %2156 = vmatpush1.msra.mxu0 %v1885
    %2157 = vmatprep.subr.mxu0 %v1882
    %2158 = vmatpush1.msra.mxu0 %v1881
    %2159 = vmatprep.subr.mxu0 %v1878
    %2160 = vmatpush1.msra.mxu0 %v1877
    %2161 = vmatprep.subr.mxu0 %v1874
    %2162 = vmatpush1.msra.mxu0 %v1873
    %2163 = vmatprep.subr.mxu0 %v1870
    %2164 = vmatpush1.msra.mxu0 %v1869
    %2165 = vmatprep.subr.mxu0 %v1866
    %2166 = vmatpush1.msra.mxu0 %v1865
    %2167 = vmatprep.subr.mxu0 0.0
    %2168 = vmatpush2.msra.mxu0 0.0
    %2169 = vmatprep.subr.mxu0 0.0
    %2170 = vmatpush2.msra.mxu0 0.0
    %2171 = vmatprep.subr.mxu0 0.0
    %2172 = vmatpush2.msra.mxu0 0.0
    %2173 = vmatprep.subr.mxu0 0.0
    %2174 = vmatpush2.msra.mxu0 0.0
    %2175 = vmatprep.subr.mxu0 0.0
    %2176 = vmatpush2.msra.mxu0 0.0
    %2177 = vmatprep.subr.mxu0 0.0
    %2178 = vmatpush2.msra.mxu0 0.0
    %2179 = vmatprep.subr.mxu0 0.0
    %2180 = vmatpush2.msra.mxu0 0.0
    %2181 = vmatprep.subr.mxu0 0.0
    %2182 = vmatpush2.msra.mxu0 0.0
    %2183 = vmatprep.subr.mxu0 0.0
    %2184 = vmatpush2.msra.mxu0 0.0
    %2185 = vmatprep.subr.mxu0 0.0
    %2186 = vmatpush2.msra.mxu0 0.0
    %2187 = vmatprep.subr.mxu0 0.0
    %2188 = vmatpush2.msra.mxu0 0.0
    %2189 = vmatprep.subr.mxu0 0.0
    %2190 = vmatpush2.msra.mxu0 0.0
    %2191 = vmatprep.subr.mxu0 0.0
    %2192 = vmatpush2.msra.mxu0 0.0
    %2193 = vmatprep.subr.mxu0 0.0
    %2194 = vmatpush2.msra.mxu0 0.0
    %2195 = vmatprep.subr.mxu0 0.0
    %2196 = vmatpush2.msra.mxu0 0.0
    %2197 = vmatprep.subr.mxu0 0.0
    %2198 = vmatpush2.msra.mxu0 0.0
    %2199 = vmatprep.mubr.f32.mxu0 0.0
    %2200 = vmatmul.mubr.f32.gmra.mxu0 %v1864
    %v2201 = vpop.f32.mrf.mxu0
    %v2202 = vadd.f32 %v2060, %v2201
    %v2203 = vpop.f32.mrf.mxu0
    %v2204 = vadd.f32 %v2062, %v2203
    %2205 = vdwg.mxu0
    %2206 = vmatprep.subr.mxu0 %v1928
    %2207 = vmatpush1.msra.mxu0 %v1927
    %2208 = vmatprep.subr.mxu0 %v1924
    %2209 = vmatpush1.msra.mxu0 %v1923
    %2210 = vmatprep.subr.mxu0 %v1920
    %2211 = vmatpush1.msra.mxu0 %v1919
    %2212 = vmatprep.subr.mxu0 %v1916
    %2213 = vmatpush1.msra.mxu0 %v1915
    %2214 = vmatprep.subr.mxu0 %v1912
    %2215 = vmatpush1.msra.mxu0 %v1911
    %2216 = vmatprep.subr.mxu0 %v1908
    %2217 = vmatpush1.msra.mxu0 %v1907
    %2218 = vmatprep.subr.mxu0 %v1904
    %2219 = vmatpush1.msra.mxu0 %v1903
    %2220 = vmatprep.subr.mxu0 %v1900
    %2221 = vmatpush1.msra.mxu0 %v1899
    %2222 = vmatprep.subr.mxu0 %v1896
    %2223 = vmatpush1.msra.mxu0 %v1895
    %2224 = vmatprep.subr.mxu0 %v1892
    %2225 = vmatpush1.msra.mxu0 %v1891
    %2226 = vmatprep.subr.mxu0 %v1888
    %2227 = vmatpush1.msra.mxu0 %v1887
    %2228 = vmatprep.subr.mxu0 %v1884
    %2229 = vmatpush1.msra.mxu0 %v1883
    %2230 = vmatprep.subr.mxu0 %v1880
    %2231 = vmatpush1.msra.mxu0 %v1879
    %2232 = vmatprep.subr.mxu0 %v1876
    %2233 = vmatpush1.msra.mxu0 %v1875
    %2234 = vmatprep.subr.mxu0 %v1872
    %2235 = vmatpush1.msra.mxu0 %v1871
    %2236 = vmatprep.subr.mxu0 %v1868
    %2237 = vmatpush1.msra.mxu0 %v1867
    %2238 = vmatprep.subr.mxu0 0.0
    %2239 = vmatpush2.msra.mxu0 0.0
    %2240 = vmatprep.subr.mxu0 0.0
    %2241 = vmatpush2.msra.mxu0 0.0
    %2242 = vmatprep.subr.mxu0 0.0
    %2243 = vmatpush2.msra.mxu0 0.0
    %2244 = vmatprep.subr.mxu0 0.0
    %2245 = vmatpush2.msra.mxu0 0.0
    %2246 = vmatprep.subr.mxu0 0.0
    %2247 = vmatpush2.msra.mxu0 0.0
    %2248 = vmatprep.subr.mxu0 0.0
    %2249 = vmatpush2.msra.mxu0 0.0
    %2250 = vmatprep.subr.mxu0 0.0
    %2251 = vmatpush2.msra.mxu0 0.0
    %2252 = vmatprep.subr.mxu0 0.0
    %2253 = vmatpush2.msra.mxu0 0.0
    %2254 = vmatprep.subr.mxu0 0.0
    %2255 = vmatpush2.msra.mxu0 0.0
    %2256 = vmatprep.subr.mxu0 0.0
    %2257 = vmatpush2.msra.mxu0 0.0
    %2258 = vmatprep.subr.mxu0 0.0
    %2259 = vmatpush2.msra.mxu0 0.0
    %2260 = vmatprep.subr.mxu0 0.0
    %2261 = vmatpush2.msra.mxu0 0.0
    %2262 = vmatprep.subr.mxu0 0.0
    %2263 = vmatpush2.msra.mxu0 0.0
    %2264 = vmatprep.subr.mxu0 0.0
    %2265 = vmatpush2.msra.mxu0 0.0
    %2266 = vmatprep.subr.mxu0 0.0
    %2267 = vmatpush2.msra.mxu0 0.0
    %2268 = vmatprep.subr.mxu0 0.0
    %2269 = vmatpush2.msra.mxu0 0.0
    %2270 = vmatprep.mubr.f32.mxu0 0.0
    %2271 = vmatmul.mubr.f32.gmra.mxu0 %v1864
    %v2272 = vpop.f32.mrf.mxu0
    %v2273 = vadd.f32 %v2131, %v2272
    %v2274 = vpop.f32.mrf.mxu0
    %v2275 = vadd.f32 %v2133, %v2274
    %2276 = vdwg.mxu0
    %v2277 = vadd.f32 %v2202, %v485
    %v2278 = vadd.f32 %v2204, %v489
    %v2279 = vadd.f32 %v2273, %v493
    %v2280 = vadd.f32 %v2275, %v497
    %v2281 = vxor.u32 %v2277, 2147483648
    %v2282 = vmul.f32 %v2281, 1.442695
    %v2283 = vpow.pop %v2282
    %v2284 = vadd.f32 %v2283, 1.0
    %v2285 = vrcp.pop %v2284
    %v2286 = vmul.f32 1.0, %v2285
    %v2287 = vxor.u32 %v2278, 2147483648
    %v2288 = vmul.f32 %v2287, 1.442695
    %v2289 = vpow.pop %v2288
    %v2290 = vadd.f32 %v2289, 1.0
    %v2291 = vrcp.pop %v2290
    %v2292 = vmul.f32 1.0, %v2291
    %v2293 = vtanh.pop %v2279
    %v2294 = vxor.u32 %v2280, 2147483648
    %v2295 = vmul.f32 %v2294, 1.442695
    %v2296 = vpow.pop %v2295
    %v2297 = vadd.f32 %v2296, 1.0
    %v2298 = vrcp.pop %v2297
    %v2299 = vmul.f32 1.0, %v2298
    %v2300 = vmul.f32 %v2292, %v1858
    %v2301 = vmul.f32 %v2286, %v2293
    %v2302 = vadd.f32 %v2300, %v2301
    %v2303 = vtanh.pop %v2302
    %v2304 = vmul.f32 %v2299, %v2303
    %s2305 = scalar_lea.vmem [#allocation10], 32
    %2306 = vst [vmem:[%s2305] sm:$0xff] %v2304
    %s2307 = scalar_lea.vmem [#allocation4], 40
    %v2308 = vld [vmem:[%s2307] sm:$0xff]
    %v2309 = vld [vmem:[#allocation7] sm:$0xff]
    %v2310 = vld [vmem:[#allocation7 + $0x8] sm:$0xff]
    %v2311 = vld [vmem:[#allocation7 + $0x10] sm:$0xff]
    %v2312 = vld [vmem:[#allocation7 + $0x18] sm:$0xff]
    %v2313 = vld [vmem:[#allocation7 + $0x20] sm:$0xff]
    %v2314 = vld [vmem:[#allocation7 + $0x28] sm:$0xff]
    %v2315 = vld [vmem:[#allocation7 + $0x30] sm:$0xff]
    %v2316 = vld [vmem:[#allocation7 + $0x38] sm:$0xff]
    %v2317 = vld [vmem:[#allocation7 + $0x40] sm:$0xff]
    %v2318 = vld [vmem:[#allocation7 + $0x48] sm:$0xff]
    %v2319 = vld [vmem:[#allocation7 + $0x50] sm:$0xff]
    %v2320 = vld [vmem:[#allocation7 + $0x58] sm:$0xff]
    %v2321 = vld [vmem:[#allocation7 + $0x60] sm:$0xff]
    %v2322 = vld [vmem:[#allocation7 + $0x68] sm:$0xff]
    %v2323 = vld [vmem:[#allocation7 + $0x70] sm:$0xff]
    %v2324 = vld [vmem:[#allocation7 + $0x78] sm:$0xff]
    %v2325 = vld [vmem:[#allocation7 + $0x80] sm:$0xff]
    %v2326 = vld [vmem:[#allocation7 + $0x88] sm:$0xff]
    %v2327 = vld [vmem:[#allocation7 + $0x90] sm:$0xff]
    %v2328 = vld [vmem:[#allocation7 + $0x98] sm:$0xff]
    %v2329 = vld [vmem:[#allocation7 + $0xa0] sm:$0xff]
    %v2330 = vld [vmem:[#allocation7 + $0xa8] sm:$0xff]
    %v2331 = vld [vmem:[#allocation7 + $0xb0] sm:$0xff]
    %v2332 = vld [vmem:[#allocation7 + $0xb8] sm:$0xff]
    %v2333 = vld [vmem:[#allocation7 + $0xc0] sm:$0xff]
    %v2334 = vld [vmem:[#allocation7 + $0xc8] sm:$0xff]
    %v2335 = vld [vmem:[#allocation7 + $0xd0] sm:$0xff]
    %v2336 = vld [vmem:[#allocation7 + $0xd8] sm:$0xff]
    %v2337 = vld [vmem:[#allocation7 + $0xe0] sm:$0xff]
    %v2338 = vld [vmem:[#allocation7 + $0xe8] sm:$0xff]
    %v2339 = vld [vmem:[#allocation7 + $0xf0] sm:$0xff]
    %v2340 = vld [vmem:[#allocation7 + $0xf8] sm:$0xff]
    %v2341 = vld [vmem:[#allocation7 + $0x100] sm:$0xff]
    %v2342 = vld [vmem:[#allocation7 + $0x108] sm:$0xff]
    %v2343 = vld [vmem:[#allocation7 + $0x110] sm:$0xff]
    %v2344 = vld [vmem:[#allocation7 + $0x118] sm:$0xff]
    %v2345 = vld [vmem:[#allocation7 + $0x120] sm:$0xff]
    %v2346 = vld [vmem:[#allocation7 + $0x128] sm:$0xff]
    %v2347 = vld [vmem:[#allocation7 + $0x130] sm:$0xff]
    %v2348 = vld [vmem:[#allocation7 + $0x138] sm:$0xff]
    %v2349 = vld [vmem:[#allocation7 + $0x140] sm:$0xff]
    %v2350 = vld [vmem:[#allocation7 + $0x148] sm:$0xff]
    %v2351 = vld [vmem:[#allocation7 + $0x150] sm:$0xff]
    %v2352 = vld [vmem:[#allocation7 + $0x158] sm:$0xff]
    %v2353 = vld [vmem:[#allocation7 + $0x160] sm:$0xff]
    %v2354 = vld [vmem:[#allocation7 + $0x168] sm:$0xff]
    %v2355 = vld [vmem:[#allocation7 + $0x170] sm:$0xff]
    %v2356 = vld [vmem:[#allocation7 + $0x178] sm:$0xff]
    %v2357 = vld [vmem:[#allocation7 + $0x180] sm:$0xff]
    %v2358 = vld [vmem:[#allocation7 + $0x188] sm:$0xff]
    %v2359 = vld [vmem:[#allocation7 + $0x190] sm:$0xff]
    %v2360 = vld [vmem:[#allocation7 + $0x198] sm:$0xff]
    %v2361 = vld [vmem:[#allocation7 + $0x1a0] sm:$0xff]
    %v2362 = vld [vmem:[#allocation7 + $0x1a8] sm:$0xff]
    %v2363 = vld [vmem:[#allocation7 + $0x1b0] sm:$0xff]
    %v2364 = vld [vmem:[#allocation7 + $0x1b8] sm:$0xff]
    %v2365 = vld [vmem:[#allocation7 + $0x1c0] sm:$0xff]
    %v2366 = vld [vmem:[#allocation7 + $0x1c8] sm:$0xff]
    %v2367 = vld [vmem:[#allocation7 + $0x1d0] sm:$0xff]
    %v2368 = vld [vmem:[#allocation7 + $0x1d8] sm:$0xff]
    %v2369 = vld [vmem:[#allocation7 + $0x1e0] sm:$0xff]
    %v2370 = vld [vmem:[#allocation7 + $0x1e8] sm:$0xff]
    %v2371 = vld [vmem:[#allocation7 + $0x1f0] sm:$0xff]
    %v2372 = vld [vmem:[#allocation7 + $0x1f8] sm:$0xff]
    %v2373 = vld [vmem:[#allocation9] sm:$0xff]
    %v2374 = vld [vmem:[#allocation9 + $0x8] sm:$0xff]
    %v2375 = vld [vmem:[#allocation9 + $0x10] sm:$0xff]
    %v2376 = vld [vmem:[#allocation9 + $0x18] sm:$0xff]
    %v2377 = vld [vmem:[#allocation9 + $0x20] sm:$0xff]
    %v2378 = vld [vmem:[#allocation9 + $0x28] sm:$0xff]
    %v2379 = vld [vmem:[#allocation9 + $0x30] sm:$0xff]
    %v2380 = vld [vmem:[#allocation9 + $0x38] sm:$0xff]
    %v2381 = vld [vmem:[#allocation9 + $0x40] sm:$0xff]
    %v2382 = vld [vmem:[#allocation9 + $0x48] sm:$0xff]
    %v2383 = vld [vmem:[#allocation9 + $0x50] sm:$0xff]
    %v2384 = vld [vmem:[#allocation9 + $0x58] sm:$0xff]
    %v2385 = vld [vmem:[#allocation9 + $0x60] sm:$0xff]
    %v2386 = vld [vmem:[#allocation9 + $0x68] sm:$0xff]
    %v2387 = vld [vmem:[#allocation9 + $0x70] sm:$0xff]
    %v2388 = vld [vmem:[#allocation9 + $0x78] sm:$0xff]
    %v2389 = vld [vmem:[#allocation9 + $0x80] sm:$0xff]
    %v2390 = vld [vmem:[#allocation9 + $0x88] sm:$0xff]
    %v2391 = vld [vmem:[#allocation9 + $0x90] sm:$0xff]
    %v2392 = vld [vmem:[#allocation9 + $0x98] sm:$0xff]
    %v2393 = vld [vmem:[#allocation9 + $0xa0] sm:$0xff]
    %v2394 = vld [vmem:[#allocation9 + $0xa8] sm:$0xff]
    %v2395 = vld [vmem:[#allocation9 + $0xb0] sm:$0xff]
    %v2396 = vld [vmem:[#allocation9 + $0xb8] sm:$0xff]
    %v2397 = vld [vmem:[#allocation9 + $0xc0] sm:$0xff]
    %v2398 = vld [vmem:[#allocation9 + $0xc8] sm:$0xff]
    %v2399 = vld [vmem:[#allocation9 + $0xd0] sm:$0xff]
    %v2400 = vld [vmem:[#allocation9 + $0xd8] sm:$0xff]
    %v2401 = vld [vmem:[#allocation9 + $0xe0] sm:$0xff]
    %v2402 = vld [vmem:[#allocation9 + $0xe8] sm:$0xff]
    %v2403 = vld [vmem:[#allocation9 + $0xf0] sm:$0xff]
    %v2404 = vld [vmem:[#allocation9 + $0xf8] sm:$0xff]
    %v2405 = vld [vmem:[#allocation9 + $0x100] sm:$0xff]
    %v2406 = vld [vmem:[#allocation9 + $0x108] sm:$0xff]
    %v2407 = vld [vmem:[#allocation9 + $0x110] sm:$0xff]
    %v2408 = vld [vmem:[#allocation9 + $0x118] sm:$0xff]
    %v2409 = vld [vmem:[#allocation9 + $0x120] sm:$0xff]
    %v2410 = vld [vmem:[#allocation9 + $0x128] sm:$0xff]
    %v2411 = vld [vmem:[#allocation9 + $0x130] sm:$0xff]
    %v2412 = vld [vmem:[#allocation9 + $0x138] sm:$0xff]
    %v2413 = vld [vmem:[#allocation9 + $0x140] sm:$0xff]
    %v2414 = vld [vmem:[#allocation9 + $0x148] sm:$0xff]
    %v2415 = vld [vmem:[#allocation9 + $0x150] sm:$0xff]
    %v2416 = vld [vmem:[#allocation9 + $0x158] sm:$0xff]
    %v2417 = vld [vmem:[#allocation9 + $0x160] sm:$0xff]
    %v2418 = vld [vmem:[#allocation9 + $0x168] sm:$0xff]
    %v2419 = vld [vmem:[#allocation9 + $0x170] sm:$0xff]
    %v2420 = vld [vmem:[#allocation9 + $0x178] sm:$0xff]
    %v2421 = vld [vmem:[#allocation9 + $0x180] sm:$0xff]
    %v2422 = vld [vmem:[#allocation9 + $0x188] sm:$0xff]
    %v2423 = vld [vmem:[#allocation9 + $0x190] sm:$0xff]
    %v2424 = vld [vmem:[#allocation9 + $0x198] sm:$0xff]
    %v2425 = vld [vmem:[#allocation9 + $0x1a0] sm:$0xff]
    %v2426 = vld [vmem:[#allocation9 + $0x1a8] sm:$0xff]
    %v2427 = vld [vmem:[#allocation9 + $0x1b0] sm:$0xff]
    %v2428 = vld [vmem:[#allocation9 + $0x1b8] sm:$0xff]
    %v2429 = vld [vmem:[#allocation9 + $0x1c0] sm:$0xff]
    %v2430 = vld [vmem:[#allocation9 + $0x1c8] sm:$0xff]
    %v2431 = vld [vmem:[#allocation9 + $0x1d0] sm:$0xff]
    %v2432 = vld [vmem:[#allocation9 + $0x1d8] sm:$0xff]
    %v2433 = vld [vmem:[#allocation9 + $0x1e0] sm:$0xff]
    %v2434 = vld [vmem:[#allocation9 + $0x1e8] sm:$0xff]
    %v2435 = vld [vmem:[#allocation9 + $0x1f0] sm:$0xff]
    %v2436 = vld [vmem:[#allocation9 + $0x1f8] sm:$0xff]
    %2437 = vmatprep.subr.mxu0 %v2434
    %2438 = vmatpush1.msra.mxu0 %v2433
    %2439 = vmatprep.subr.mxu0 %v2430
    %2440 = vmatpush1.msra.mxu0 %v2429
    %2441 = vmatprep.subr.mxu0 %v2426
    %2442 = vmatpush1.msra.mxu0 %v2425
    %2443 = vmatprep.subr.mxu0 %v2422
    %2444 = vmatpush1.msra.mxu0 %v2421
    %2445 = vmatprep.subr.mxu0 %v2418
    %2446 = vmatpush1.msra.mxu0 %v2417
    %2447 = vmatprep.subr.mxu0 %v2414
    %2448 = vmatpush1.msra.mxu0 %v2413
    %2449 = vmatprep.subr.mxu0 %v2410
    %2450 = vmatpush1.msra.mxu0 %v2409
    %2451 = vmatprep.subr.mxu0 %v2406
    %2452 = vmatpush1.msra.mxu0 %v2405
    %2453 = vmatprep.subr.mxu0 %v2402
    %2454 = vmatpush1.msra.mxu0 %v2401
    %2455 = vmatprep.subr.mxu0 %v2398
    %2456 = vmatpush1.msra.mxu0 %v2397
    %2457 = vmatprep.subr.mxu0 %v2394
    %2458 = vmatpush1.msra.mxu0 %v2393
    %2459 = vmatprep.subr.mxu0 %v2390
    %2460 = vmatpush1.msra.mxu0 %v2389
    %2461 = vmatprep.subr.mxu0 %v2386
    %2462 = vmatpush1.msra.mxu0 %v2385
    %2463 = vmatprep.subr.mxu0 %v2382
    %2464 = vmatpush1.msra.mxu0 %v2381
    %2465 = vmatprep.subr.mxu0 %v2378
    %2466 = vmatpush1.msra.mxu0 %v2377
    %2467 = vmatprep.subr.mxu0 %v2374
    %2468 = vmatpush1.msra.mxu0 %v2373
    %2469 = vmatprep.subr.mxu0 0.0
    %2470 = vmatpush2.msra.mxu0 0.0
    %2471 = vmatprep.subr.mxu0 0.0
    %2472 = vmatpush2.msra.mxu0 0.0
    %2473 = vmatprep.subr.mxu0 0.0
    %2474 = vmatpush2.msra.mxu0 0.0
    %2475 = vmatprep.subr.mxu0 0.0
    %2476 = vmatpush2.msra.mxu0 0.0
    %2477 = vmatprep.subr.mxu0 0.0
    %2478 = vmatpush2.msra.mxu0 0.0
    %2479 = vmatprep.subr.mxu0 0.0
    %2480 = vmatpush2.msra.mxu0 0.0
    %2481 = vmatprep.subr.mxu0 0.0
    %2482 = vmatpush2.msra.mxu0 0.0
    %2483 = vmatprep.subr.mxu0 0.0
    %2484 = vmatpush2.msra.mxu0 0.0
    %2485 = vmatprep.subr.mxu0 0.0
    %2486 = vmatpush2.msra.mxu0 0.0
    %2487 = vmatprep.subr.mxu0 0.0
    %2488 = vmatpush2.msra.mxu0 0.0
    %2489 = vmatprep.subr.mxu0 0.0
    %2490 = vmatpush2.msra.mxu0 0.0
    %2491 = vmatprep.subr.mxu0 0.0
    %2492 = vmatpush2.msra.mxu0 0.0
    %2493 = vmatprep.subr.mxu0 0.0
    %2494 = vmatpush2.msra.mxu0 0.0
    %2495 = vmatprep.subr.mxu0 0.0
    %2496 = vmatpush2.msra.mxu0 0.0
    %2497 = vmatprep.subr.mxu0 0.0
    %2498 = vmatpush2.msra.mxu0 0.0
    %2499 = vmatprep.subr.mxu0 0.0
    %2500 = vmatpush2.msra.mxu0 0.0
    %2501 = vmatprep.mubr.f32.mxu0 0.0
    %2502 = vmatmul.mubr.f32.gmra.mxu0 %v2304
    %v2503 = vpop.f32.mrf.mxu0
    %v2504 = vadd.f32 0.0, %v2503
    %v2505 = vpop.f32.mrf.mxu0
    %v2506 = vadd.f32 0.0, %v2505
    %2507 = vdwg.mxu0
    %2508 = vmatprep.subr.mxu0 %v2436
    %2509 = vmatpush1.msra.mxu0 %v2435
    %2510 = vmatprep.subr.mxu0 %v2432
    %2511 = vmatpush1.msra.mxu0 %v2431
    %2512 = vmatprep.subr.mxu0 %v2428
    %2513 = vmatpush1.msra.mxu0 %v2427
    %2514 = vmatprep.subr.mxu0 %v2424
    %2515 = vmatpush1.msra.mxu0 %v2423
    %2516 = vmatprep.subr.mxu0 %v2420
    %2517 = vmatpush1.msra.mxu0 %v2419
    %2518 = vmatprep.subr.mxu0 %v2416
    %2519 = vmatpush1.msra.mxu0 %v2415
    %2520 = vmatprep.subr.mxu0 %v2412
    %2521 = vmatpush1.msra.mxu0 %v2411
    %2522 = vmatprep.subr.mxu0 %v2408
    %2523 = vmatpush1.msra.mxu0 %v2407
    %2524 = vmatprep.subr.mxu0 %v2404
    %2525 = vmatpush1.msra.mxu0 %v2403
    %2526 = vmatprep.subr.mxu0 %v2400
    %2527 = vmatpush1.msra.mxu0 %v2399
    %2528 = vmatprep.subr.mxu0 %v2396
    %2529 = vmatpush1.msra.mxu0 %v2395
    %2530 = vmatprep.subr.mxu0 %v2392
    %2531 = vmatpush1.msra.mxu0 %v2391
    %2532 = vmatprep.subr.mxu0 %v2388
    %2533 = vmatpush1.msra.mxu0 %v2387
    %2534 = vmatprep.subr.mxu0 %v2384
    %2535 = vmatpush1.msra.mxu0 %v2383
    %2536 = vmatprep.subr.mxu0 %v2380
    %2537 = vmatpush1.msra.mxu0 %v2379
    %2538 = vmatprep.subr.mxu0 %v2376
    %2539 = vmatpush1.msra.mxu0 %v2375
    %2540 = vmatprep.subr.mxu0 0.0
    %2541 = vmatpush2.msra.mxu0 0.0
    %2542 = vmatprep.subr.mxu0 0.0
    %2543 = vmatpush2.msra.mxu0 0.0
    %2544 = vmatprep.subr.mxu0 0.0
    %2545 = vmatpush2.msra.mxu0 0.0
    %2546 = vmatprep.subr.mxu0 0.0
    %2547 = vmatpush2.msra.mxu0 0.0
    %2548 = vmatprep.subr.mxu0 0.0
    %2549 = vmatpush2.msra.mxu0 0.0
    %2550 = vmatprep.subr.mxu0 0.0
    %2551 = vmatpush2.msra.mxu0 0.0
    %2552 = vmatprep.subr.mxu0 0.0
    %2553 = vmatpush2.msra.mxu0 0.0
    %2554 = vmatprep.subr.mxu0 0.0
    %2555 = vmatpush2.msra.mxu0 0.0
    %2556 = vmatprep.subr.mxu0 0.0
    %2557 = vmatpush2.msra.mxu0 0.0
    %2558 = vmatprep.subr.mxu0 0.0
    %2559 = vmatpush2.msra.mxu0 0.0
    %2560 = vmatprep.subr.mxu0 0.0
    %2561 = vmatpush2.msra.mxu0 0.0
    %2562 = vmatprep.subr.mxu0 0.0
    %2563 = vmatpush2.msra.mxu0 0.0
    %2564 = vmatprep.subr.mxu0 0.0
    %2565 = vmatpush2.msra.mxu0 0.0
    %2566 = vmatprep.subr.mxu0 0.0
    %2567 = vmatpush2.msra.mxu0 0.0
    %2568 = vmatprep.subr.mxu0 0.0
    %2569 = vmatpush2.msra.mxu0 0.0
    %2570 = vmatprep.subr.mxu0 0.0
    %2571 = vmatpush2.msra.mxu0 0.0
    %2572 = vmatprep.mubr.f32.mxu0 0.0
    %2573 = vmatmul.mubr.f32.gmra.mxu0 %v2304
    %v2574 = vpop.f32.mrf.mxu0
    %v2575 = vadd.f32 0.0, %v2574
    %v2576 = vpop.f32.mrf.mxu0
    %v2577 = vadd.f32 0.0, %v2576
    %2578 = vdwg.mxu0
    %2579 = vmatprep.subr.mxu0 %v2370
    %2580 = vmatpush1.msra.mxu0 %v2369
    %2581 = vmatprep.subr.mxu0 %v2366
    %2582 = vmatpush1.msra.mxu0 %v2365
    %2583 = vmatprep.subr.mxu0 %v2362
    %2584 = vmatpush1.msra.mxu0 %v2361
    %2585 = vmatprep.subr.mxu0 %v2358
    %2586 = vmatpush1.msra.mxu0 %v2357
    %2587 = vmatprep.subr.mxu0 %v2354
    %2588 = vmatpush1.msra.mxu0 %v2353
    %2589 = vmatprep.subr.mxu0 %v2350
    %2590 = vmatpush1.msra.mxu0 %v2349
    %2591 = vmatprep.subr.mxu0 %v2346
    %2592 = vmatpush1.msra.mxu0 %v2345
    %2593 = vmatprep.subr.mxu0 %v2342
    %2594 = vmatpush1.msra.mxu0 %v2341
    %2595 = vmatprep.subr.mxu0 %v2338
    %2596 = vmatpush1.msra.mxu0 %v2337
    %2597 = vmatprep.subr.mxu0 %v2334
    %2598 = vmatpush1.msra.mxu0 %v2333
    %2599 = vmatprep.subr.mxu0 %v2330
    %2600 = vmatpush1.msra.mxu0 %v2329
    %2601 = vmatprep.subr.mxu0 %v2326
    %2602 = vmatpush1.msra.mxu0 %v2325
    %2603 = vmatprep.subr.mxu0 %v2322
    %2604 = vmatpush1.msra.mxu0 %v2321
    %2605 = vmatprep.subr.mxu0 %v2318
    %2606 = vmatpush1.msra.mxu0 %v2317
    %2607 = vmatprep.subr.mxu0 %v2314
    %2608 = vmatpush1.msra.mxu0 %v2313
    %2609 = vmatprep.subr.mxu0 %v2310
    %2610 = vmatpush1.msra.mxu0 %v2309
    %2611 = vmatprep.subr.mxu0 0.0
    %2612 = vmatpush2.msra.mxu0 0.0
    %2613 = vmatprep.subr.mxu0 0.0
    %2614 = vmatpush2.msra.mxu0 0.0
    %2615 = vmatprep.subr.mxu0 0.0
    %2616 = vmatpush2.msra.mxu0 0.0
    %2617 = vmatprep.subr.mxu0 0.0
    %2618 = vmatpush2.msra.mxu0 0.0
    %2619 = vmatprep.subr.mxu0 0.0
    %2620 = vmatpush2.msra.mxu0 0.0
    %2621 = vmatprep.subr.mxu0 0.0
    %2622 = vmatpush2.msra.mxu0 0.0
    %2623 = vmatprep.subr.mxu0 0.0
    %2624 = vmatpush2.msra.mxu0 0.0
    %2625 = vmatprep.subr.mxu0 0.0
    %2626 = vmatpush2.msra.mxu0 0.0
    %2627 = vmatprep.subr.mxu0 0.0
    %2628 = vmatpush2.msra.mxu0 0.0
    %2629 = vmatprep.subr.mxu0 0.0
    %2630 = vmatpush2.msra.mxu0 0.0
    %2631 = vmatprep.subr.mxu0 0.0
    %2632 = vmatpush2.msra.mxu0 0.0
    %2633 = vmatprep.subr.mxu0 0.0
    %2634 = vmatpush2.msra.mxu0 0.0
    %2635 = vmatprep.subr.mxu0 0.0
    %2636 = vmatpush2.msra.mxu0 0.0
    %2637 = vmatprep.subr.mxu0 0.0
    %2638 = vmatpush2.msra.mxu0 0.0
    %2639 = vmatprep.subr.mxu0 0.0
    %2640 = vmatpush2.msra.mxu0 0.0
    %2641 = vmatprep.subr.mxu0 0.0
    %2642 = vmatpush2.msra.mxu0 0.0
    %2643 = vmatprep.mubr.f32.mxu0 0.0
    %2644 = vmatmul.mubr.f32.gmra.mxu0 %v2308
    %v2645 = vpop.f32.mrf.mxu0
    %v2646 = vadd.f32 %v2504, %v2645
    %v2647 = vpop.f32.mrf.mxu0
    %v2648 = vadd.f32 %v2506, %v2647
    %2649 = vdwg.mxu0
    %2650 = vmatprep.subr.mxu0 %v2372
    %2651 = vmatpush1.msra.mxu0 %v2371
    %2652 = vmatprep.subr.mxu0 %v2368
    %2653 = vmatpush1.msra.mxu0 %v2367
    %2654 = vmatprep.subr.mxu0 %v2364
    %2655 = vmatpush1.msra.mxu0 %v2363
    %2656 = vmatprep.subr.mxu0 %v2360
    %2657 = vmatpush1.msra.mxu0 %v2359
    %2658 = vmatprep.subr.mxu0 %v2356
    %2659 = vmatpush1.msra.mxu0 %v2355
    %2660 = vmatprep.subr.mxu0 %v2352
    %2661 = vmatpush1.msra.mxu0 %v2351
    %2662 = vmatprep.subr.mxu0 %v2348
    %2663 = vmatpush1.msra.mxu0 %v2347
    %2664 = vmatprep.subr.mxu0 %v2344
    %2665 = vmatpush1.msra.mxu0 %v2343
    %2666 = vmatprep.subr.mxu0 %v2340
    %2667 = vmatpush1.msra.mxu0 %v2339
    %2668 = vmatprep.subr.mxu0 %v2336
    %2669 = vmatpush1.msra.mxu0 %v2335
    %2670 = vmatprep.subr.mxu0 %v2332
    %2671 = vmatpush1.msra.mxu0 %v2331
    %2672 = vmatprep.subr.mxu0 %v2328
    %2673 = vmatpush1.msra.mxu0 %v2327
    %2674 = vmatprep.subr.mxu0 %v2324
    %2675 = vmatpush1.msra.mxu0 %v2323
    %2676 = vmatprep.subr.mxu0 %v2320
    %2677 = vmatpush1.msra.mxu0 %v2319
    %2678 = vmatprep.subr.mxu0 %v2316
    %2679 = vmatpush1.msra.mxu0 %v2315
    %2680 = vmatprep.subr.mxu0 %v2312
    %2681 = vmatpush1.msra.mxu0 %v2311
    %2682 = vmatprep.subr.mxu0 0.0
    %2683 = vmatpush2.msra.mxu0 0.0
    %2684 = vmatprep.subr.mxu0 0.0
    %2685 = vmatpush2.msra.mxu0 0.0
    %2686 = vmatprep.subr.mxu0 0.0
    %2687 = vmatpush2.msra.mxu0 0.0
    %2688 = vmatprep.subr.mxu0 0.0
    %2689 = vmatpush2.msra.mxu0 0.0
    %2690 = vmatprep.subr.mxu0 0.0
    %2691 = vmatpush2.msra.mxu0 0.0
    %2692 = vmatprep.subr.mxu0 0.0
    %2693 = vmatpush2.msra.mxu0 0.0
    %2694 = vmatprep.subr.mxu0 0.0
    %2695 = vmatpush2.msra.mxu0 0.0
    %2696 = vmatprep.subr.mxu0 0.0
    %2697 = vmatpush2.msra.mxu0 0.0
    %2698 = vmatprep.subr.mxu0 0.0
    %2699 = vmatpush2.msra.mxu0 0.0
    %2700 = vmatprep.subr.mxu0 0.0
    %2701 = vmatpush2.msra.mxu0 0.0
    %2702 = vmatprep.subr.mxu0 0.0
    %2703 = vmatpush2.msra.mxu0 0.0
    %2704 = vmatprep.subr.mxu0 0.0
    %2705 = vmatpush2.msra.mxu0 0.0
    %2706 = vmatprep.subr.mxu0 0.0
    %2707 = vmatpush2.msra.mxu0 0.0
    %2708 = vmatprep.subr.mxu0 0.0
    %2709 = vmatpush2.msra.mxu0 0.0
    %2710 = vmatprep.subr.mxu0 0.0
    %2711 = vmatpush2.msra.mxu0 0.0
    %2712 = vmatprep.subr.mxu0 0.0
    %2713 = vmatpush2.msra.mxu0 0.0
    %2714 = vmatprep.mubr.f32.mxu0 0.0
    %2715 = vmatmul.mubr.f32.gmra.mxu0 %v2308
    %v2716 = vpop.f32.mrf.mxu0
    %v2717 = vadd.f32 %v2575, %v2716
    %v2718 = vpop.f32.mrf.mxu0
    %v2719 = vadd.f32 %v2577, %v2718
    %2720 = vdwg.mxu0
    %v2721 = vadd.f32 %v2646, %v485
    %v2722 = vadd.f32 %v2648, %v489
    %v2723 = vadd.f32 %v2717, %v493
    %v2724 = vadd.f32 %v2719, %v497
    %v2725 = vxor.u32 %v2721, 2147483648
    %v2726 = vmul.f32 %v2725, 1.442695
    %v2727 = vpow.pop %v2726
    %v2728 = vadd.f32 %v2727, 1.0
    %v2729 = vrcp.pop %v2728
    %v2730 = vmul.f32 1.0, %v2729
    %v2731 = vxor.u32 %v2722, 2147483648
    %v2732 = vmul.f32 %v2731, 1.442695
    %v2733 = vpow.pop %v2732
    %v2734 = vadd.f32 %v2733, 1.0
    %v2735 = vrcp.pop %v2734
    %v2736 = vmul.f32 1.0, %v2735
    %v2737 = vtanh.pop %v2723
    %v2738 = vxor.u32 %v2724, 2147483648
    %v2739 = vmul.f32 %v2738, 1.442695
    %v2740 = vpow.pop %v2739
    %v2741 = vadd.f32 %v2740, 1.0
    %v2742 = vrcp.pop %v2741
    %v2743 = vmul.f32 1.0, %v2742
    %v2744 = vmul.f32 %v2736, %v2302
    %v2745 = vmul.f32 %v2730, %v2737
    %v2746 = vadd.f32 %v2744, %v2745
    %v2747 = vtanh.pop %v2746
    %v2748 = vmul.f32 %v2743, %v2747
    %s2749 = scalar_lea.vmem [#allocation10], 40
    %2750 = vst [vmem:[%s2749] sm:$0xff] %v2748
    %s2751 = scalar_lea.vmem [#allocation4], 48
    %v2752 = vld [vmem:[%s2751] sm:$0xff]
    %v2753 = vld [vmem:[#allocation7] sm:$0xff]
    %v2754 = vld [vmem:[#allocation7 + $0x8] sm:$0xff]
    %v2755 = vld [vmem:[#allocation7 + $0x10] sm:$0xff]
    %v2756 = vld [vmem:[#allocation7 + $0x18] sm:$0xff]
    %v2757 = vld [vmem:[#allocation7 + $0x20] sm:$0xff]
    %v2758 = vld [vmem:[#allocation7 + $0x28] sm:$0xff]
    %v2759 = vld [vmem:[#allocation7 + $0x30] sm:$0xff]
    %v2760 = vld [vmem:[#allocation7 + $0x38] sm:$0xff]
    %v2761 = vld [vmem:[#allocation7 + $0x40] sm:$0xff]
    %v2762 = vld [vmem:[#allocation7 + $0x48] sm:$0xff]
    %v2763 = vld [vmem:[#allocation7 + $0x50] sm:$0xff]
    %v2764 = vld [vmem:[#allocation7 + $0x58] sm:$0xff]
    %v2765 = vld [vmem:[#allocation7 + $0x60] sm:$0xff]
    %v2766 = vld [vmem:[#allocation7 + $0x68] sm:$0xff]
    %v2767 = vld [vmem:[#allocation7 + $0x70] sm:$0xff]
    %v2768 = vld [vmem:[#allocation7 + $0x78] sm:$0xff]
    %v2769 = vld [vmem:[#allocation7 + $0x80] sm:$0xff]
    %v2770 = vld [vmem:[#allocation7 + $0x88] sm:$0xff]
    %v2771 = vld [vmem:[#allocation7 + $0x90] sm:$0xff]
    %v2772 = vld [vmem:[#allocation7 + $0x98] sm:$0xff]
    %v2773 = vld [vmem:[#allocation7 + $0xa0] sm:$0xff]
    %v2774 = vld [vmem:[#allocation7 + $0xa8] sm:$0xff]
    %v2775 = vld [vmem:[#allocation7 + $0xb0] sm:$0xff]
    %v2776 = vld [vmem:[#allocation7 + $0xb8] sm:$0xff]
    %v2777 = vld [vmem:[#allocation7 + $0xc0] sm:$0xff]
    %v2778 = vld [vmem:[#allocation7 + $0xc8] sm:$0xff]
    %v2779 = vld [vmem:[#allocation7 + $0xd0] sm:$0xff]
    %v2780 = vld [vmem:[#allocation7 + $0xd8] sm:$0xff]
    %v2781 = vld [vmem:[#allocation7 + $0xe0] sm:$0xff]
    %v2782 = vld [vmem:[#allocation7 + $0xe8] sm:$0xff]
    %v2783 = vld [vmem:[#allocation7 + $0xf0] sm:$0xff]
    %v2784 = vld [vmem:[#allocation7 + $0xf8] sm:$0xff]
    %v2785 = vld [vmem:[#allocation7 + $0x100] sm:$0xff]
    %v2786 = vld [vmem:[#allocation7 + $0x108] sm:$0xff]
    %v2787 = vld [vmem:[#allocation7 + $0x110] sm:$0xff]
    %v2788 = vld [vmem:[#allocation7 + $0x118] sm:$0xff]
    %v2789 = vld [vmem:[#allocation7 + $0x120] sm:$0xff]
    %v2790 = vld [vmem:[#allocation7 + $0x128] sm:$0xff]
    %v2791 = vld [vmem:[#allocation7 + $0x130] sm:$0xff]
    %v2792 = vld [vmem:[#allocation7 + $0x138] sm:$0xff]
    %v2793 = vld [vmem:[#allocation7 + $0x140] sm:$0xff]
    %v2794 = vld [vmem:[#allocation7 + $0x148] sm:$0xff]
    %v2795 = vld [vmem:[#allocation7 + $0x150] sm:$0xff]
    %v2796 = vld [vmem:[#allocation7 + $0x158] sm:$0xff]
    %v2797 = vld [vmem:[#allocation7 + $0x160] sm:$0xff]
    %v2798 = vld [vmem:[#allocation7 + $0x168] sm:$0xff]
    %v2799 = vld [vmem:[#allocation7 + $0x170] sm:$0xff]
    %v2800 = vld [vmem:[#allocation7 + $0x178] sm:$0xff]
    %v2801 = vld [vmem:[#allocation7 + $0x180] sm:$0xff]
    %v2802 = vld [vmem:[#allocation7 + $0x188] sm:$0xff]
    %v2803 = vld [vmem:[#allocation7 + $0x190] sm:$0xff]
    %v2804 = vld [vmem:[#allocation7 + $0x198] sm:$0xff]
    %v2805 = vld [vmem:[#allocation7 + $0x1a0] sm:$0xff]
    %v2806 = vld [vmem:[#allocation7 + $0x1a8] sm:$0xff]
    %v2807 = vld [vmem:[#allocation7 + $0x1b0] sm:$0xff]
    %v2808 = vld [vmem:[#allocation7 + $0x1b8] sm:$0xff]
    %v2809 = vld [vmem:[#allocation7 + $0x1c0] sm:$0xff]
    %v2810 = vld [vmem:[#allocation7 + $0x1c8] sm:$0xff]
    %v2811 = vld [vmem:[#allocation7 + $0x1d0] sm:$0xff]
    %v2812 = vld [vmem:[#allocation7 + $0x1d8] sm:$0xff]
    %v2813 = vld [vmem:[#allocation7 + $0x1e0] sm:$0xff]
    %v2814 = vld [vmem:[#allocation7 + $0x1e8] sm:$0xff]
    %v2815 = vld [vmem:[#allocation7 + $0x1f0] sm:$0xff]
    %v2816 = vld [vmem:[#allocation7 + $0x1f8] sm:$0xff]
    %v2817 = vld [vmem:[#allocation9] sm:$0xff]
    %v2818 = vld [vmem:[#allocation9 + $0x8] sm:$0xff]
    %v2819 = vld [vmem:[#allocation9 + $0x10] sm:$0xff]
    %v2820 = vld [vmem:[#allocation9 + $0x18] sm:$0xff]
    %v2821 = vld [vmem:[#allocation9 + $0x20] sm:$0xff]
    %v2822 = vld [vmem:[#allocation9 + $0x28] sm:$0xff]
    %v2823 = vld [vmem:[#allocation9 + $0x30] sm:$0xff]
    %v2824 = vld [vmem:[#allocation9 + $0x38] sm:$0xff]
    %v2825 = vld [vmem:[#allocation9 + $0x40] sm:$0xff]
    %v2826 = vld [vmem:[#allocation9 + $0x48] sm:$0xff]
    %v2827 = vld [vmem:[#allocation9 + $0x50] sm:$0xff]
    %v2828 = vld [vmem:[#allocation9 + $0x58] sm:$0xff]
    %v2829 = vld [vmem:[#allocation9 + $0x60] sm:$0xff]
    %v2830 = vld [vmem:[#allocation9 + $0x68] sm:$0xff]
    %v2831 = vld [vmem:[#allocation9 + $0x70] sm:$0xff]
    %v2832 = vld [vmem:[#allocation9 + $0x78] sm:$0xff]
    %v2833 = vld [vmem:[#allocation9 + $0x80] sm:$0xff]
    %v2834 = vld [vmem:[#allocation9 + $0x88] sm:$0xff]
    %v2835 = vld [vmem:[#allocation9 + $0x90] sm:$0xff]
    %v2836 = vld [vmem:[#allocation9 + $0x98] sm:$0xff]
    %v2837 = vld [vmem:[#allocation9 + $0xa0] sm:$0xff]
    %v2838 = vld [vmem:[#allocation9 + $0xa8] sm:$0xff]
    %v2839 = vld [vmem:[#allocation9 + $0xb0] sm:$0xff]
    %v2840 = vld [vmem:[#allocation9 + $0xb8] sm:$0xff]
    %v2841 = vld [vmem:[#allocation9 + $0xc0] sm:$0xff]
    %v2842 = vld [vmem:[#allocation9 + $0xc8] sm:$0xff]
    %v2843 = vld [vmem:[#allocation9 + $0xd0] sm:$0xff]
    %v2844 = vld [vmem:[#allocation9 + $0xd8] sm:$0xff]
    %v2845 = vld [vmem:[#allocation9 + $0xe0] sm:$0xff]
    %v2846 = vld [vmem:[#allocation9 + $0xe8] sm:$0xff]
    %v2847 = vld [vmem:[#allocation9 + $0xf0] sm:$0xff]
    %v2848 = vld [vmem:[#allocation9 + $0xf8] sm:$0xff]
    %v2849 = vld [vmem:[#allocation9 + $0x100] sm:$0xff]
    %v2850 = vld [vmem:[#allocation9 + $0x108] sm:$0xff]
    %v2851 = vld [vmem:[#allocation9 + $0x110] sm:$0xff]
    %v2852 = vld [vmem:[#allocation9 + $0x118] sm:$0xff]
    %v2853 = vld [vmem:[#allocation9 + $0x120] sm:$0xff]
    %v2854 = vld [vmem:[#allocation9 + $0x128] sm:$0xff]
    %v2855 = vld [vmem:[#allocation9 + $0x130] sm:$0xff]
    %v2856 = vld [vmem:[#allocation9 + $0x138] sm:$0xff]
    %v2857 = vld [vmem:[#allocation9 + $0x140] sm:$0xff]
    %v2858 = vld [vmem:[#allocation9 + $0x148] sm:$0xff]
    %v2859 = vld [vmem:[#allocation9 + $0x150] sm:$0xff]
    %v2860 = vld [vmem:[#allocation9 + $0x158] sm:$0xff]
    %v2861 = vld [vmem:[#allocation9 + $0x160] sm:$0xff]
    %v2862 = vld [vmem:[#allocation9 + $0x168] sm:$0xff]
    %v2863 = vld [vmem:[#allocation9 + $0x170] sm:$0xff]
    %v2864 = vld [vmem:[#allocation9 + $0x178] sm:$0xff]
    %v2865 = vld [vmem:[#allocation9 + $0x180] sm:$0xff]
    %v2866 = vld [vmem:[#allocation9 + $0x188] sm:$0xff]
    %v2867 = vld [vmem:[#allocation9 + $0x190] sm:$0xff]
    %v2868 = vld [vmem:[#allocation9 + $0x198] sm:$0xff]
    %v2869 = vld [vmem:[#allocation9 + $0x1a0] sm:$0xff]
    %v2870 = vld [vmem:[#allocation9 + $0x1a8] sm:$0xff]
    %v2871 = vld [vmem:[#allocation9 + $0x1b0] sm:$0xff]
    %v2872 = vld [vmem:[#allocation9 + $0x1b8] sm:$0xff]
    %v2873 = vld [vmem:[#allocation9 + $0x1c0] sm:$0xff]
    %v2874 = vld [vmem:[#allocation9 + $0x1c8] sm:$0xff]
    %v2875 = vld [vmem:[#allocation9 + $0x1d0] sm:$0xff]
    %v2876 = vld [vmem:[#allocation9 + $0x1d8] sm:$0xff]
    %v2877 = vld [vmem:[#allocation9 + $0x1e0] sm:$0xff]
    %v2878 = vld [vmem:[#allocation9 + $0x1e8] sm:$0xff]
    %v2879 = vld [vmem:[#allocation9 + $0x1f0] sm:$0xff]
    %v2880 = vld [vmem:[#allocation9 + $0x1f8] sm:$0xff]
    %2881 = vmatprep.subr.mxu0 %v2878
    %2882 = vmatpush1.msra.mxu0 %v2877
    %2883 = vmatprep.subr.mxu0 %v2874
    %2884 = vmatpush1.msra.mxu0 %v2873
    %2885 = vmatprep.subr.mxu0 %v2870
    %2886 = vmatpush1.msra.mxu0 %v2869
    %2887 = vmatprep.subr.mxu0 %v2866
    %2888 = vmatpush1.msra.mxu0 %v2865
    %2889 = vmatprep.subr.mxu0 %v2862
    %2890 = vmatpush1.msra.mxu0 %v2861
    %2891 = vmatprep.subr.mxu0 %v2858
    %2892 = vmatpush1.msra.mxu0 %v2857
    %2893 = vmatprep.subr.mxu0 %v2854
    %2894 = vmatpush1.msra.mxu0 %v2853
    %2895 = vmatprep.subr.mxu0 %v2850
    %2896 = vmatpush1.msra.mxu0 %v2849
    %2897 = vmatprep.subr.mxu0 %v2846
    %2898 = vmatpush1.msra.mxu0 %v2845
    %2899 = vmatprep.subr.mxu0 %v2842
    %2900 = vmatpush1.msra.mxu0 %v2841
    %2901 = vmatprep.subr.mxu0 %v2838
    %2902 = vmatpush1.msra.mxu0 %v2837
    %2903 = vmatprep.subr.mxu0 %v2834
    %2904 = vmatpush1.msra.mxu0 %v2833
    %2905 = vmatprep.subr.mxu0 %v2830
    %2906 = vmatpush1.msra.mxu0 %v2829
    %2907 = vmatprep.subr.mxu0 %v2826
    %2908 = vmatpush1.msra.mxu0 %v2825
    %2909 = vmatprep.subr.mxu0 %v2822
    %2910 = vmatpush1.msra.mxu0 %v2821
    %2911 = vmatprep.subr.mxu0 %v2818
    %2912 = vmatpush1.msra.mxu0 %v2817
    %2913 = vmatprep.subr.mxu0 0.0
    %2914 = vmatpush2.msra.mxu0 0.0
    %2915 = vmatprep.subr.mxu0 0.0
    %2916 = vmatpush2.msra.mxu0 0.0
    %2917 = vmatprep.subr.mxu0 0.0
    %2918 = vmatpush2.msra.mxu0 0.0
    %2919 = vmatprep.subr.mxu0 0.0
    %2920 = vmatpush2.msra.mxu0 0.0
    %2921 = vmatprep.subr.mxu0 0.0
    %2922 = vmatpush2.msra.mxu0 0.0
    %2923 = vmatprep.subr.mxu0 0.0
    %2924 = vmatpush2.msra.mxu0 0.0
    %2925 = vmatprep.subr.mxu0 0.0
    %2926 = vmatpush2.msra.mxu0 0.0
    %2927 = vmatprep.subr.mxu0 0.0
    %2928 = vmatpush2.msra.mxu0 0.0
    %2929 = vmatprep.subr.mxu0 0.0
    %2930 = vmatpush2.msra.mxu0 0.0
    %2931 = vmatprep.subr.mxu0 0.0
    %2932 = vmatpush2.msra.mxu0 0.0
    %2933 = vmatprep.subr.mxu0 0.0
    %2934 = vmatpush2.msra.mxu0 0.0
    %2935 = vmatprep.subr.mxu0 0.0
    %2936 = vmatpush2.msra.mxu0 0.0
    %2937 = vmatprep.subr.mxu0 0.0
    %2938 = vmatpush2.msra.mxu0 0.0
    %2939 = vmatprep.subr.mxu0 0.0
    %2940 = vmatpush2.msra.mxu0 0.0
    %2941 = vmatprep.subr.mxu0 0.0
    %2942 = vmatpush2.msra.mxu0 0.0
    %2943 = vmatprep.subr.mxu0 0.0
    %2944 = vmatpush2.msra.mxu0 0.0
    %2945 = vmatprep.mubr.f32.mxu0 0.0
    %2946 = vmatmul.mubr.f32.gmra.mxu0 %v2748
    %v2947 = vpop.f32.mrf.mxu0
    %v2948 = vadd.f32 0.0, %v2947
    %v2949 = vpop.f32.mrf.mxu0
    %v2950 = vadd.f32 0.0, %v2949
    %2951 = vdwg.mxu0
    %2952 = vmatprep.subr.mxu0 %v2880
    %2953 = vmatpush1.msra.mxu0 %v2879
    %2954 = vmatprep.subr.mxu0 %v2876
    %2955 = vmatpush1.msra.mxu0 %v2875
    %2956 = vmatprep.subr.mxu0 %v2872
    %2957 = vmatpush1.msra.mxu0 %v2871
    %2958 = vmatprep.subr.mxu0 %v2868
    %2959 = vmatpush1.msra.mxu0 %v2867
    %2960 = vmatprep.subr.mxu0 %v2864
    %2961 = vmatpush1.msra.mxu0 %v2863
    %2962 = vmatprep.subr.mxu0 %v2860
    %2963 = vmatpush1.msra.mxu0 %v2859
    %2964 = vmatprep.subr.mxu0 %v2856
    %2965 = vmatpush1.msra.mxu0 %v2855
    %2966 = vmatprep.subr.mxu0 %v2852
    %2967 = vmatpush1.msra.mxu0 %v2851
    %2968 = vmatprep.subr.mxu0 %v2848
    %2969 = vmatpush1.msra.mxu0 %v2847
    %2970 = vmatprep.subr.mxu0 %v2844
    %2971 = vmatpush1.msra.mxu0 %v2843
    %2972 = vmatprep.subr.mxu0 %v2840
    %2973 = vmatpush1.msra.mxu0 %v2839
    %2974 = vmatprep.subr.mxu0 %v2836
    %2975 = vmatpush1.msra.mxu0 %v2835
    %2976 = vmatprep.subr.mxu0 %v2832
    %2977 = vmatpush1.msra.mxu0 %v2831
    %2978 = vmatprep.subr.mxu0 %v2828
    %2979 = vmatpush1.msra.mxu0 %v2827
    %2980 = vmatprep.subr.mxu0 %v2824
    %2981 = vmatpush1.msra.mxu0 %v2823
    %2982 = vmatprep.subr.mxu0 %v2820
    %2983 = vmatpush1.msra.mxu0 %v2819
    %2984 = vmatprep.subr.mxu0 0.0
    %2985 = vmatpush2.msra.mxu0 0.0
    %2986 = vmatprep.subr.mxu0 0.0
    %2987 = vmatpush2.msra.mxu0 0.0
    %2988 = vmatprep.subr.mxu0 0.0
    %2989 = vmatpush2.msra.mxu0 0.0
    %2990 = vmatprep.subr.mxu0 0.0
    %2991 = vmatpush2.msra.mxu0 0.0
    %2992 = vmatprep.subr.mxu0 0.0
    %2993 = vmatpush2.msra.mxu0 0.0
    %2994 = vmatprep.subr.mxu0 0.0
    %2995 = vmatpush2.msra.mxu0 0.0
    %2996 = vmatprep.subr.mxu0 0.0
    %2997 = vmatpush2.msra.mxu0 0.0
    %2998 = vmatprep.subr.mxu0 0.0
    %2999 = vmatpush2.msra.mxu0 0.0
    %3000 = vmatprep.subr.mxu0 0.0
    %3001 = vmatpush2.msra.mxu0 0.0
    %3002 = vmatprep.subr.mxu0 0.0
    %3003 = vmatpush2.msra.mxu0 0.0
    %3004 = vmatprep.subr.mxu0 0.0
    %3005 = vmatpush2.msra.mxu0 0.0
    %3006 = vmatprep.subr.mxu0 0.0
    %3007 = vmatpush2.msra.mxu0 0.0
    %3008 = vmatprep.subr.mxu0 0.0
    %3009 = vmatpush2.msra.mxu0 0.0
    %3010 = vmatprep.subr.mxu0 0.0
    %3011 = vmatpush2.msra.mxu0 0.0
    %3012 = vmatprep.subr.mxu0 0.0
    %3013 = vmatpush2.msra.mxu0 0.0
    %3014 = vmatprep.subr.mxu0 0.0
    %3015 = vmatpush2.msra.mxu0 0.0
    %3016 = vmatprep.mubr.f32.mxu0 0.0
    %3017 = vmatmul.mubr.f32.gmra.mxu0 %v2748
    %v3018 = vpop.f32.mrf.mxu0
    %v3019 = vadd.f32 0.0, %v3018
    %v3020 = vpop.f32.mrf.mxu0
    %v3021 = vadd.f32 0.0, %v3020
    %3022 = vdwg.mxu0
    %3023 = vmatprep.subr.mxu0 %v2814
    %3024 = vmatpush1.msra.mxu0 %v2813
    %3025 = vmatprep.subr.mxu0 %v2810
    %3026 = vmatpush1.msra.mxu0 %v2809
    %3027 = vmatprep.subr.mxu0 %v2806
    %3028 = vmatpush1.msra.mxu0 %v2805
    %3029 = vmatprep.subr.mxu0 %v2802
    %3030 = vmatpush1.msra.mxu0 %v2801
    %3031 = vmatprep.subr.mxu0 %v2798
    %3032 = vmatpush1.msra.mxu0 %v2797
    %3033 = vmatprep.subr.mxu0 %v2794
    %3034 = vmatpush1.msra.mxu0 %v2793
    %3035 = vmatprep.subr.mxu0 %v2790
    %3036 = vmatpush1.msra.mxu0 %v2789
    %3037 = vmatprep.subr.mxu0 %v2786
    %3038 = vmatpush1.msra.mxu0 %v2785
    %3039 = vmatprep.subr.mxu0 %v2782
    %3040 = vmatpush1.msra.mxu0 %v2781
    %3041 = vmatprep.subr.mxu0 %v2778
    %3042 = vmatpush1.msra.mxu0 %v2777
    %3043 = vmatprep.subr.mxu0 %v2774
    %3044 = vmatpush1.msra.mxu0 %v2773
    %3045 = vmatprep.subr.mxu0 %v2770
    %3046 = vmatpush1.msra.mxu0 %v2769
    %3047 = vmatprep.subr.mxu0 %v2766
    %3048 = vmatpush1.msra.mxu0 %v2765
    %3049 = vmatprep.subr.mxu0 %v2762
    %3050 = vmatpush1.msra.mxu0 %v2761
    %3051 = vmatprep.subr.mxu0 %v2758
    %3052 = vmatpush1.msra.mxu0 %v2757
    %3053 = vmatprep.subr.mxu0 %v2754
    %3054 = vmatpush1.msra.mxu0 %v2753
    %3055 = vmatprep.subr.mxu0 0.0
    %3056 = vmatpush2.msra.mxu0 0.0
    %3057 = vmatprep.subr.mxu0 0.0
    %3058 = vmatpush2.msra.mxu0 0.0
    %3059 = vmatprep.subr.mxu0 0.0
    %3060 = vmatpush2.msra.mxu0 0.0
    %3061 = vmatprep.subr.mxu0 0.0
    %3062 = vmatpush2.msra.mxu0 0.0
    %3063 = vmatprep.subr.mxu0 0.0
    %3064 = vmatpush2.msra.mxu0 0.0
    %3065 = vmatprep.subr.mxu0 0.0
    %3066 = vmatpush2.msra.mxu0 0.0
    %3067 = vmatprep.subr.mxu0 0.0
    %3068 = vmatpush2.msra.mxu0 0.0
    %3069 = vmatprep.subr.mxu0 0.0
    %3070 = vmatpush2.msra.mxu0 0.0
    %3071 = vmatprep.subr.mxu0 0.0
    %3072 = vmatpush2.msra.mxu0 0.0
    %3073 = vmatprep.subr.mxu0 0.0
    %3074 = vmatpush2.msra.mxu0 0.0
    %3075 = vmatprep.subr.mxu0 0.0
    %3076 = vmatpush2.msra.mxu0 0.0
    %3077 = vmatprep.subr.mxu0 0.0
    %3078 = vmatpush2.msra.mxu0 0.0
    %3079 = vmatprep.subr.mxu0 0.0
    %3080 = vmatpush2.msra.mxu0 0.0
    %3081 = vmatprep.subr.mxu0 0.0
    %3082 = vmatpush2.msra.mxu0 0.0
    %3083 = vmatprep.subr.mxu0 0.0
    %3084 = vmatpush2.msra.mxu0 0.0
    %3085 = vmatprep.subr.mxu0 0.0
    %3086 = vmatpush2.msra.mxu0 0.0
    %3087 = vmatprep.mubr.f32.mxu0 0.0
    %3088 = vmatmul.mubr.f32.gmra.mxu0 %v2752
    %v3089 = vpop.f32.mrf.mxu0
    %v3090 = vadd.f32 %v2948, %v3089
    %v3091 = vpop.f32.mrf.mxu0
    %v3092 = vadd.f32 %v2950, %v3091
    %3093 = vdwg.mxu0
    %3094 = vmatprep.subr.mxu0 %v2816
    %3095 = vmatpush1.msra.mxu0 %v2815
    %3096 = vmatprep.subr.mxu0 %v2812
    %3097 = vmatpush1.msra.mxu0 %v2811
    %3098 = vmatprep.subr.mxu0 %v2808
    %3099 = vmatpush1.msra.mxu0 %v2807
    %3100 = vmatprep.subr.mxu0 %v2804
    %3101 = vmatpush1.msra.mxu0 %v2803
    %3102 = vmatprep.subr.mxu0 %v2800
    %3103 = vmatpush1.msra.mxu0 %v2799
    %3104 = vmatprep.subr.mxu0 %v2796
    %3105 = vmatpush1.msra.mxu0 %v2795
    %3106 = vmatprep.subr.mxu0 %v2792
    %3107 = vmatpush1.msra.mxu0 %v2791
    %3108 = vmatprep.subr.mxu0 %v2788
    %3109 = vmatpush1.msra.mxu0 %v2787
    %3110 = vmatprep.subr.mxu0 %v2784
    %3111 = vmatpush1.msra.mxu0 %v2783
    %3112 = vmatprep.subr.mxu0 %v2780
    %3113 = vmatpush1.msra.mxu0 %v2779
    %3114 = vmatprep.subr.mxu0 %v2776
    %3115 = vmatpush1.msra.mxu0 %v2775
    %3116 = vmatprep.subr.mxu0 %v2772
    %3117 = vmatpush1.msra.mxu0 %v2771
    %3118 = vmatprep.subr.mxu0 %v2768
    %3119 = vmatpush1.msra.mxu0 %v2767
    %3120 = vmatprep.subr.mxu0 %v2764
    %3121 = vmatpush1.msra.mxu0 %v2763
    %3122 = vmatprep.subr.mxu0 %v2760
    %3123 = vmatpush1.msra.mxu0 %v2759
    %3124 = vmatprep.subr.mxu0 %v2756
    %3125 = vmatpush1.msra.mxu0 %v2755
    %3126 = vmatprep.subr.mxu0 0.0
    %3127 = vmatpush2.msra.mxu0 0.0
    %3128 = vmatprep.subr.mxu0 0.0
    %3129 = vmatpush2.msra.mxu0 0.0
    %3130 = vmatprep.subr.mxu0 0.0
    %3131 = vmatpush2.msra.mxu0 0.0
    %3132 = vmatprep.subr.mxu0 0.0
    %3133 = vmatpush2.msra.mxu0 0.0
    %3134 = vmatprep.subr.mxu0 0.0
    %3135 = vmatpush2.msra.mxu0 0.0
    %3136 = vmatprep.subr.mxu0 0.0
    %3137 = vmatpush2.msra.mxu0 0.0
    %3138 = vmatprep.subr.mxu0 0.0
    %3139 = vmatpush2.msra.mxu0 0.0
    %3140 = vmatprep.subr.mxu0 0.0
    %3141 = vmatpush2.msra.mxu0 0.0
    %3142 = vmatprep.subr.mxu0 0.0
    %3143 = vmatpush2.msra.mxu0 0.0
    %3144 = vmatprep.subr.mxu0 0.0
    %3145 = vmatpush2.msra.mxu0 0.0
    %3146 = vmatprep.subr.mxu0 0.0
    %3147 = vmatpush2.msra.mxu0 0.0
    %3148 = vmatprep.subr.mxu0 0.0
    %3149 = vmatpush2.msra.mxu0 0.0
    %3150 = vmatprep.subr.mxu0 0.0
    %3151 = vmatpush2.msra.mxu0 0.0
    %3152 = vmatprep.subr.mxu0 0.0
    %3153 = vmatpush2.msra.mxu0 0.0
    %3154 = vmatprep.subr.mxu0 0.0
    %3155 = vmatpush2.msra.mxu0 0.0
    %3156 = vmatprep.subr.mxu0 0.0
    %3157 = vmatpush2.msra.mxu0 0.0
    %3158 = vmatprep.mubr.f32.mxu0 0.0
    %3159 = vmatmul.mubr.f32.gmra.mxu0 %v2752
    %v3160 = vpop.f32.mrf.mxu0
    %v3161 = vadd.f32 %v3019, %v3160
    %v3162 = vpop.f32.mrf.mxu0
    %v3163 = vadd.f32 %v3021, %v3162
    %3164 = vdwg.mxu0
    %v3165 = vadd.f32 %v3090, %v485
    %v3166 = vadd.f32 %v3092, %v489
    %v3167 = vadd.f32 %v3161, %v493
    %v3168 = vadd.f32 %v3163, %v497
    %v3169 = vxor.u32 %v3165, 2147483648
    %v3170 = vmul.f32 %v3169, 1.442695
    %v3171 = vpow.pop %v3170
    %v3172 = vadd.f32 %v3171, 1.0
    %v3173 = vrcp.pop %v3172
    %v3174 = vmul.f32 1.0, %v3173
    %v3175 = vxor.u32 %v3166, 2147483648
    %v3176 = vmul.f32 %v3175, 1.442695
    %v3177 = vpow.pop %v3176
    %v3178 = vadd.f32 %v3177, 1.0
    %v3179 = vrcp.pop %v3178
    %v3180 = vmul.f32 1.0, %v3179
    %v3181 = vtanh.pop %v3167
    %v3182 = vxor.u32 %v3168, 2147483648
    %v3183 = vmul.f32 %v3182, 1.442695
    %v3184 = vpow.pop %v3183
    %v3185 = vadd.f32 %v3184, 1.0
    %v3186 = vrcp.pop %v3185
    %v3187 = vmul.f32 1.0, %v3186
    %v3188 = vmul.f32 %v3180, %v2746
    %v3189 = vmul.f32 %v3174, %v3181
    %v3190 = vadd.f32 %v3188, %v3189
    %v3191 = vtanh.pop %v3190
    %v3192 = vmul.f32 %v3187, %v3191
    %s3193 = scalar_lea.vmem [#allocation10], 48
    %3194 = vst [vmem:[%s3193] sm:$0xff] %v3192
    %s3195 = scalar_lea.vmem [#allocation4], 56
    %v3196 = vld [vmem:[%s3195] sm:$0xff]
    %v3197 = vld [vmem:[#allocation7] sm:$0xff]
    %v3198 = vld [vmem:[#allocation7 + $0x8] sm:$0xff]
    %v3199 = vld [vmem:[#allocation7 + $0x10] sm:$0xff]
    %v3200 = vld [vmem:[#allocation7 + $0x18] sm:$0xff]
    %v3201 = vld [vmem:[#allocation7 + $0x20] sm:$0xff]
    %v3202 = vld [vmem:[#allocation7 + $0x28] sm:$0xff]
    %v3203 = vld [vmem:[#allocation7 + $0x30] sm:$0xff]
    %v3204 = vld [vmem:[#allocation7 + $0x38] sm:$0xff]
    %v3205 = vld [vmem:[#allocation7 + $0x40] sm:$0xff]
    %v3206 = vld [vmem:[#allocation7 + $0x48] sm:$0xff]
    %v3207 = vld [vmem:[#allocation7 + $0x50] sm:$0xff]
    %v3208 = vld [vmem:[#allocation7 + $0x58] sm:$0xff]
    %v3209 = vld [vmem:[#allocation7 + $0x60] sm:$0xff]
    %v3210 = vld [vmem:[#allocation7 + $0x68] sm:$0xff]
    %v3211 = vld [vmem:[#allocation7 + $0x70] sm:$0xff]
    %v3212 = vld [vmem:[#allocation7 + $0x78] sm:$0xff]
    %v3213 = vld [vmem:[#allocation7 + $0x80] sm:$0xff]
    %v3214 = vld [vmem:[#allocation7 + $0x88] sm:$0xff]
    %v3215 = vld [vmem:[#allocation7 + $0x90] sm:$0xff]
    %v3216 = vld [vmem:[#allocation7 + $0x98] sm:$0xff]
    %v3217 = vld [vmem:[#allocation7 + $0xa0] sm:$0xff]
    %v3218 = vld [vmem:[#allocation7 + $0xa8] sm:$0xff]
    %v3219 = vld [vmem:[#allocation7 + $0xb0] sm:$0xff]
    %v3220 = vld [vmem:[#allocation7 + $0xb8] sm:$0xff]
    %v3221 = vld [vmem:[#allocation7 + $0xc0] sm:$0xff]
    %v3222 = vld [vmem:[#allocation7 + $0xc8] sm:$0xff]
    %v3223 = vld [vmem:[#allocation7 + $0xd0] sm:$0xff]
    %v3224 = vld [vmem:[#allocation7 + $0xd8] sm:$0xff]
    %v3225 = vld [vmem:[#allocation7 + $0xe0] sm:$0xff]
    %v3226 = vld [vmem:[#allocation7 + $0xe8] sm:$0xff]
    %v3227 = vld [vmem:[#allocation7 + $0xf0] sm:$0xff]
    %v3228 = vld [vmem:[#allocation7 + $0xf8] sm:$0xff]
    %v3229 = vld [vmem:[#allocation7 + $0x100] sm:$0xff]
    %v3230 = vld [vmem:[#allocation7 + $0x108] sm:$0xff]
    %v3231 = vld [vmem:[#allocation7 + $0x110] sm:$0xff]
    %v3232 = vld [vmem:[#allocation7 + $0x118] sm:$0xff]
    %v3233 = vld [vmem:[#allocation7 + $0x120] sm:$0xff]
    %v3234 = vld [vmem:[#allocation7 + $0x128] sm:$0xff]
    %v3235 = vld [vmem:[#allocation7 + $0x130] sm:$0xff]
    %v3236 = vld [vmem:[#allocation7 + $0x138] sm:$0xff]
    %v3237 = vld [vmem:[#allocation7 + $0x140] sm:$0xff]
    %v3238 = vld [vmem:[#allocation7 + $0x148] sm:$0xff]
    %v3239 = vld [vmem:[#allocation7 + $0x150] sm:$0xff]
    %v3240 = vld [vmem:[#allocation7 + $0x158] sm:$0xff]
    %v3241 = vld [vmem:[#allocation7 + $0x160] sm:$0xff]
    %v3242 = vld [vmem:[#allocation7 + $0x168] sm:$0xff]
    %v3243 = vld [vmem:[#allocation7 + $0x170] sm:$0xff]
    %v3244 = vld [vmem:[#allocation7 + $0x178] sm:$0xff]
    %v3245 = vld [vmem:[#allocation7 + $0x180] sm:$0xff]
    %v3246 = vld [vmem:[#allocation7 + $0x188] sm:$0xff]
    %v3247 = vld [vmem:[#allocation7 + $0x190] sm:$0xff]
    %v3248 = vld [vmem:[#allocation7 + $0x198] sm:$0xff]
    %v3249 = vld [vmem:[#allocation7 + $0x1a0] sm:$0xff]
    %v3250 = vld [vmem:[#allocation7 + $0x1a8] sm:$0xff]
    %v3251 = vld [vmem:[#allocation7 + $0x1b0] sm:$0xff]
    %v3252 = vld [vmem:[#allocation7 + $0x1b8] sm:$0xff]
    %v3253 = vld [vmem:[#allocation7 + $0x1c0] sm:$0xff]
    %v3254 = vld [vmem:[#allocation7 + $0x1c8] sm:$0xff]
    %v3255 = vld [vmem:[#allocation7 + $0x1d0] sm:$0xff]
    %v3256 = vld [vmem:[#allocation7 + $0x1d8] sm:$0xff]
    %v3257 = vld [vmem:[#allocation7 + $0x1e0] sm:$0xff]
    %v3258 = vld [vmem:[#allocation7 + $0x1e8] sm:$0xff]
    %v3259 = vld [vmem:[#allocation7 + $0x1f0] sm:$0xff]
    %v3260 = vld [vmem:[#allocation7 + $0x1f8] sm:$0xff]
    %v3261 = vld [vmem:[#allocation9] sm:$0xff]
    %v3262 = vld [vmem:[#allocation9 + $0x8] sm:$0xff]
    %v3263 = vld [vmem:[#allocation9 + $0x10] sm:$0xff]
    %v3264 = vld [vmem:[#allocation9 + $0x18] sm:$0xff]
    %v3265 = vld [vmem:[#allocation9 + $0x20] sm:$0xff]
    %v3266 = vld [vmem:[#allocation9 + $0x28] sm:$0xff]
    %v3267 = vld [vmem:[#allocation9 + $0x30] sm:$0xff]
    %v3268 = vld [vmem:[#allocation9 + $0x38] sm:$0xff]
    %v3269 = vld [vmem:[#allocation9 + $0x40] sm:$0xff]
    %v3270 = vld [vmem:[#allocation9 + $0x48] sm:$0xff]
    %v3271 = vld [vmem:[#allocation9 + $0x50] sm:$0xff]
    %v3272 = vld [vmem:[#allocation9 + $0x58] sm:$0xff]
    %v3273 = vld [vmem:[#allocation9 + $0x60] sm:$0xff]
    %v3274 = vld [vmem:[#allocation9 + $0x68] sm:$0xff]
    %v3275 = vld [vmem:[#allocation9 + $0x70] sm:$0xff]
    %v3276 = vld [vmem:[#allocation9 + $0x78] sm:$0xff]
    %v3277 = vld [vmem:[#allocation9 + $0x80] sm:$0xff]
    %v3278 = vld [vmem:[#allocation9 + $0x88] sm:$0xff]
    %v3279 = vld [vmem:[#allocation9 + $0x90] sm:$0xff]
    %v3280 = vld [vmem:[#allocation9 + $0x98] sm:$0xff]
    %v3281 = vld [vmem:[#allocation9 + $0xa0] sm:$0xff]
    %v3282 = vld [vmem:[#allocation9 + $0xa8] sm:$0xff]
    %v3283 = vld [vmem:[#allocation9 + $0xb0] sm:$0xff]
    %v3284 = vld [vmem:[#allocation9 + $0xb8] sm:$0xff]
    %v3285 = vld [vmem:[#allocation9 + $0xc0] sm:$0xff]
    %v3286 = vld [vmem:[#allocation9 + $0xc8] sm:$0xff]
    %v3287 = vld [vmem:[#allocation9 + $0xd0] sm:$0xff]
    %v3288 = vld [vmem:[#allocation9 + $0xd8] sm:$0xff]
    %v3289 = vld [vmem:[#allocation9 + $0xe0] sm:$0xff]
    %v3290 = vld [vmem:[#allocation9 + $0xe8] sm:$0xff]
    %v3291 = vld [vmem:[#allocation9 + $0xf0] sm:$0xff]
    %v3292 = vld [vmem:[#allocation9 + $0xf8] sm:$0xff]
    %v3293 = vld [vmem:[#allocation9 + $0x100] sm:$0xff]
    %v3294 = vld [vmem:[#allocation9 + $0x108] sm:$0xff]
    %v3295 = vld [vmem:[#allocation9 + $0x110] sm:$0xff]
    %v3296 = vld [vmem:[#allocation9 + $0x118] sm:$0xff]
    %v3297 = vld [vmem:[#allocation9 + $0x120] sm:$0xff]
    %v3298 = vld [vmem:[#allocation9 + $0x128] sm:$0xff]
    %v3299 = vld [vmem:[#allocation9 + $0x130] sm:$0xff]
    %v3300 = vld [vmem:[#allocation9 + $0x138] sm:$0xff]
    %v3301 = vld [vmem:[#allocation9 + $0x140] sm:$0xff]
    %v3302 = vld [vmem:[#allocation9 + $0x148] sm:$0xff]
    %v3303 = vld [vmem:[#allocation9 + $0x150] sm:$0xff]
    %v3304 = vld [vmem:[#allocation9 + $0x158] sm:$0xff]
    %v3305 = vld [vmem:[#allocation9 + $0x160] sm:$0xff]
    %v3306 = vld [vmem:[#allocation9 + $0x168] sm:$0xff]
    %v3307 = vld [vmem:[#allocation9 + $0x170] sm:$0xff]
    %v3308 = vld [vmem:[#allocation9 + $0x178] sm:$0xff]
    %v3309 = vld [vmem:[#allocation9 + $0x180] sm:$0xff]
    %v3310 = vld [vmem:[#allocation9 + $0x188] sm:$0xff]
    %v3311 = vld [vmem:[#allocation9 + $0x190] sm:$0xff]
    %v3312 = vld [vmem:[#allocation9 + $0x198] sm:$0xff]
    %v3313 = vld [vmem:[#allocation9 + $0x1a0] sm:$0xff]
    %v3314 = vld [vmem:[#allocation9 + $0x1a8] sm:$0xff]
    %v3315 = vld [vmem:[#allocation9 + $0x1b0] sm:$0xff]
    %v3316 = vld [vmem:[#allocation9 + $0x1b8] sm:$0xff]
    %v3317 = vld [vmem:[#allocation9 + $0x1c0] sm:$0xff]
    %v3318 = vld [vmem:[#allocation9 + $0x1c8] sm:$0xff]
    %v3319 = vld [vmem:[#allocation9 + $0x1d0] sm:$0xff]
    %v3320 = vld [vmem:[#allocation9 + $0x1d8] sm:$0xff]
    %v3321 = vld [vmem:[#allocation9 + $0x1e0] sm:$0xff]
    %v3322 = vld [vmem:[#allocation9 + $0x1e8] sm:$0xff]
    %v3323 = vld [vmem:[#allocation9 + $0x1f0] sm:$0xff]
    %v3324 = vld [vmem:[#allocation9 + $0x1f8] sm:$0xff]
    %3325 = vmatprep.subr.mxu0 %v3322
    %3326 = vmatpush1.msra.mxu0 %v3321
    %3327 = vmatprep.subr.mxu0 %v3318
    %3328 = vmatpush1.msra.mxu0 %v3317
    %3329 = vmatprep.subr.mxu0 %v3314
    %3330 = vmatpush1.msra.mxu0 %v3313
    %3331 = vmatprep.subr.mxu0 %v3310
    %3332 = vmatpush1.msra.mxu0 %v3309
    %3333 = vmatprep.subr.mxu0 %v3306
    %3334 = vmatpush1.msra.mxu0 %v3305
    %3335 = vmatprep.subr.mxu0 %v3302
    %3336 = vmatpush1.msra.mxu0 %v3301
    %3337 = vmatprep.subr.mxu0 %v3298
    %3338 = vmatpush1.msra.mxu0 %v3297
    %3339 = vmatprep.subr.mxu0 %v3294
    %3340 = vmatpush1.msra.mxu0 %v3293
    %3341 = vmatprep.subr.mxu0 %v3290
    %3342 = vmatpush1.msra.mxu0 %v3289
    %3343 = vmatprep.subr.mxu0 %v3286
    %3344 = vmatpush1.msra.mxu0 %v3285
    %3345 = vmatprep.subr.mxu0 %v3282
    %3346 = vmatpush1.msra.mxu0 %v3281
    %3347 = vmatprep.subr.mxu0 %v3278
    %3348 = vmatpush1.msra.mxu0 %v3277
    %3349 = vmatprep.subr.mxu0 %v3274
    %3350 = vmatpush1.msra.mxu0 %v3273
    %3351 = vmatprep.subr.mxu0 %v3270
    %3352 = vmatpush1.msra.mxu0 %v3269
    %3353 = vmatprep.subr.mxu0 %v3266
    %3354 = vmatpush1.msra.mxu0 %v3265
    %3355 = vmatprep.subr.mxu0 %v3262
    %3356 = vmatpush1.msra.mxu0 %v3261
    %3357 = vmatprep.subr.mxu0 0.0
    %3358 = vmatpush2.msra.mxu0 0.0
    %3359 = vmatprep.subr.mxu0 0.0
    %3360 = vmatpush2.msra.mxu0 0.0
    %3361 = vmatprep.subr.mxu0 0.0
    %3362 = vmatpush2.msra.mxu0 0.0
    %3363 = vmatprep.subr.mxu0 0.0
    %3364 = vmatpush2.msra.mxu0 0.0
    %3365 = vmatprep.subr.mxu0 0.0
    %3366 = vmatpush2.msra.mxu0 0.0
    %3367 = vmatprep.subr.mxu0 0.0
    %3368 = vmatpush2.msra.mxu0 0.0
    %3369 = vmatprep.subr.mxu0 0.0
    %3370 = vmatpush2.msra.mxu0 0.0
    %3371 = vmatprep.subr.mxu0 0.0
    %3372 = vmatpush2.msra.mxu0 0.0
    %3373 = vmatprep.subr.mxu0 0.0
    %3374 = vmatpush2.msra.mxu0 0.0
    %3375 = vmatprep.subr.mxu0 0.0
    %3376 = vmatpush2.msra.mxu0 0.0
    %3377 = vmatprep.subr.mxu0 0.0
    %3378 = vmatpush2.msra.mxu0 0.0
    %3379 = vmatprep.subr.mxu0 0.0
    %3380 = vmatpush2.msra.mxu0 0.0
    %3381 = vmatprep.subr.mxu0 0.0
    %3382 = vmatpush2.msra.mxu0 0.0
    %3383 = vmatprep.subr.mxu0 0.0
    %3384 = vmatpush2.msra.mxu0 0.0
    %3385 = vmatprep.subr.mxu0 0.0
    %3386 = vmatpush2.msra.mxu0 0.0
    %3387 = vmatprep.subr.mxu0 0.0
    %3388 = vmatpush2.msra.mxu0 0.0
    %3389 = vmatprep.mubr.f32.mxu0 0.0
    %3390 = vmatmul.mubr.f32.gmra.mxu0 %v3192
    %v3391 = vpop.f32.mrf.mxu0
    %v3392 = vadd.f32 0.0, %v3391
    %v3393 = vpop.f32.mrf.mxu0
    %v3394 = vadd.f32 0.0, %v3393
    %3395 = vdwg.mxu0
    %3396 = vmatprep.subr.mxu0 %v3324
    %3397 = vmatpush1.msra.mxu0 %v3323
    %3398 = vmatprep.subr.mxu0 %v3320
    %3399 = vmatpush1.msra.mxu0 %v3319
    %3400 = vmatprep.subr.mxu0 %v3316
    %3401 = vmatpush1.msra.mxu0 %v3315
    %3402 = vmatprep.subr.mxu0 %v3312
    %3403 = vmatpush1.msra.mxu0 %v3311
    %3404 = vmatprep.subr.mxu0 %v3308
    %3405 = vmatpush1.msra.mxu0 %v3307
    %3406 = vmatprep.subr.mxu0 %v3304
    %3407 = vmatpush1.msra.mxu0 %v3303
    %3408 = vmatprep.subr.mxu0 %v3300
    %3409 = vmatpush1.msra.mxu0 %v3299
    %3410 = vmatprep.subr.mxu0 %v3296
    %3411 = vmatpush1.msra.mxu0 %v3295
    %3412 = vmatprep.subr.mxu0 %v3292
    %3413 = vmatpush1.msra.mxu0 %v3291
    %3414 = vmatprep.subr.mxu0 %v3288
    %3415 = vmatpush1.msra.mxu0 %v3287
    %3416 = vmatprep.subr.mxu0 %v3284
    %3417 = vmatpush1.msra.mxu0 %v3283
    %3418 = vmatprep.subr.mxu0 %v3280
    %3419 = vmatpush1.msra.mxu0 %v3279
    %3420 = vmatprep.subr.mxu0 %v3276
    %3421 = vmatpush1.msra.mxu0 %v3275
    %3422 = vmatprep.subr.mxu0 %v3272
    %3423 = vmatpush1.msra.mxu0 %v3271
    %3424 = vmatprep.subr.mxu0 %v3268
    %3425 = vmatpush1.msra.mxu0 %v3267
    %3426 = vmatprep.subr.mxu0 %v3264
    %3427 = vmatpush1.msra.mxu0 %v3263
    %3428 = vmatprep.subr.mxu0 0.0
    %3429 = vmatpush2.msra.mxu0 0.0
    %3430 = vmatprep.subr.mxu0 0.0
    %3431 = vmatpush2.msra.mxu0 0.0
    %3432 = vmatprep.subr.mxu0 0.0
    %3433 = vmatpush2.msra.mxu0 0.0
    %3434 = vmatprep.subr.mxu0 0.0
    %3435 = vmatpush2.msra.mxu0 0.0
    %3436 = vmatprep.subr.mxu0 0.0
    %3437 = vmatpush2.msra.mxu0 0.0
    %3438 = vmatprep.subr.mxu0 0.0
    %3439 = vmatpush2.msra.mxu0 0.0
    %3440 = vmatprep.subr.mxu0 0.0
    %3441 = vmatpush2.msra.mxu0 0.0
    %3442 = vmatprep.subr.mxu0 0.0
    %3443 = vmatpush2.msra.mxu0 0.0
    %3444 = vmatprep.subr.mxu0 0.0
    %3445 = vmatpush2.msra.mxu0 0.0
    %3446 = vmatprep.subr.mxu0 0.0
    %3447 = vmatpush2.msra.mxu0 0.0
    %3448 = vmatprep.subr.mxu0 0.0
    %3449 = vmatpush2.msra.mxu0 0.0
    %3450 = vmatprep.subr.mxu0 0.0
    %3451 = vmatpush2.msra.mxu0 0.0
    %3452 = vmatprep.subr.mxu0 0.0
    %3453 = vmatpush2.msra.mxu0 0.0
    %3454 = vmatprep.subr.mxu0 0.0
    %3455 = vmatpush2.msra.mxu0 0.0
    %3456 = vmatprep.subr.mxu0 0.0
    %3457 = vmatpush2.msra.mxu0 0.0
    %3458 = vmatprep.subr.mxu0 0.0
    %3459 = vmatpush2.msra.mxu0 0.0
    %3460 = vmatprep.mubr.f32.mxu0 0.0
    %3461 = vmatmul.mubr.f32.gmra.mxu0 %v3192
    %v3462 = vpop.f32.mrf.mxu0
    %v3463 = vadd.f32 0.0, %v3462
    %v3464 = vpop.f32.mrf.mxu0
    %v3465 = vadd.f32 0.0, %v3464
    %3466 = vdwg.mxu0
    %3467 = vmatprep.subr.mxu0 %v3258
    %3468 = vmatpush1.msra.mxu0 %v3257
    %3469 = vmatprep.subr.mxu0 %v3254
    %3470 = vmatpush1.msra.mxu0 %v3253
    %3471 = vmatprep.subr.mxu0 %v3250
    %3472 = vmatpush1.msra.mxu0 %v3249
    %3473 = vmatprep.subr.mxu0 %v3246
    %3474 = vmatpush1.msra.mxu0 %v3245
    %3475 = vmatprep.subr.mxu0 %v3242
    %3476 = vmatpush1.msra.mxu0 %v3241
    %3477 = vmatprep.subr.mxu0 %v3238
    %3478 = vmatpush1.msra.mxu0 %v3237
    %3479 = vmatprep.subr.mxu0 %v3234
    %3480 = vmatpush1.msra.mxu0 %v3233
    %3481 = vmatprep.subr.mxu0 %v3230
    %3482 = vmatpush1.msra.mxu0 %v3229
    %3483 = vmatprep.subr.mxu0 %v3226
    %3484 = vmatpush1.msra.mxu0 %v3225
    %3485 = vmatprep.subr.mxu0 %v3222
    %3486 = vmatpush1.msra.mxu0 %v3221
    %3487 = vmatprep.subr.mxu0 %v3218
    %3488 = vmatpush1.msra.mxu0 %v3217
    %3489 = vmatprep.subr.mxu0 %v3214
    %3490 = vmatpush1.msra.mxu0 %v3213
    %3491 = vmatprep.subr.mxu0 %v3210
    %3492 = vmatpush1.msra.mxu0 %v3209
    %3493 = vmatprep.subr.mxu0 %v3206
    %3494 = vmatpush1.msra.mxu0 %v3205
    %3495 = vmatprep.subr.mxu0 %v3202
    %3496 = vmatpush1.msra.mxu0 %v3201
    %3497 = vmatprep.subr.mxu0 %v3198
    %3498 = vmatpush1.msra.mxu0 %v3197
    %3499 = vmatprep.subr.mxu0 0.0
    %3500 = vmatpush2.msra.mxu0 0.0
    %3501 = vmatprep.subr.mxu0 0.0
    %3502 = vmatpush2.msra.mxu0 0.0
    %3503 = vmatprep.subr.mxu0 0.0
    %3504 = vmatpush2.msra.mxu0 0.0
    %3505 = vmatprep.subr.mxu0 0.0
    %3506 = vmatpush2.msra.mxu0 0.0
    %3507 = vmatprep.subr.mxu0 0.0
    %3508 = vmatpush2.msra.mxu0 0.0
    %3509 = vmatprep.subr.mxu0 0.0
    %3510 = vmatpush2.msra.mxu0 0.0
    %3511 = vmatprep.subr.mxu0 0.0
    %3512 = vmatpush2.msra.mxu0 0.0
    %3513 = vmatprep.subr.mxu0 0.0
    %3514 = vmatpush2.msra.mxu0 0.0
    %3515 = vmatprep.subr.mxu0 0.0
    %3516 = vmatpush2.msra.mxu0 0.0
    %3517 = vmatprep.subr.mxu0 0.0
    %3518 = vmatpush2.msra.mxu0 0.0
    %3519 = vmatprep.subr.mxu0 0.0
    %3520 = vmatpush2.msra.mxu0 0.0
    %3521 = vmatprep.subr.mxu0 0.0
    %3522 = vmatpush2.msra.mxu0 0.0
    %3523 = vmatprep.subr.mxu0 0.0
    %3524 = vmatpush2.msra.mxu0 0.0
    %3525 = vmatprep.subr.mxu0 0.0
    %3526 = vmatpush2.msra.mxu0 0.0
    %3527 = vmatprep.subr.mxu0 0.0
    %3528 = vmatpush2.msra.mxu0 0.0
    %3529 = vmatprep.subr.mxu0 0.0
    %3530 = vmatpush2.msra.mxu0 0.0
    %3531 = vmatprep.mubr.f32.mxu0 0.0
    %3532 = vmatmul.mubr.f32.gmra.mxu0 %v3196
    %v3533 = vpop.f32.mrf.mxu0
    %v3534 = vadd.f32 %v3392, %v3533
    %v3535 = vpop.f32.mrf.mxu0
    %v3536 = vadd.f32 %v3394, %v3535
    %3537 = vdwg.mxu0
    %3538 = vmatprep.subr.mxu0 %v3260
    %3539 = vmatpush1.msra.mxu0 %v3259
    %3540 = vmatprep.subr.mxu0 %v3256
    %3541 = vmatpush1.msra.mxu0 %v3255
    %3542 = vmatprep.subr.mxu0 %v3252
    %3543 = vmatpush1.msra.mxu0 %v3251
    %3544 = vmatprep.subr.mxu0 %v3248
    %3545 = vmatpush1.msra.mxu0 %v3247
    %3546 = vmatprep.subr.mxu0 %v3244
    %3547 = vmatpush1.msra.mxu0 %v3243
    %3548 = vmatprep.subr.mxu0 %v3240
    %3549 = vmatpush1.msra.mxu0 %v3239
    %3550 = vmatprep.subr.mxu0 %v3236
    %3551 = vmatpush1.msra.mxu0 %v3235
    %3552 = vmatprep.subr.mxu0 %v3232
    %3553 = vmatpush1.msra.mxu0 %v3231
    %3554 = vmatprep.subr.mxu0 %v3228
    %3555 = vmatpush1.msra.mxu0 %v3227
    %3556 = vmatprep.subr.mxu0 %v3224
    %3557 = vmatpush1.msra.mxu0 %v3223
    %3558 = vmatprep.subr.mxu0 %v3220
    %3559 = vmatpush1.msra.mxu0 %v3219
    %3560 = vmatprep.subr.mxu0 %v3216
    %3561 = vmatpush1.msra.mxu0 %v3215
    %3562 = vmatprep.subr.mxu0 %v3212
    %3563 = vmatpush1.msra.mxu0 %v3211
    %3564 = vmatprep.subr.mxu0 %v3208
    %3565 = vmatpush1.msra.mxu0 %v3207
    %3566 = vmatprep.subr.mxu0 %v3204
    %3567 = vmatpush1.msra.mxu0 %v3203
    %3568 = vmatprep.subr.mxu0 %v3200
    %3569 = vmatpush1.msra.mxu0 %v3199
    %3570 = vmatprep.subr.mxu0 0.0
    %3571 = vmatpush2.msra.mxu0 0.0
    %3572 = vmatprep.subr.mxu0 0.0
    %3573 = vmatpush2.msra.mxu0 0.0
    %3574 = vmatprep.subr.mxu0 0.0
    %3575 = vmatpush2.msra.mxu0 0.0
    %3576 = vmatprep.subr.mxu0 0.0
    %3577 = vmatpush2.msra.mxu0 0.0
    %3578 = vmatprep.subr.mxu0 0.0
    %3579 = vmatpush2.msra.mxu0 0.0
    %3580 = vmatprep.subr.mxu0 0.0
    %3581 = vmatpush2.msra.mxu0 0.0
    %3582 = vmatprep.subr.mxu0 0.0
    %3583 = vmatpush2.msra.mxu0 0.0
    %3584 = vmatprep.subr.mxu0 0.0
    %3585 = vmatpush2.msra.mxu0 0.0
    %3586 = vmatprep.subr.mxu0 0.0
    %3587 = vmatpush2.msra.mxu0 0.0
    %3588 = vmatprep.subr.mxu0 0.0
    %3589 = vmatpush2.msra.mxu0 0.0
    %3590 = vmatprep.subr.mxu0 0.0
    %3591 = vmatpush2.msra.mxu0 0.0
    %3592 = vmatprep.subr.mxu0 0.0
    %3593 = vmatpush2.msra.mxu0 0.0
    %3594 = vmatprep.subr.mxu0 0.0
    %3595 = vmatpush2.msra.mxu0 0.0
    %3596 = vmatprep.subr.mxu0 0.0
    %3597 = vmatpush2.msra.mxu0 0.0
    %3598 = vmatprep.subr.mxu0 0.0
    %3599 = vmatpush2.msra.mxu0 0.0
    %3600 = vmatprep.subr.mxu0 0.0
    %3601 = vmatpush2.msra.mxu0 0.0
    %3602 = vmatprep.mubr.f32.mxu0 0.0
    %3603 = vmatmul.mubr.f32.gmra.mxu0 %v3196
    %v3604 = vpop.f32.mrf.mxu0
    %v3605 = vadd.f32 %v3463, %v3604
    %v3606 = vpop.f32.mrf.mxu0
    %v3607 = vadd.f32 %v3465, %v3606
    %3608 = vdwg.mxu0
    %v3609 = vadd.f32 %v3534, %v485
    %v3610 = vadd.f32 %v3536, %v489
    %v3611 = vadd.f32 %v3605, %v493
    %v3612 = vadd.f32 %v3607, %v497
    %v3613 = vxor.u32 %v3609, 2147483648
    %v3614 = vmul.f32 %v3613, 1.442695
    %v3615 = vpow.pop %v3614
    %v3616 = vadd.f32 %v3615, 1.0
    %v3617 = vrcp.pop %v3616
    %v3618 = vmul.f32 1.0, %v3617
    %v3619 = vxor.u32 %v3610, 2147483648
    %v3620 = vmul.f32 %v3619, 1.442695
    %v3621 = vpow.pop %v3620
    %v3622 = vadd.f32 %v3621, 1.0
    %v3623 = vrcp.pop %v3622
    %v3624 = vmul.f32 1.0, %v3623
    %v3625 = vtanh.pop %v3611
    %v3626 = vxor.u32 %v3612, 2147483648
    %v3627 = vmul.f32 %v3626, 1.442695
    %v3628 = vpow.pop %v3627
    %v3629 = vadd.f32 %v3628, 1.0
    %v3630 = vrcp.pop %v3629
    %v3631 = vmul.f32 1.0, %v3630
    %v3632 = vmul.f32 %v3624, %v3190
    %v3633 = vmul.f32 %v3618, %v3625
    %v3634 = vadd.f32 %v3632, %v3633
    %v3635 = vtanh.pop %v3634
    %v3636 = vmul.f32 %v3631, %v3635
    %s3637 = scalar_lea.vmem [#allocation10], 56
    %3638 = vst [vmem:[%s3637] sm:$0xff] %v3636
    %3639 = vst [vmem:[#allocation2] sm:$0xff] %v3636
    %3640 = vst [vmem:[#allocation3] sm:$0xff] %v3634
    // Predicated region
    $region34: #{tpu_custom_call.1} parent=1 // pred_check
      _
    $region35: #{tpu_custom_call.1} parent=1 // pred_check_branch
      %3642 = sbr.rel (0) target = $region37
    $region36: #{tpu_custom_call.1} parent=1 // pred_region
      %s3644 = ssub.s32 1024, 1024
      %3645 = vsyncadd [#allocation6], %s3644
      %s3646 = sshll.u32 [#allocation10], 4
      %s3647 = int_to_ptr.vmem [resolvable:$true] %s3646
      %3652 = dma.vmem_to_hbm [thread:$0]  %s3647, 1024, %s4, [#allocation6], 128, 128, 8
    $region37: #{tpu_custom_call.1} parent=1 // pred_fallthru
      _
    // Predicated region
    $region38: #{tpu_custom_call.1} parent=1 // pred_check
      _
    $region39: #{tpu_custom_call.1} parent=1 // pred_check_branch
      %3654 = sbr.rel (0) target = $region41
    $region40: #{tpu_custom_call.1} parent=1 // pred_region
      %3655 = dma.done [#allocation6], 1024
    $region41: #{tpu_custom_call.1} parent=1 // pred_fallthru
      _
    %3656 = vsyncpa [#allocation5], 1
    %3657 = vsyncpa [#allocation8], 1
    %3658 = vsyncpa [#allocation6], 1

</llo_original>
